<compile_context>
chip_gen: v5e
topology: v5e:2x2
jax: 0.10.0
libtpu: 0.0.40
codegen_flags: <defaults>
</compile_context>

<pallas_src>
import functools
import math

import jax
import jax.numpy as jnp
import numpy as np
from jax.experimental import pallas as pl
from jax.experimental.pallas import tpu as pltpu


def _round_up(x, m):
    return ((x + m - 1) // m) * m


# ----------------------------------------------------------------------------
# Pallas kernel: one output tile of one (batch, group-chunk).
# ----------------------------------------------------------------------------
def _conv_tile_kernel(x_ref, w_ref, b_ref, o_ref, *, n_offsets, t_rows, lrelu):
    # x_ref: (1, 1, W, CIN_blk)          bf16   output-tile rows + halo
    # w_ref: (1, R, CIN_blk, COUT_blk)   bf16   tap/phase-folded weights
    # b_ref: (1, 1, COUT_blk)            f32
    # o_ref: (1, 1, T, COUT_blk)         f32
    cout = o_ref.shape[-1]
    acc = jnp.zeros((t_rows, cout), jnp.float32)
    for r in range(n_offsets):           # static unroll: contiguous sublane loads
        xk = x_ref[0, 0, r:r + t_rows, :]                       # (T, CIN_blk) bf16
        acc = acc + jnp.dot(xk, w_ref[0, r],
                            preferred_element_type=jnp.float32)  # MXU, f32 acc
    acc = acc + b_ref[0]
    if lrelu:
        acc = jnp.where(acc > 0, acc, 0.2 * acc)                 # LeakyReLU(0.2)
    # TODO(synk): the C_out=1 head stores a 1-wide lane tile (masked vst); a
    # lane-dense repack of the final layer's output is left as a follow-up.
    o_ref[0, 0] = acc.astype(o_ref.dtype)


# ----------------------------------------------------------------------------
# Per-layer wrapper: pad + (polyphase / im2col) fold + halo windowing + pallas_call
# ----------------------------------------------------------------------------
def conv1d_layer(x_nlc, layer, *, l_tile=256):
    """x_nlc: (N, L, C_in) f32 in NLC.  Returns (N, L_out, C_out) f32 in NLC."""
    N, L, C_in = x_nlc.shape
    K, s, pad = layer["K"], layer["stride"], layer["pad"]
    C_out = layer["out_c"]
    R, GC = layer["R"], layer["GC"]
    CIN_blk, COUT_blk = layer["CIN_blk"], layer["COUT_blk"]
    path = layer["path"]

    Lp = L + 2 * pad
    L_out = (Lp - K) // s + 1
    T = min(_round_up(max(l_tile, 8), 8), _round_up(L_out, 8))
    num_t = -(-L_out // T)
    W = T + R - 1

    xb = x_nlc.astype(jnp.bfloat16)                         # bf16 matmul operands
    xb = jnp.pad(xb, ((0, 0), (pad, pad), (0, 0)), mode=layer["pad_mode"])

    if path == "im2col":
        # fold all K taps into the contraction (small C_in, stride 1).
        need = (num_t * T - 1) * s + K
        if need > Lp:
            xb = jnp.pad(xb, ((0, 0), (0, need - Lp), (0, 0)))
        idx = jnp.arange(num_t * T)[:, None] * s + jnp.arange(K)[None, :]
        x_rows = xb[:, idx, :].reshape(N, num_t * T, K * C_in)
        x_win = x_rows.reshape(N, num_t, T, K * C_in)
    else:
        if s > 1:
            # channel-major polyphase fold: lane j = c*s + phase.
            Lps = _round_up(Lp, s)
            if Lps > Lp:
                xb = jnp.pad(xb, ((0, 0), (0, Lps - Lp), (0, 0)))
            x_rows = jnp.transpose(
                xb.reshape(N, Lps // s, s, C_in), (0, 1, 3, 2)
            ).reshape(N, Lps // s, C_in * s)
        else:
            x_rows = xb
        rows = x_rows.shape[1]
        need = num_t * T + R - 1
        if need > rows:
            x_rows = jnp.pad(x_rows, ((0, 0), (0, need - rows), (0, 0)))
        # halo windowing: duplicate only the (R-1)-row halo per tile.
        idx = jnp.arange(num_t)[:, None] * T + jnp.arange(W)[None, :]
        x_win = x_rows[:, idx, :]                           # (N, num_t, W, GC*CIN_blk)

    kernel = functools.partial(_conv_tile_kernel, n_offsets=R, t_rows=T,
                               lrelu=layer["lrelu"])
    out = pl.pallas_call(
        kernel,
        out_shape=jax.ShapeDtypeStruct((N, num_t, T, C_out), jnp.float32),
        grid_spec=pltpu.PrefetchScalarGridSpec(
            num_scalar_prefetch=0,
            grid=(N, GC, num_t),                    # L-tiles innermost: weight chunk stays resident
            in_specs=[
                pl.BlockSpec((1, 1, W, CIN_blk), lambda b, c, t: (b, t, 0, c)),
                pl.BlockSpec((1, R, CIN_blk, COUT_blk),
                             lambda b, c, t: (c, 0, 0, 0)),
                pl.BlockSpec((1, 1, COUT_blk), lambda b, c, t: (c, 0, 0)),
            ],
            out_specs=pl.BlockSpec((1, 1, T, COUT_blk),
                                   lambda b, c, t: (b, t, 0, c)),
        ),
        compiler_params=pltpu.CompilerParams(
            dimension_semantics=("parallel", "parallel", "arbitrary"),
            vmem_limit_bytes=48 * 1024 * 1024),
    )(x_win, layer["w_fold"], layer["bias_blk"])

    return out.reshape(N, num_t * T, C_out)[:, :L_out, :]


# ----------------------------------------------------------------------------
# Parameter setup — mirrors NLayerDiscriminator.__init__ (weight_norm folded in)
# ----------------------------------------------------------------------------
def _layer_cfgs(in_channels, ndf, n_layers, downsampling_factor):
    cfgs = []
    cfgs.append(dict(in_c=in_channels, out_c=ndf, K=15, stride=1, pad=7,
                     pad_mode="reflect", groups=1, lrelu=True))
    nf = ndf
    s = downsampling_factor
    max_nf = s ** (n_layers - 1) * ndf
    nf_prev = nf
    for _ in range(1, n_layers + 1):
        nf_prev = nf
        nf = min(nf * s, max_nf)
        cfgs.append(dict(in_c=nf_prev, out_c=nf, K=s * 10 + 1, stride=s,
                         pad=s * 5, pad_mode="constant",
                         groups=nf_prev // 4, lrelu=True))
    nf_out = min(nf * 2, max_nf)
    cfgs.append(dict(in_c=nf_prev, out_c=nf_out, K=5, stride=1, pad=2,
                     pad_mode="constant", groups=1, lrelu=True))
    cfgs.append(dict(in_c=nf_out, out_c=1, K=3, stride=1, pad=1,
                     pad_mode="constant", groups=1, lrelu=False))
    return cfgs


def _pick_group_block(groups, ipg, opg, s):
    """Smallest group block whose channel slabs are lane-dense (mult. of 128)."""
    if groups == 1:
        return 1
    for gb in range(1, groups):
        if groups % gb:
            continue
        if (gb * ipg * s) % 128 == 0 and (gb * opg) % 128 == 0:
            return gb
    return groups                      # small layers: one full (exact) block


def _prepare(cfg):
    C_in, C_out = cfg["in_c"], cfg["out_c"]
    K, s, groups = cfg["K"], cfg["stride"], cfg["groups"]
    ipg, opg = C_in // groups, C_out // groups
    if groups == 1 and s == 1 and C_in * K <= 64:
        path, R, gb = "im2col", 1, 1
        CIN_blk, COUT_blk = K * C_in, C_out
    else:
        path = "general"               # polyphase fold (s>1) / per-tap (s==1)
        R = -(-K // s)
        gb = _pick_group_block(groups, ipg, opg, s)
        CIN_blk, COUT_blk = gb * ipg * s, gb * opg
    cfg.update(path=path, R=R, gb=gb, GC=groups // gb,
               CIN_blk=CIN_blk, COUT_blk=COUT_blk, ipg=ipg, opg=opg)
    return cfg


def _fold_weight(w_torch, cfg):
    """(C_out, C_in//groups, K) -> (GC, R, CIN_blk, COUT_blk), un-densified per chunk."""
    w = np.asarray(w_torch, np.float32)
    C_out, ipg, K = w.shape
    if cfg["path"] == "im2col":
        wf = np.transpose(w, (2, 1, 0)).reshape(1, 1, K * cfg["in_c"], C_out)
    else:
        s, R, gb, GC = cfg["stride"], cfg["R"], cfg["gb"], cfg["GC"]
        opg = cfg["opg"]
        w5 = w.reshape(GC, gb, opg, ipg, K)
        w5 = np.pad(w5, ((0, 0),) * 4 + ((0, R * s - K),))          # phantom taps = 0
        w6 = w5.reshape(GC, gb, opg, ipg, R, s)
        # wf[c, r, (g*ipg+i)*s+p, h*opg+o] = w[(c*gb+g)*opg+o, i, r*s+p] * delta(g,h)
        wf = np.einsum("cgoirp,gh->crgipho", w6, np.eye(gb, dtype=np.float32))
        wf = wf.reshape(GC, R, gb * ipg * s, gb * opg)
    return jnp.asarray(wf, jnp.bfloat16)


def init_params(key, in_channels, ndf, n_layers, downsampling_factor):
    params = []
    for cfg in _layer_cfgs(in_channels, ndf, n_layers, downsampling_factor):
        cfg = _prepare(cfg)
        key, k1, k2, k3 = jax.random.split(key, 4)
        in_per_g = cfg["in_c"] // cfg["groups"]
        fan_in = in_per_g * cfg["K"]
        bound = 1.0 / math.sqrt(fan_in)
        v = jax.random.uniform(k1, (cfg["out_c"], in_per_g, cfg["K"]),
                               jnp.float32, -bound, bound)
        g = jax.random.uniform(k2, (cfg["out_c"],), jnp.float32, 0.5, 1.5)
        b = jax.random.uniform(k3, (cfg["out_c"],), jnp.float32, -bound, bound)
        # weight_norm: w = g * v / ||v||  (norm over dims 1,2)
        norm = jnp.sqrt(jnp.sum(v * v, axis=(1, 2), keepdims=True))
        w_torch = g[:, None, None] * v / norm
        params.append(dict(
            cfg,
            w_torch=w_torch,                                   # f32, for reference
            bias=b,
            w_fold=_fold_weight(w_torch, cfg),                 # bf16 chunked weights
            bias_blk=b.reshape(cfg["GC"], 1, cfg["COUT_blk"]).astype(jnp.float32),
        ))
    return params


# ----------------------------------------------------------------------------
# Forward pass (returns all intermediate layer outputs, like the PyTorch module)
# ----------------------------------------------------------------------------
def nlayer_discriminator_forward(x_ncl, params, *, l_tile=256):
    x = jnp.transpose(x_ncl, (0, 2, 1))           # NCL -> NLC once; stays NLC
    results = []
    for layer in params:
        y = conv1d_layer(x, layer, l_tile=l_tile)
        results.append(jnp.transpose(y, (0, 2, 1)))   # only returned maps -> NCL
        x = y
    return results


# ----------------------------------------------------------------------------
# Pure-JAX reference (lax.conv_general_dilated) for correctness
# ----------------------------------------------------------------------------
def reference_forward(x_ncl, params):
    results = []
    x = x_ncl
    for p in params:
        pad = p["pad"]
        if p["pad_mode"] == "reflect":
            xp = jnp.pad(x, ((0, 0), (0, 0), (pad, pad)), mode="reflect")
            conv_pad = 0
        else:
            xp = x
            conv_pad = pad
        y = jax.lax.conv_general_dilated(
            xp, p["w_torch"], window_strides=(p["stride"],),
            padding=[(conv_pad, conv_pad)],
            dimension_numbers=("NCH", "OIH", "NCH"),
            feature_group_count=p["groups"],
            precision=jax.lax.Precision.HIGHEST)
        y = y + p["bias"][None, :, None]
        if p["lrelu"]:
            y = jnp.where(y > 0, y, 0.2 * y)
        results.append(y)
        x = y
    return results


if __name__ == "__main__":
    # NLayerDiscriminator(in_channels=4, ndf=8, n_layers=2, downsampling_factor=2)
    in_channels, ndf, n_layers, downsampling_factor = 4, 8, 2, 2
    N, L = 2, 32

    key = jax.random.PRNGKey(0)
    kx, kp = jax.random.split(key)
    x = jax.random.normal(kx, (N, in_channels, L), jnp.float32)  # NCL like PyTorch
    params = init_params(kp, in_channels, ndf, n_layers, downsampling_factor)

    # small l_tile so the test exercises multi-tile + halo paths of the kernel
    fwd = jax.jit(functools.partial(nlayer_discriminator_forward,
                                    params=params, l_tile=8))
    outs = jax.block_until_ready(fwd(x))

    refs = reference_forward(x, params)
    for i, (o, r) in enumerate(zip(outs, refs)):
        assert o.shape == r.shape, (i, o.shape, r.shape)
        err = float(jnp.max(jnp.abs(o - r)))
        scale = float(jnp.max(jnp.abs(r))) + 1.0
        assert err < 5e-2 * scale, f"layer {i}: max abs err {err} (scale {scale})"

    print("KERNEL_OK")
</pallas_src>

<mosaic_0001>
module attributes {stable_mosaic.version = 11 : i64} {
  func.func @_conv_tile_kernel(%arg0: i32, %arg1: i32, %arg2: i32, %arg3: memref<1x1x8x60xbf16, #tpu.memory_space<vmem>>, %arg4: memref<1x1x60x8xbf16, #tpu.memory_space<vmem>>, %arg5: memref<1x1x8xf32, #tpu.memory_space<vmem>>, %arg6: memref<1x1x8x8xf32, #tpu.memory_space<vmem>>) attributes {dimension_semantics = [#tpu.dimension_semantics<parallel>, #tpu.dimension_semantics<parallel>, #tpu.dimension_semantics<arbitrary>], iteration_bounds = array<i64: 2, 1, 4>, scalar_prefetch = 0 : i64, scratch_operands = 0 : i64, tpu.core_type = #tpu.core_type<tc>, window_params = [{transform_indices = @transform_0, window_bounds = array<i64: 1, 1, 8, 60>}, {transform_indices = @transform_1, window_bounds = array<i64: 1, 1, 60, 8>}, {transform_indices = @transform_2, window_bounds = array<i64: 1, 1, 8>}, {transform_indices = @transform_3, window_bounds = array<i64: 1, 1, 8, 8>}]} {
    %cst = arith.constant 0.000000e+00 : f32
    %0 = vector.broadcast %cst : f32 to vector<8x8xf32>
    %c0 = arith.constant 0 : index
    %c0_0 = arith.constant 0 : index
    %c0_1 = arith.constant 0 : index
    %c0_2 = arith.constant 0 : index
    %1 = vector.load %arg3[%c0, %c0_0, %c0_1, %c0_2] : memref<1x1x8x60xbf16, #tpu.memory_space<vmem>>, vector<1x1x8x60xbf16>
    %2 = vector.shape_cast %1 : vector<1x1x8x60xbf16> to vector<8x60xbf16>
    %c0_3 = arith.constant 0 : index
    %c0_4 = arith.constant 0 : index
    %c0_5 = arith.constant 0 : index
    %c0_6 = arith.constant 0 : index
    %3 = vector.load %arg4[%c0_3, %c0_4, %c0_5, %c0_6] : memref<1x1x60x8xbf16, #tpu.memory_space<vmem>>, vector<1x1x60x8xbf16>
    %4 = vector.shape_cast %3 : vector<1x1x60x8xbf16> to vector<60x8xbf16>
    %cst_7 = arith.constant dense<0.000000e+00> : vector<8x8xf32>
    %5 = tpu.matmul %2, %4, %cst_7 {dimension_numbers = #tpu.dot_dimension_numbers<[1], [0], [0], [1], [0, 0, 1, 1], [], []>} : vector<8x60xbf16>, vector<60x8xbf16>, vector<8x8xf32> -> vector<8x8xf32>
    %6 = arith.addf %0, %5 : vector<8x8xf32>
    %c0_8 = arith.constant 0 : index
    %c0_9 = arith.constant 0 : index
    %c0_10 = arith.constant 0 : index
    %7 = vector.load %arg5[%c0_8, %c0_9, %c0_10] : memref<1x1x8xf32, #tpu.memory_space<vmem>>, vector<1x1x8xf32>
    %8 = vector.shape_cast %7 : vector<1x1x8xf32> to vector<1x8xf32>
    %9 = vector.broadcast %8 : vector<1x8xf32> to vector<8x8xf32>
    %10 = arith.addf %6, %9 : vector<8x8xf32>
    %cst_11 = arith.constant 0.000000e+00 : f32
    %11 = vector.broadcast %cst_11 : f32 to vector<8x8xf32>
    %12 = arith.cmpf ogt, %10, %11 : vector<8x8xf32>
    %cst_12 = arith.constant 2.000000e-01 : f32
    %13 = vector.broadcast %cst_12 : f32 to vector<8x8xf32>
    %14 = arith.mulf %13, %10 : vector<8x8xf32>
    %15 = arith.select %12, %10, %14 : vector<8x8xi1>, vector<8x8xf32>
    %c0_13 = arith.constant 0 : index
    %c0_14 = arith.constant 0 : index
    %c0_15 = arith.constant 0 : index
    %c0_16 = arith.constant 0 : index
    %16 = vector.load %arg6[%c0_13, %c0_14, %c0_15, %c0_16] : memref<1x1x8x8xf32, #tpu.memory_space<vmem>>, vector<1x1x8x8xf32>
    %17 = vector.shape_cast %16 : vector<1x1x8x8xf32> to vector<8x8xf32>
    %18 = vector.shape_cast %15 : vector<8x8xf32> to vector<1x1x8x8xf32>
    tpu.vector_store %arg6[%c0_13, %c0_14, %c0_15, %c0_16], %18 {strides = array<i32>} : memref<1x1x8x8xf32, #tpu.memory_space<vmem>>, vector<1x1x8x8xf32>,
    return
  }
  func.func @transform_0(%arg0: i32, %arg1: i32, %arg2: i32) -> (i32, i32, i32, i32) {
    %c0_i32 = arith.constant 0 : i32
    %c0_i32_0 = arith.constant 0 : i32
    return %arg0, %arg2, %c0_i32, %arg1 : i32, i32, i32, i32
  }
  func.func @transform_1(%arg0: i32, %arg1: i32, %arg2: i32) -> (i32, i32, i32, i32) {
    %c0_i32 = arith.constant 0 : i32
    %c0_i32_0 = arith.constant 0 : i32
    %c0_i32_1 = arith.constant 0 : i32
    %c0_i32_2 = arith.constant 0 : i32
    return %arg1, %c0_i32, %c0_i32_0, %c0_i32_1 : i32, i32, i32, i32
  }
  func.func @transform_2(%arg0: i32, %arg1: i32, %arg2: i32) -> (i32, i32, i32) {
    %c0_i32 = arith.constant 0 : i32
    %c0_i32_0 = arith.constant 0 : i32
    %c0_i32_1 = arith.constant 0 : i32
    return %arg1, %c0_i32, %c0_i32_0 : i32, i32, i32
  }
  func.func @transform_3(%arg0: i32, %arg1: i32, %arg2: i32) -> (i32, i32, i32, i32) {
    %c0_i32 = arith.constant 0 : i32
    %c0_i32_0 = arith.constant 0 : i32
    return %arg0, %arg2, %c0_i32, %arg1 : i32, i32, i32, i32
  }
}

module attributes {stable_mosaic.version = 11 : i64} {
  func.func @_conv_tile_kernel(%arg0: i32, %arg1: i32, %arg2: i32, %arg3: memref<1x1x18x16xbf16, #tpu.memory_space<vmem>>, %arg4: memref<1x11x16x16xbf16, #tpu.memory_space<vmem>>, %arg5: memref<1x1x16xf32, #tpu.memory_space<vmem>>, %arg6: memref<1x1x8x16xf32, #tpu.memory_space<vmem>>) attributes {dimension_semantics = [#tpu.dimension_semantics<parallel>, #tpu.dimension_semantics<parallel>, #tpu.dimension_semantics<arbitrary>], iteration_bounds = array<i64: 2, 1, 2>, scalar_prefetch = 0 : i64, scratch_operands = 0 : i64, tpu.core_type = #tpu.core_type<tc>, window_params = [{transform_indices = @transform_0, window_bounds = array<i64: 1, 1, 18, 16>}, {transform_indices = @transform_1, window_bounds = array<i64: 1, 11, 16, 16>}, {transform_indices = @transform_2, window_bounds = array<i64: 1, 1, 16>}, {transform_indices = @transform_3, window_bounds = array<i64: 1, 1, 8, 16>}]} {
    %cst = arith.constant 0.000000e+00 : f32
    %0 = vector.broadcast %cst : f32 to vector<8x16xf32>
    %c0 = arith.constant 0 : index
    %c0_0 = arith.constant 0 : index
    %c0_1 = arith.constant 0 : index
    %c0_2 = arith.constant 0 : index
    %1 = vector.load %arg3[%c0, %c0_0, %c0_1, %c0_2] : memref<1x1x18x16xbf16, #tpu.memory_space<vmem>>, vector<1x1x8x16xbf16>
    %2 = vector.shape_cast %1 : vector<1x1x8x16xbf16> to vector<8x16xbf16>
    %c0_3 = arith.constant 0 : index
    %c0_4 = arith.constant 0 : index
    %c0_5 = arith.constant 0 : index
    %c0_6 = arith.constant 0 : index
    %3 = vector.load %arg4[%c0_3, %c0_4, %c0_5, %c0_6] : memref<1x11x16x16xbf16, #tpu.memory_space<vmem>>, vector<1x1x16x16xbf16>
    %4 = vector.shape_cast %3 : vector<1x1x16x16xbf16> to vector<16x16xbf16>
    %cst_7 = arith.constant dense<0.000000e+00> : vector<8x16xf32>
    %5 = tpu.matmul %2, %4, %cst_7 {dimension_numbers = #tpu.dot_dimension_numbers<[1], [0], [0], [1], [0, 0, 1, 1], [], []>} : vector<8x16xbf16>, vector<16x16xbf16>, vector<8x16xf32> -> vector<8x16xf32>
    %6 = arith.addf %0, %5 : vector<8x16xf32>
    %c0_8 = arith.constant 0 : index
    %c0_9 = arith.constant 0 : index
    %c1 = arith.constant 1 : index
    %c0_10 = arith.constant 0 : index
    %7 = vector.load %arg3[%c0_8, %c0_9, %c1, %c0_10] : memref<1x1x18x16xbf16, #tpu.memory_space<vmem>>, vector<1x1x8x16xbf16>
    %8 = vector.shape_cast %7 : vector<1x1x8x16xbf16> to vector<8x16xbf16>
    %c0_11 = arith.constant 0 : index
    %c1_12 = arith.constant 1 : index
    %c0_13 = arith.constant 0 : index
    %c0_14 = arith.constant 0 : index
    %9 = vector.load %arg4[%c0_11, %c1_12, %c0_13, %c0_14] : memref<1x11x16x16xbf16, #tpu.memory_space<vmem>>, vector<1x1x16x16xbf16>
    %10 = vector.shape_cast %9 : vector<1x1x16x16xbf16> to vector<16x16xbf16>
    %cst_15 = arith.constant dense<0.000000e+00> : vector<8x16xf32>
    %11 = tpu.matmul %8, %10, %cst_15 {dimension_numbers = #tpu.dot_dimension_numbers<[1], [0], [0], [1], [0, 0, 1, 1], [], []>} : vector<8x16xbf16>, vector<16x16xbf16>, vector<8x16xf32> -> vector<8x16xf32>
    %12 = arith.addf %6, %11 : vector<8x16xf32>
    %c0_16 = arith.constant 0 : index
    %c0_17 = arith.constant 0 : index
    %c2 = arith.constant 2 : index
    %c0_18 = arith.constant 0 : index
    %13 = vector.load %arg3[%c0_16, %c0_17, %c2, %c0_18] : memref<1x1x18x16xbf16, #tpu.memory_space<vmem>>, vector<1x1x8x16xbf16>
    %14 = vector.shape_cast %13 : vector<1x1x8x16xbf16> to vector<8x16xbf16>
    %c0_19 = arith.constant 0 : index
    %c2_20 = arith.constant 2 : index
    %c0_21 = arith.constant 0 : index
    %c0_22 = arith.constant 0 : index
    %15 = vector.load %arg4[%c0_19, %c2_20, %c0_21, %c0_22] : memref<1x11x16x16xbf16, #tpu.memory_space<vmem>>, vector<1x1x16x16xbf16>
    %16 = vector.shape_cast %15 : vector<1x1x16x16xbf16> to vector<16x16xbf16>
    %cst_23 = arith.constant dense<0.000000e+00> : vector<8x16xf32>
    %17 = tpu.matmul %14, %16, %cst_23 {dimension_numbers = #tpu.dot_dimension_numbers<[1], [0], [0], [1], [0, 0, 1, 1], [], []>} : vector<8x16xbf16>, vector<16x16xbf16>, vector<8x16xf32> -> vector<8x16xf32>
    %18 = arith.addf %12, %17 : vector<8x16xf32>
    %c0_24 = arith.constant 0 : index
    %c0_25 = arith.constant 0 : index
    %c3 = arith.constant 3 : index
    %c0_26 = arith.constant 0 : index
    %19 = vector.load %arg3[%c0_24, %c0_25, %c3, %c0_26] : memref<1x1x18x16xbf16, #tpu.memory_space<vmem>>, vector<1x1x8x16xbf16>
    %20 = vector.shape_cast %19 : vector<1x1x8x16xbf16> to vector<8x16xbf16>
    %c0_27 = arith.constant 0 : index
    %c3_28 = arith.constant 3 : index
    %c0_29 = arith.constant 0 : index
    %c0_30 = arith.constant 0 : index
    %21 = vector.load %arg4[%c0_27, %c3_28, %c0_29, %c0_30] : memref<1x11x16x16xbf16, #tpu.memory_space<vmem>>, vector<1x1x16x16xbf16>
    %22 = vector.shape_cast %21 : vector<1x1x16x16xbf16> to vector<16x16xbf16>
    %cst_31 = arith.constant dense<0.000000e+00> : vector<8x16xf32>
    %23 = tpu.matmul %20, %22, %cst_31 {dimension_numbers = #tpu.dot_dimension_numbers<[1], [0], [0], [1], [0, 0, 1, 1], [], []>} : vector<8x16xbf16>, vector<16x16xbf16>, vector<8x16xf32> -> vector<8x16xf32>
    %24 = arith.addf %18, %23 : vector<8x16xf32>
    %c0_32 = arith.constant 0 : index
    %c0_33 = arith.constant 0 : index
    %c4 = arith.constant 4 : index
    %c0_34 = arith.constant 0 : index
    %25 = vector.load %arg3[%c0_32, %c0_33, %c4, %c0_34] : memref<1x1x18x16xbf16, #tpu.memory_space<vmem>>, vector<1x1x8x16xbf16>
    %26 = vector.shape_cast %25 : vector<1x1x8x16xbf16> to vector<8x16xbf16>
    %c0_35 = arith.constant 0 : index
    %c4_36 = arith.constant 4 : index
    %c0_37 = arith.constant 0 : index
    %c0_38 = arith.constant 0 : index
    %27 = vector.load %arg4[%c0_35, %c4_36, %c0_37, %c0_38] : memref<1x11x16x16xbf16, #tpu.memory_space<vmem>>, vector<1x1x16x16xbf16>
    %28 = vector.shape_cast %27 : vector<1x1x16x16xbf16> to vector<16x16xbf16>
    %cst_39 = arith.constant dense<0.000000e+00> : vector<8x16xf32>
    %29 = tpu.matmul %26, %28, %cst_39 {dimension_numbers = #tpu.dot_dimension_numbers<[1], [0], [0], [1], [0, 0, 1, 1], [], []>} : vector<8x16xbf16>, vector<16x16xbf16>, vector<8x16xf32> -> vector<8x16xf32>
    %30 = arith.addf %24, %29 : vector<8x16xf32>
    %c0_40 = arith.constant 0 : index
    %c0_41 = arith.constant 0 : index
    %c5 = arith.constant 5 : index
    %c0_42 = arith.constant 0 : index
    %31 = vector.load %arg3[%c0_40, %c0_41, %c5, %c0_42] : memref<1x1x18x16xbf16, #tpu.memory_space<vmem>>, vector<1x1x8x16xbf16>
    %32 = vector.shape_cast %31 : vector<1x1x8x16xbf16> to vector<8x16xbf16>
    %c0_43 = arith.constant 0 : index
    %c5_44 = arith.constant 5 : index
    %c0_45 = arith.constant 0 : index
    %c0_46 = arith.constant 0 : index
    %33 = vector.load %arg4[%c0_43, %c5_44, %c0_45, %c0_46] : memref<1x11x16x16xbf16, #tpu.memory_space<vmem>>, vector<1x1x16x16xbf16>
    %34 = vector.shape_cast %33 : vector<1x1x16x16xbf16> to vector<16x16xbf16>
    %cst_47 = arith.constant dense<0.000000e+00> : vector<8x16xf32>
    %35 = tpu.matmul %32, %34, %cst_47 {dimension_numbers = #tpu.dot_dimension_numbers<[1], [0], [0], [1], [0, 0, 1, 1], [], []>} : vector<8x16xbf16>, vector<16x16xbf16>, vector<8x16xf32> -> vector<8x16xf32>
    %36 = arith.addf %30, %35 : vector<8x16xf32>
    %c0_48 = arith.constant 0 : index
    %c0_49 = arith.constant 0 : index
    %c6 = arith.constant 6 : index
    %c0_50 = arith.constant 0 : index
    %37 = vector.load %arg3[%c0_48, %c0_49, %c6, %c0_50] : memref<1x1x18x16xbf16, #tpu.memory_space<vmem>>, vector<1x1x8x16xbf16>
    %38 = vector.shape_cast %37 : vector<1x1x8x16xbf16> to vector<8x16xbf16>
    %c0_51 = arith.constant 0 : index
    %c6_52 = arith.constant 6 : index
    %c0_53 = arith.constant 0 : index
    %c0_54 = arith.constant 0 : index
    %39 = vector.load %arg4[%c0_51, %c6_52, %c0_53, %c0_54] : memref<1x11x16x16xbf16, #tpu.memory_space<vmem>>, vector<1x1x16x16xbf16>
    %40 = vector.shape_cast %39 : vector<1x1x16x16xbf16> to vector<16x16xbf16>
    %cst_55 = arith.constant dense<0.000000e+00> : vector<8x16xf32>
    %41 = tpu.matmul %38, %40, %cst_55 {dimension_numbers = #tpu.dot_dimension_numbers<[1], [0], [0], [1], [0, 0, 1, 1], [], []>} : vector<8x16xbf16>, vector<16x16xbf16>, vector<8x16xf32> -> vector<8x16xf32>
    %42 = arith.addf %36, %41 : vector<8x16xf32>
    %c0_56 = arith.constant 0 : index
    %c0_57 = arith.constant 0 : index
    %c7 = arith.constant 7 : index
    %c0_58 = arith.constant 0 : index
    %43 = vector.load %arg3[%c0_56, %c0_57, %c7, %c0_58] : memref<1x1x18x16xbf16, #tpu.memory_space<vmem>>, vector<1x1x8x16xbf16>
    %44 = vector.shape_cast %43 : vector<1x1x8x16xbf16> to vector<8x16xbf16>
    %c0_59 = arith.constant 0 : index
    %c7_60 = arith.constant 7 : index
    %c0_61 = arith.constant 0 : index
    %c0_62 = arith.constant 0 : index
    %45 = vector.load %arg4[%c0_59, %c7_60, %c0_61, %c0_62] : memref<1x11x16x16xbf16, #tpu.memory_space<vmem>>, vector<1x1x16x16xbf16>
    %46 = vector.shape_cast %45 : vector<1x1x16x16xbf16> to vector<16x16xbf16>
    %cst_63 = arith.constant dense<0.000000e+00> : vector<8x16xf32>
    %47 = tpu.matmul %44, %46, %cst_63 {dimension_numbers = #tpu.dot_dimension_numbers<[1], [0], [0], [1], [0, 0, 1, 1], [], []>} : vector<8x16xbf16>, vector<16x16xbf16>, vector<8x16xf32> -> vector<8x16xf32>
    %48 = arith.addf %42, %47 : vector<8x16xf32>
    %c0_64 = arith.constant 0 : index
    %c0_65 = arith.constant 0 : index
    %c8 = arith.constant 8 : index
    %c0_66 = arith.constant 0 : index
    %49 = vector.load %arg3[%c0_64, %c0_65, %c8, %c0_66] : memref<1x1x18x16xbf16, #tpu.memory_space<vmem>>, vector<1x1x8x16xbf16>
    %50 = vector.shape_cast %49 : vector<1x1x8x16xbf16> to vector<8x16xbf16>
    %c0_67 = arith.constant 0 : index
    %c8_68 = arith.constant 8 : index
    %c0_69 = arith.constant 0 : index
    %c0_70 = arith.constant 0 : index
    %51 = vector.load %arg4[%c0_67, %c8_68, %c0_69, %c0_70] : memref<1x11x16x16xbf16, #tpu.memory_space<vmem>>, vector<1x1x16x16xbf16>
    %52 = vector.shape_cast %51 : vector<1x1x16x16xbf16> to vector<16x16xbf16>
    %cst_71 = arith.constant dense<0.000000e+00> : vector<8x16xf32>
    %53 = tpu.matmul %50, %52, %cst_71 {dimension_numbers = #tpu.dot_dimension_numbers<[1], [0], [0], [1], [0, 0, 1, 1], [], []>} : vector<8x16xbf16>, vector<16x16xbf16>, vector<8x16xf32> -> vector<8x16xf32>
    %54 = arith.addf %48, %53 : vector<8x16xf32>
    %c0_72 = arith.constant 0 : index
    %c0_73 = arith.constant 0 : index
    %c9 = arith.constant 9 : index
    %c0_74 = arith.constant 0 : index
    %55 = vector.load %arg3[%c0_72, %c0_73, %c9, %c0_74] : memref<1x1x18x16xbf16, #tpu.memory_space<vmem>>, vector<1x1x8x16xbf16>
    %56 = vector.shape_cast %55 : vector<1x1x8x16xbf16> to vector<8x16xbf16>
    %c0_75 = arith.constant 0 : index
    %c9_76 = arith.constant 9 : index
    %c0_77 = arith.constant 0 : index
    %c0_78 = arith.constant 0 : index
    %57 = vector.load %arg4[%c0_75, %c9_76, %c0_77, %c0_78] : memref<1x11x16x16xbf16, #tpu.memory_space<vmem>>, vector<1x1x16x16xbf16>
    %58 = vector.shape_cast %57 : vector<1x1x16x16xbf16> to vector<16x16xbf16>
    %cst_79 = arith.constant dense<0.000000e+00> : vector<8x16xf32>
    %59 = tpu.matmul %56, %58, %cst_79 {dimension_numbers = #tpu.dot_dimension_numbers<[1], [0], [0], [1], [0, 0, 1, 1], [], []>} : vector<8x16xbf16>, vector<16x16xbf16>, vector<8x16xf32> -> vector<8x16xf32>
    %60 = arith.addf %54, %59 : vector<8x16xf32>
    %c0_80 = arith.constant 0 : index
    %c0_81 = arith.constant 0 : index
    %c10 = arith.constant 10 : index
    %c0_82 = arith.constant 0 : index
    %61 = vector.load %arg3[%c0_80, %c0_81, %c10, %c0_82] : memref<1x1x18x16xbf16, #tpu.memory_space<vmem>>, vector<1x1x8x16xbf16>
    %62 = vector.shape_cast %61 : vector<1x1x8x16xbf16> to vector<8x16xbf16>
    %c0_83 = arith.constant 0 : index
    %c10_84 = arith.constant 10 : index
    %c0_85 = arith.constant 0 : index
    %c0_86 = arith.constant 0 : index
    %63 = vector.load %arg4[%c0_83, %c10_84, %c0_85, %c0_86] : memref<1x11x16x16xbf16, #tpu.memory_space<vmem>>, vector<1x1x16x16xbf16>
    %64 = vector.shape_cast %63 : vector<1x1x16x16xbf16> to vector<16x16xbf16>
    %cst_87 = arith.constant dense<0.000000e+00> : vector<8x16xf32>
    %65 = tpu.matmul %62, %64, %cst_87 {dimension_numbers = #tpu.dot_dimension_numbers<[1], [0], [0], [1], [0, 0, 1, 1], [], []>} : vector<8x16xbf16>, vector<16x16xbf16>, vector<8x16xf32> -> vector<8x16xf32>
    %66 = arith.addf %60, %65 : vector<8x16xf32>
    %c0_88 = arith.constant 0 : index
    %c0_89 = arith.constant 0 : index
    %c0_90 = arith.constant 0 : index
    %67 = vector.load %arg5[%c0_88, %c0_89, %c0_90] : memref<1x1x16xf32, #tpu.memory_space<vmem>>, vector<1x1x16xf32>
    %68 = vector.shape_cast %67 : vector<1x1x16xf32> to vector<1x16xf32>
    %69 = vector.broadcast %68 : vector<1x16xf32> to vector<8x16xf32>
    %70 = arith.addf %66, %69 : vector<8x16xf32>
    %cst_91 = arith.constant 0.000000e+00 : f32
    %71 = vector.broadcast %cst_91 : f32 to vector<8x16xf32>
    %72 = arith.cmpf ogt, %70, %71 : vector<8x16xf32>
    %cst_92 = arith.constant 2.000000e-01 : f32
    %73 = vector.broadcast %cst_92 : f32 to vector<8x16xf32>
    %74 = arith.mulf %73, %70 : vector<8x16xf32>
    %75 = arith.select %72, %70, %74 : vector<8x16xi1>, vector<8x16xf32>
    %c0_93 = arith.constant 0 : index
    %c0_94 = arith.constant 0 : index
    %c0_95 = arith.constant 0 : index
    %c0_96 = arith.constant 0 : index
    %76 = vector.load %arg6[%c0_93, %c0_94, %c0_95, %c0_96] : memref<1x1x8x16xf32, #tpu.memory_space<vmem>>, vector<1x1x8x16xf32>
    %77 = vector.shape_cast %76 : vector<1x1x8x16xf32> to vector<8x16xf32>
    %78 = vector.shape_cast %75 : vector<8x16xf32> to vector<1x1x8x16xf32>
    tpu.vector_store %arg6[%c0_93, %c0_94, %c0_95, %c0_96], %78 {strides = array<i32>} : memref<1x1x8x16xf32, #tpu.memory_space<vmem>>, vector<1x1x8x16xf32>,
    return
  }
  func.func @transform_0(%arg0: i32, %arg1: i32, %arg2: i32) -> (i32, i32, i32, i32) {
    %c0_i32 = arith.constant 0 : i32
    %c0_i32_0 = arith.constant 0 : i32
    return %arg0, %arg2, %c0_i32, %arg1 : i32, i32, i32, i32
  }
  func.func @transform_1(%arg0: i32, %arg1: i32, %arg2: i32) -> (i32, i32, i32, i32) {
    %c0_i32 = arith.constant 0 : i32
    %c0_i32_0 = arith.constant 0 : i32
    %c0_i32_1 = arith.constant 0 : i32
    %c0_i32_2 = arith.constant 0 : i32
    return %arg1, %c0_i32, %c0_i32_0, %c0_i32_1 : i32, i32, i32, i32
  }
  func.func @transform_2(%arg0: i32, %arg1: i32, %arg2: i32) -> (i32, i32, i32) {
    %c0_i32 = arith.constant 0 : i32
    %c0_i32_0 = arith.constant 0 : i32
    %c0_i32_1 = arith.constant 0 : i32
    return %arg1, %c0_i32, %c0_i32_0 : i32, i32, i32
  }
  func.func @transform_3(%arg0: i32, %arg1: i32, %arg2: i32) -> (i32, i32, i32, i32) {
    %c0_i32 = arith.constant 0 : i32
    %c0_i32_0 = arith.constant 0 : i32
    return %arg0, %arg2, %c0_i32, %arg1 : i32, i32, i32, i32
  }
}

module attributes {stable_mosaic.version = 11 : i64} {
  func.func @_conv_tile_kernel(%arg0: i32, %arg1: i32, %arg2: i32, %arg3: memref<1x1x18x32xbf16, #tpu.memory_space<vmem>>, %arg4: memref<1x11x32x16xbf16, #tpu.memory_space<vmem>>, %arg5: memref<1x1x16xf32, #tpu.memory_space<vmem>>, %arg6: memref<1x1x8x16xf32, #tpu.memory_space<vmem>>) attributes {dimension_semantics = [#tpu.dimension_semantics<parallel>, #tpu.dimension_semantics<parallel>, #tpu.dimension_semantics<arbitrary>], iteration_bounds = array<i64: 2, 1, 1>, scalar_prefetch = 0 : i64, scratch_operands = 0 : i64, tpu.core_type = #tpu.core_type<tc>, window_params = [{transform_indices = @transform_0, window_bounds = array<i64: 1, 1, 18, 32>}, {transform_indices = @transform_1, window_bounds = array<i64: 1, 11, 32, 16>}, {transform_indices = @transform_2, window_bounds = array<i64: 1, 1, 16>}, {transform_indices = @transform_3, window_bounds = array<i64: 1, 1, 8, 16>}]} {
    %cst = arith.constant 0.000000e+00 : f32
    %0 = vector.broadcast %cst : f32 to vector<8x16xf32>
    %c0 = arith.constant 0 : index
    %c0_0 = arith.constant 0 : index
    %c0_1 = arith.constant 0 : index
    %c0_2 = arith.constant 0 : index
    %1 = vector.load %arg3[%c0, %c0_0, %c0_1, %c0_2] : memref<1x1x18x32xbf16, #tpu.memory_space<vmem>>, vector<1x1x8x32xbf16>
    %2 = vector.shape_cast %1 : vector<1x1x8x32xbf16> to vector<8x32xbf16>
    %c0_3 = arith.constant 0 : index
    %c0_4 = arith.constant 0 : index
    %c0_5 = arith.constant 0 : index
    %c0_6 = arith.constant 0 : index
    %3 = vector.load %arg4[%c0_3, %c0_4, %c0_5, %c0_6] : memref<1x11x32x16xbf16, #tpu.memory_space<vmem>>, vector<1x1x32x16xbf16>
    %4 = vector.shape_cast %3 : vector<1x1x32x16xbf16> to vector<32x16xbf16>
    %cst_7 = arith.constant dense<0.000000e+00> : vector<8x16xf32>
    %5 = tpu.matmul %2, %4, %cst_7 {dimension_numbers = #tpu.dot_dimension_numbers<[1], [0], [0], [1], [0, 0, 1, 1], [], []>} : vector<8x32xbf16>, vector<32x16xbf16>, vector<8x16xf32> -> vector<8x16xf32>
    %6 = arith.addf %0, %5 : vector<8x16xf32>
    %c0_8 = arith.constant 0 : index
    %c0_9 = arith.constant 0 : index
    %c1 = arith.constant 1 : index
    %c0_10 = arith.constant 0 : index
    %7 = vector.load %arg3[%c0_8, %c0_9, %c1, %c0_10] : memref<1x1x18x32xbf16, #tpu.memory_space<vmem>>, vector<1x1x8x32xbf16>
    %8 = vector.shape_cast %7 : vector<1x1x8x32xbf16> to vector<8x32xbf16>
    %c0_11 = arith.constant 0 : index
    %c1_12 = arith.constant 1 : index
    %c0_13 = arith.constant 0 : index
    %c0_14 = arith.constant 0 : index
    %9 = vector.load %arg4[%c0_11, %c1_12, %c0_13, %c0_14] : memref<1x11x32x16xbf16, #tpu.memory_space<vmem>>, vector<1x1x32x16xbf16>
    %10 = vector.shape_cast %9 : vector<1x1x32x16xbf16> to vector<32x16xbf16>
    %cst_15 = arith.constant dense<0.000000e+00> : vector<8x16xf32>
    %11 = tpu.matmul %8, %10, %cst_15 {dimension_numbers = #tpu.dot_dimension_numbers<[1], [0], [0], [1], [0, 0, 1, 1], [], []>} : vector<8x32xbf16>, vector<32x16xbf16>, vector<8x16xf32> -> vector<8x16xf32>
    %12 = arith.addf %6, %11 : vector<8x16xf32>
    %c0_16 = arith.constant 0 : index
    %c0_17 = arith.constant 0 : index
    %c2 = arith.constant 2 : index
    %c0_18 = arith.constant 0 : index
    %13 = vector.load %arg3[%c0_16, %c0_17, %c2, %c0_18] : memref<1x1x18x32xbf16, #tpu.memory_space<vmem>>, vector<1x1x8x32xbf16>
    %14 = vector.shape_cast %13 : vector<1x1x8x32xbf16> to vector<8x32xbf16>
    %c0_19 = arith.constant 0 : index
    %c2_20 = arith.constant 2 : index
    %c0_21 = arith.constant 0 : index
    %c0_22 = arith.constant 0 : index
    %15 = vector.load %arg4[%c0_19, %c2_20, %c0_21, %c0_22] : memref<1x11x32x16xbf16, #tpu.memory_space<vmem>>, vector<1x1x32x16xbf16>
    %16 = vector.shape_cast %15 : vector<1x1x32x16xbf16> to vector<32x16xbf16>
    %cst_23 = arith.constant dense<0.000000e+00> : vector<8x16xf32>
    %17 = tpu.matmul %14, %16, %cst_23 {dimension_numbers = #tpu.dot_dimension_numbers<[1], [0], [0], [1], [0, 0, 1, 1], [], []>} : vector<8x32xbf16>, vector<32x16xbf16>, vector<8x16xf32> -> vector<8x16xf32>
    %18 = arith.addf %12, %17 : vector<8x16xf32>
    %c0_24 = arith.constant 0 : index
    %c0_25 = arith.constant 0 : index
    %c3 = arith.constant 3 : index
    %c0_26 = arith.constant 0 : index
    %19 = vector.load %arg3[%c0_24, %c0_25, %c3, %c0_26] : memref<1x1x18x32xbf16, #tpu.memory_space<vmem>>, vector<1x1x8x32xbf16>
    %20 = vector.shape_cast %19 : vector<1x1x8x32xbf16> to vector<8x32xbf16>
    %c0_27 = arith.constant 0 : index
    %c3_28 = arith.constant 3 : index
    %c0_29 = arith.constant 0 : index
    %c0_30 = arith.constant 0 : index
    %21 = vector.load %arg4[%c0_27, %c3_28, %c0_29, %c0_30] : memref<1x11x32x16xbf16, #tpu.memory_space<vmem>>, vector<1x1x32x16xbf16>
    %22 = vector.shape_cast %21 : vector<1x1x32x16xbf16> to vector<32x16xbf16>
    %cst_31 = arith.constant dense<0.000000e+00> : vector<8x16xf32>
    %23 = tpu.matmul %20, %22, %cst_31 {dimension_numbers = #tpu.dot_dimension_numbers<[1], [0], [0], [1], [0, 0, 1, 1], [], []>} : vector<8x32xbf16>, vector<32x16xbf16>, vector<8x16xf32> -> vector<8x16xf32>
    %24 = arith.addf %18, %23 : vector<8x16xf32>
    %c0_32 = arith.constant 0 : index
    %c0_33 = arith.constant 0 : index
    %c4 = arith.constant 4 : index
    %c0_34 = arith.constant 0 : index
    %25 = vector.load %arg3[%c0_32, %c0_33, %c4, %c0_34] : memref<1x1x18x32xbf16, #tpu.memory_space<vmem>>, vector<1x1x8x32xbf16>
    %26 = vector.shape_cast %25 : vector<1x1x8x32xbf16> to vector<8x32xbf16>
    %c0_35 = arith.constant 0 : index
    %c4_36 = arith.constant 4 : index
    %c0_37 = arith.constant 0 : index
    %c0_38 = arith.constant 0 : index
    %27 = vector.load %arg4[%c0_35, %c4_36, %c0_37, %c0_38] : memref<1x11x32x16xbf16, #tpu.memory_space<vmem>>, vector<1x1x32x16xbf16>
    %28 = vector.shape_cast %27 : vector<1x1x32x16xbf16> to vector<32x16xbf16>
    %cst_39 = arith.constant dense<0.000000e+00> : vector<8x16xf32>
    %29 = tpu.matmul %26, %28, %cst_39 {dimension_numbers = #tpu.dot_dimension_numbers<[1], [0], [0], [1], [0, 0, 1, 1], [], []>} : vector<8x32xbf16>, vector<32x16xbf16>, vector<8x16xf32> -> vector<8x16xf32>
    %30 = arith.addf %24, %29 : vector<8x16xf32>
    %c0_40 = arith.constant 0 : index
    %c0_41 = arith.constant 0 : index
    %c5 = arith.constant 5 : index
    %c0_42 = arith.constant 0 : index
    %31 = vector.load %arg3[%c0_40, %c0_41, %c5, %c0_42] : memref<1x1x18x32xbf16, #tpu.memory_space<vmem>>, vector<1x1x8x32xbf16>
    %32 = vector.shape_cast %31 : vector<1x1x8x32xbf16> to vector<8x32xbf16>
    %c0_43 = arith.constant 0 : index
    %c5_44 = arith.constant 5 : index
    %c0_45 = arith.constant 0 : index
    %c0_46 = arith.constant 0 : index
    %33 = vector.load %arg4[%c0_43, %c5_44, %c0_45, %c0_46] : memref<1x11x32x16xbf16, #tpu.memory_space<vmem>>, vector<1x1x32x16xbf16>
    %34 = vector.shape_cast %33 : vector<1x1x32x16xbf16> to vector<32x16xbf16>
    %cst_47 = arith.constant dense<0.000000e+00> : vector<8x16xf32>
    %35 = tpu.matmul %32, %34, %cst_47 {dimension_numbers = #tpu.dot_dimension_numbers<[1], [0], [0], [1], [0, 0, 1, 1], [], []>} : vector<8x32xbf16>, vector<32x16xbf16>, vector<8x16xf32> -> vector<8x16xf32>
    %36 = arith.addf %30, %35 : vector<8x16xf32>
    %c0_48 = arith.constant 0 : index
    %c0_49 = arith.constant 0 : index
    %c6 = arith.constant 6 : index
    %c0_50 = arith.constant 0 : index
    %37 = vector.load %arg3[%c0_48, %c0_49, %c6, %c0_50] : memref<1x1x18x32xbf16, #tpu.memory_space<vmem>>, vector<1x1x8x32xbf16>
    %38 = vector.shape_cast %37 : vector<1x1x8x32xbf16> to vector<8x32xbf16>
    %c0_51 = arith.constant 0 : index
    %c6_52 = arith.constant 6 : index
    %c0_53 = arith.constant 0 : index
    %c0_54 = arith.constant 0 : index
    %39 = vector.load %arg4[%c0_51, %c6_52, %c0_53, %c0_54] : memref<1x11x32x16xbf16, #tpu.memory_space<vmem>>, vector<1x1x32x16xbf16>
    %40 = vector.shape_cast %39 : vector<1x1x32x16xbf16> to vector<32x16xbf16>
    %cst_55 = arith.constant dense<0.000000e+00> : vector<8x16xf32>
    %41 = tpu.matmul %38, %40, %cst_55 {dimension_numbers = #tpu.dot_dimension_numbers<[1], [0], [0], [1], [0, 0, 1, 1], [], []>} : vector<8x32xbf16>, vector<32x16xbf16>, vector<8x16xf32> -> vector<8x16xf32>
    %42 = arith.addf %36, %41 : vector<8x16xf32>
    %c0_56 = arith.constant 0 : index
    %c0_57 = arith.constant 0 : index
    %c7 = arith.constant 7 : index
    %c0_58 = arith.constant 0 : index
    %43 = vector.load %arg3[%c0_56, %c0_57, %c7, %c0_58] : memref<1x1x18x32xbf16, #tpu.memory_space<vmem>>, vector<1x1x8x32xbf16>
    %44 = vector.shape_cast %43 : vector<1x1x8x32xbf16> to vector<8x32xbf16>
    %c0_59 = arith.constant 0 : index
    %c7_60 = arith.constant 7 : index
    %c0_61 = arith.constant 0 : index
    %c0_62 = arith.constant 0 : index
    %45 = vector.load %arg4[%c0_59, %c7_60, %c0_61, %c0_62] : memref<1x11x32x16xbf16, #tpu.memory_space<vmem>>, vector<1x1x32x16xbf16>
    %46 = vector.shape_cast %45 : vector<1x1x32x16xbf16> to vector<32x16xbf16>
    %cst_63 = arith.constant dense<0.000000e+00> : vector<8x16xf32>
    %47 = tpu.matmul %44, %46, %cst_63 {dimension_numbers = #tpu.dot_dimension_numbers<[1], [0], [0], [1], [0, 0, 1, 1], [], []>} : vector<8x32xbf16>, vector<32x16xbf16>, vector<8x16xf32> -> vector<8x16xf32>
    %48 = arith.addf %42, %47 : vector<8x16xf32>
    %c0_64 = arith.constant 0 : index
    %c0_65 = arith.constant 0 : index
    %c8 = arith.constant 8 : index
    %c0_66 = arith.constant 0 : index
    %49 = vector.load %arg3[%c0_64, %c0_65, %c8, %c0_66] : memref<1x1x18x32xbf16, #tpu.memory_space<vmem>>, vector<1x1x8x32xbf16>
    %50 = vector.shape_cast %49 : vector<1x1x8x32xbf16> to vector<8x32xbf16>
    %c0_67 = arith.constant 0 : index
    %c8_68 = arith.constant 8 : index
    %c0_69 = arith.constant 0 : index
    %c0_70 = arith.constant 0 : index
    %51 = vector.load %arg4[%c0_67, %c8_68, %c0_69, %c0_70] : memref<1x11x32x16xbf16, #tpu.memory_space<vmem>>, vector<1x1x32x16xbf16>
    %52 = vector.shape_cast %51 : vector<1x1x32x16xbf16> to vector<32x16xbf16>
    %cst_71 = arith.constant dense<0.000000e+00> : vector<8x16xf32>
    %53 = tpu.matmul %50, %52, %cst_71 {dimension_numbers = #tpu.dot_dimension_numbers<[1], [0], [0], [1], [0, 0, 1, 1], [], []>} : vector<8x32xbf16>, vector<32x16xbf16>, vector<8x16xf32> -> vector<8x16xf32>
    %54 = arith.addf %48, %53 : vector<8x16xf32>
    %c0_72 = arith.constant 0 : index
    %c0_73 = arith.constant 0 : index
    %c9 = arith.constant 9 : index
    %c0_74 = arith.constant 0 : index
    %55 = vector.load %arg3[%c0_72, %c0_73, %c9, %c0_74] : memref<1x1x18x32xbf16, #tpu.memory_space<vmem>>, vector<1x1x8x32xbf16>
    %56 = vector.shape_cast %55 : vector<1x1x8x32xbf16> to vector<8x32xbf16>
    %c0_75 = arith.constant 0 : index
    %c9_76 = arith.constant 9 : index
    %c0_77 = arith.constant 0 : index
    %c0_78 = arith.constant 0 : index
    %57 = vector.load %arg4[%c0_75, %c9_76, %c0_77, %c0_78] : memref<1x11x32x16xbf16, #tpu.memory_space<vmem>>, vector<1x1x32x16xbf16>
    %58 = vector.shape_cast %57 : vector<1x1x32x16xbf16> to vector<32x16xbf16>
    %cst_79 = arith.constant dense<0.000000e+00> : vector<8x16xf32>
    %59 = tpu.matmul %56, %58, %cst_79 {dimension_numbers = #tpu.dot_dimension_numbers<[1], [0], [0], [1], [0, 0, 1, 1], [], []>} : vector<8x32xbf16>, vector<32x16xbf16>, vector<8x16xf32> -> vector<8x16xf32>
    %60 = arith.addf %54, %59 : vector<8x16xf32>
    %c0_80 = arith.constant 0 : index
    %c0_81 = arith.constant 0 : index
    %c10 = arith.constant 10 : index
    %c0_82 = arith.constant 0 : index
    %61 = vector.load %arg3[%c0_80, %c0_81, %c10, %c0_82] : memref<1x1x18x32xbf16, #tpu.memory_space<vmem>>, vector<1x1x8x32xbf16>
    %62 = vector.shape_cast %61 : vector<1x1x8x32xbf16> to vector<8x32xbf16>
    %c0_83 = arith.constant 0 : index
    %c10_84 = arith.constant 10 : index
    %c0_85 = arith.constant 0 : index
    %c0_86 = arith.constant 0 : index
    %63 = vector.load %arg4[%c0_83, %c10_84, %c0_85, %c0_86] : memref<1x11x32x16xbf16, #tpu.memory_space<vmem>>, vector<1x1x32x16xbf16>
    %64 = vector.shape_cast %63 : vector<1x1x32x16xbf16> to vector<32x16xbf16>
    %cst_87 = arith.constant dense<0.000000e+00> : vector<8x16xf32>
    %65 = tpu.matmul %62, %64, %cst_87 {dimension_numbers = #tpu.dot_dimension_numbers<[1], [0], [0], [1], [0, 0, 1, 1], [], []>} : vector<8x32xbf16>, vector<32x16xbf16>, vector<8x16xf32> -> vector<8x16xf32>
    %66 = arith.addf %60, %65 : vector<8x16xf32>
    %c0_88 = arith.constant 0 : index
    %c0_89 = arith.constant 0 : index
    %c0_90 = arith.constant 0 : index
    %67 = vector.load %arg5[%c0_88, %c0_89, %c0_90] : memref<1x1x16xf32, #tpu.memory_space<vmem>>, vector<1x1x16xf32>
    %68 = vector.shape_cast %67 : vector<1x1x16xf32> to vector<1x16xf32>
    %69 = vector.broadcast %68 : vector<1x16xf32> to vector<8x16xf32>
    %70 = arith.addf %66, %69 : vector<8x16xf32>
    %cst_91 = arith.constant 0.000000e+00 : f32
    %71 = vector.broadcast %cst_91 : f32 to vector<8x16xf32>
    %72 = arith.cmpf ogt, %70, %71 : vector<8x16xf32>
    %cst_92 = arith.constant 2.000000e-01 : f32
    %73 = vector.broadcast %cst_92 : f32 to vector<8x16xf32>
    %74 = arith.mulf %73, %70 : vector<8x16xf32>
    %75 = arith.select %72, %70, %74 : vector<8x16xi1>, vector<8x16xf32>
    %c0_93 = arith.constant 0 : index
    %c0_94 = arith.constant 0 : index
    %c0_95 = arith.constant 0 : index
    %c0_96 = arith.constant 0 : index
    %76 = vector.load %arg6[%c0_93, %c0_94, %c0_95, %c0_96] : memref<1x1x8x16xf32, #tpu.memory_space<vmem>>, vector<1x1x8x16xf32>
    %77 = vector.shape_cast %76 : vector<1x1x8x16xf32> to vector<8x16xf32>
    %78 = vector.shape_cast %75 : vector<8x16xf32> to vector<1x1x8x16xf32>
    tpu.vector_store %arg6[%c0_93, %c0_94, %c0_95, %c0_96], %78 {strides = array<i32>} : memref<1x1x8x16xf32, #tpu.memory_space<vmem>>, vector<1x1x8x16xf32>,
    return
  }
  func.func @transform_0(%arg0: i32, %arg1: i32, %arg2: i32) -> (i32, i32, i32, i32) {
    %c0_i32 = arith.constant 0 : i32
    %c0_i32_0 = arith.constant 0 : i32
    return %arg0, %arg2, %c0_i32, %arg1 : i32, i32, i32, i32
  }
  func.func @transform_1(%arg0: i32, %arg1: i32, %arg2: i32) -> (i32, i32, i32, i32) {
    %c0_i32 = arith.constant 0 : i32
    %c0_i32_0 = arith.constant 0 : i32
    %c0_i32_1 = arith.constant 0 : i32
    %c0_i32_2 = arith.constant 0 : i32
    return %arg1, %c0_i32, %c0_i32_0, %c0_i32_1 : i32, i32, i32, i32
  }
  func.func @transform_2(%arg0: i32, %arg1: i32, %arg2: i32) -> (i32, i32, i32) {
    %c0_i32 = arith.constant 0 : i32
    %c0_i32_0 = arith.constant 0 : i32
    %c0_i32_1 = arith.constant 0 : i32
    return %arg1, %c0_i32, %c0_i32_0 : i32, i32, i32
  }
  func.func @transform_3(%arg0: i32, %arg1: i32, %arg2: i32) -> (i32, i32, i32, i32) {
    %c0_i32 = arith.constant 0 : i32
    %c0_i32_0 = arith.constant 0 : i32
    return %arg0, %arg2, %c0_i32, %arg1 : i32, i32, i32, i32
  }
}

module attributes {stable_mosaic.version = 11 : i64} {
  func.func @_conv_tile_kernel(%arg0: i32, %arg1: i32, %arg2: i32, %arg3: memref<1x1x12x16xbf16, #tpu.memory_space<vmem>>, %arg4: memref<1x5x16x16xbf16, #tpu.memory_space<vmem>>, %arg5: memref<1x1x16xf32, #tpu.memory_space<vmem>>, %arg6: memref<1x1x8x16xf32, #tpu.memory_space<vmem>>) attributes {dimension_semantics = [#tpu.dimension_semantics<parallel>, #tpu.dimension_semantics<parallel>, #tpu.dimension_semantics<arbitrary>], iteration_bounds = array<i64: 2, 1, 1>, scalar_prefetch = 0 : i64, scratch_operands = 0 : i64, tpu.core_type = #tpu.core_type<tc>, window_params = [{transform_indices = @transform_0, window_bounds = array<i64: 1, 1, 12, 16>}, {transform_indices = @transform_1, window_bounds = array<i64: 1, 5, 16, 16>}, {transform_indices = @transform_2, window_bounds = array<i64: 1, 1, 16>}, {transform_indices = @transform_3, window_bounds = array<i64: 1, 1, 8, 16>}]} {
    %cst = arith.constant 0.000000e+00 : f32
    %0 = vector.broadcast %cst : f32 to vector<8x16xf32>
    %c0 = arith.constant 0 : index
    %c0_0 = arith.constant 0 : index
    %c0_1 = arith.constant 0 : index
    %c0_2 = arith.constant 0 : index
    %1 = vector.load %arg3[%c0, %c0_0, %c0_1, %c0_2] : memref<1x1x12x16xbf16, #tpu.memory_space<vmem>>, vector<1x1x8x16xbf16>
    %2 = vector.shape_cast %1 : vector<1x1x8x16xbf16> to vector<8x16xbf16>
    %c0_3 = arith.constant 0 : index
    %c0_4 = arith.constant 0 : index
    %c0_5 = arith.constant 0 : index
    %c0_6 = arith.constant 0 : index
    %3 = vector.load %arg4[%c0_3, %c0_4, %c0_5, %c0_6] : memref<1x5x16x16xbf16, #tpu.memory_space<vmem>>, vector<1x1x16x16xbf16>
    %4 = vector.shape_cast %3 : vector<1x1x16x16xbf16> to vector<16x16xbf16>
    %cst_7 = arith.constant dense<0.000000e+00> : vector<8x16xf32>
    %5 = tpu.matmul %2, %4, %cst_7 {dimension_numbers = #tpu.dot_dimension_numbers<[1], [0], [0], [1], [0, 0, 1, 1], [], []>} : vector<8x16xbf16>, vector<16x16xbf16>, vector<8x16xf32> -> vector<8x16xf32>
    %6 = arith.addf %0, %5 : vector<8x16xf32>
    %c0_8 = arith.constant 0 : index
    %c0_9 = arith.constant 0 : index
    %c1 = arith.constant 1 : index
    %c0_10 = arith.constant 0 : index
    %7 = vector.load %arg3[%c0_8, %c0_9, %c1, %c0_10] : memref<1x1x12x16xbf16, #tpu.memory_space<vmem>>, vector<1x1x8x16xbf16>
    %8 = vector.shape_cast %7 : vector<1x1x8x16xbf16> to vector<8x16xbf16>
    %c0_11 = arith.constant 0 : index
    %c1_12 = arith.constant 1 : index
    %c0_13 = arith.constant 0 : index
    %c0_14 = arith.constant 0 : index
    %9 = vector.load %arg4[%c0_11, %c1_12, %c0_13, %c0_14] : memref<1x5x16x16xbf16, #tpu.memory_space<vmem>>, vector<1x1x16x16xbf16>
    %10 = vector.shape_cast %9 : vector<1x1x16x16xbf16> to vector<16x16xbf16>
    %cst_15 = arith.constant dense<0.000000e+00> : vector<8x16xf32>
    %11 = tpu.matmul %8, %10, %cst_15 {dimension_numbers = #tpu.dot_dimension_numbers<[1], [0], [0], [1], [0, 0, 1, 1], [], []>} : vector<8x16xbf16>, vector<16x16xbf16>, vector<8x16xf32> -> vector<8x16xf32>
    %12 = arith.addf %6, %11 : vector<8x16xf32>
    %c0_16 = arith.constant 0 : index
    %c0_17 = arith.constant 0 : index
    %c2 = arith.constant 2 : index
    %c0_18 = arith.constant 0 : index
    %13 = vector.load %arg3[%c0_16, %c0_17, %c2, %c0_18] : memref<1x1x12x16xbf16, #tpu.memory_space<vmem>>, vector<1x1x8x16xbf16>
    %14 = vector.shape_cast %13 : vector<1x1x8x16xbf16> to vector<8x16xbf16>
    %c0_19 = arith.constant 0 : index
    %c2_20 = arith.constant 2 : index
    %c0_21 = arith.constant 0 : index
    %c0_22 = arith.constant 0 : index
    %15 = vector.load %arg4[%c0_19, %c2_20, %c0_21, %c0_22] : memref<1x5x16x16xbf16, #tpu.memory_space<vmem>>, vector<1x1x16x16xbf16>
    %16 = vector.shape_cast %15 : vector<1x1x16x16xbf16> to vector<16x16xbf16>
    %cst_23 = arith.constant dense<0.000000e+00> : vector<8x16xf32>
    %17 = tpu.matmul %14, %16, %cst_23 {dimension_numbers = #tpu.dot_dimension_numbers<[1], [0], [0], [1], [0, 0, 1, 1], [], []>} : vector<8x16xbf16>, vector<16x16xbf16>, vector<8x16xf32> -> vector<8x16xf32>
    %18 = arith.addf %12, %17 : vector<8x16xf32>
    %c0_24 = arith.constant 0 : index
    %c0_25 = arith.constant 0 : index
    %c3 = arith.constant 3 : index
    %c0_26 = arith.constant 0 : index
    %19 = vector.load %arg3[%c0_24, %c0_25, %c3, %c0_26] : memref<1x1x12x16xbf16, #tpu.memory_space<vmem>>, vector<1x1x8x16xbf16>
    %20 = vector.shape_cast %19 : vector<1x1x8x16xbf16> to vector<8x16xbf16>
    %c0_27 = arith.constant 0 : index
    %c3_28 = arith.constant 3 : index
    %c0_29 = arith.constant 0 : index
    %c0_30 = arith.constant 0 : index
    %21 = vector.load %arg4[%c0_27, %c3_28, %c0_29, %c0_30] : memref<1x5x16x16xbf16, #tpu.memory_space<vmem>>, vector<1x1x16x16xbf16>
    %22 = vector.shape_cast %21 : vector<1x1x16x16xbf16> to vector<16x16xbf16>
    %cst_31 = arith.constant dense<0.000000e+00> : vector<8x16xf32>
    %23 = tpu.matmul %20, %22, %cst_31 {dimension_numbers = #tpu.dot_dimension_numbers<[1], [0], [0], [1], [0, 0, 1, 1], [], []>} : vector<8x16xbf16>, vector<16x16xbf16>, vector<8x16xf32> -> vector<8x16xf32>
    %24 = arith.addf %18, %23 : vector<8x16xf32>
    %c0_32 = arith.constant 0 : index
    %c0_33 = arith.constant 0 : index
    %c4 = arith.constant 4 : index
    %c0_34 = arith.constant 0 : index
    %25 = vector.load %arg3[%c0_32, %c0_33, %c4, %c0_34] : memref<1x1x12x16xbf16, #tpu.memory_space<vmem>>, vector<1x1x8x16xbf16>
    %26 = vector.shape_cast %25 : vector<1x1x8x16xbf16> to vector<8x16xbf16>
    %c0_35 = arith.constant 0 : index
    %c4_36 = arith.constant 4 : index
    %c0_37 = arith.constant 0 : index
    %c0_38 = arith.constant 0 : index
    %27 = vector.load %arg4[%c0_35, %c4_36, %c0_37, %c0_38] : memref<1x5x16x16xbf16, #tpu.memory_space<vmem>>, vector<1x1x16x16xbf16>
    %28 = vector.shape_cast %27 : vector<1x1x16x16xbf16> to vector<16x16xbf16>
    %cst_39 = arith.constant dense<0.000000e+00> : vector<8x16xf32>
    %29 = tpu.matmul %26, %28, %cst_39 {dimension_numbers = #tpu.dot_dimension_numbers<[1], [0], [0], [1], [0, 0, 1, 1], [], []>} : vector<8x16xbf16>, vector<16x16xbf16>, vector<8x16xf32> -> vector<8x16xf32>
    %30 = arith.addf %24, %29 : vector<8x16xf32>
    %c0_40 = arith.constant 0 : index
    %c0_41 = arith.constant 0 : index
    %c0_42 = arith.constant 0 : index
    %31 = vector.load %arg5[%c0_40, %c0_41, %c0_42] : memref<1x1x16xf32, #tpu.memory_space<vmem>>, vector<1x1x16xf32>
    %32 = vector.shape_cast %31 : vector<1x1x16xf32> to vector<1x16xf32>
    %33 = vector.broadcast %32 : vector<1x16xf32> to vector<8x16xf32>
    %34 = arith.addf %30, %33 : vector<8x16xf32>
    %cst_43 = arith.constant 0.000000e+00 : f32
    %35 = vector.broadcast %cst_43 : f32 to vector<8x16xf32>
    %36 = arith.cmpf ogt, %34, %35 : vector<8x16xf32>
    %cst_44 = arith.constant 2.000000e-01 : f32
    %37 = vector.broadcast %cst_44 : f32 to vector<8x16xf32>
    %38 = arith.mulf %37, %34 : vector<8x16xf32>
    %39 = arith.select %36, %34, %38 : vector<8x16xi1>, vector<8x16xf32>
    %c0_45 = arith.constant 0 : index
    %c0_46 = arith.constant 0 : index
    %c0_47 = arith.constant 0 : index
    %c0_48 = arith.constant 0 : index
    %40 = vector.load %arg6[%c0_45, %c0_46, %c0_47, %c0_48] : memref<1x1x8x16xf32, #tpu.memory_space<vmem>>, vector<1x1x8x16xf32>
    %41 = vector.shape_cast %40 : vector<1x1x8x16xf32> to vector<8x16xf32>
    %42 = vector.shape_cast %39 : vector<8x16xf32> to vector<1x1x8x16xf32>
    tpu.vector_store %arg6[%c0_45, %c0_46, %c0_47, %c0_48], %42 {strides = array<i32>} : memref<1x1x8x16xf32, #tpu.memory_space<vmem>>, vector<1x1x8x16xf32>,
    return
  }
  func.func @transform_0(%arg0: i32, %arg1: i32, %arg2: i32) -> (i32, i32, i32, i32) {
    %c0_i32 = arith.constant 0 : i32
    %c0_i32_0 = arith.constant 0 : i32
    return %arg0, %arg2, %c0_i32, %arg1 : i32, i32, i32, i32
  }
  func.func @transform_1(%arg0: i32, %arg1: i32, %arg2: i32) -> (i32, i32, i32, i32) {
    %c0_i32 = arith.constant 0 : i32
    %c0_i32_0 = arith.constant 0 : i32
    %c0_i32_1 = arith.constant 0 : i32
    %c0_i32_2 = arith.constant 0 : i32
    return %arg1, %c0_i32, %c0_i32_0, %c0_i32_1 : i32, i32, i32, i32
  }
  func.func @transform_2(%arg0: i32, %arg1: i32, %arg2: i32) -> (i32, i32, i32) {
    %c0_i32 = arith.constant 0 : i32
    %c0_i32_0 = arith.constant 0 : i32
    %c0_i32_1 = arith.constant 0 : i32
    return %arg1, %c0_i32, %c0_i32_0 : i32, i32, i32
  }
  func.func @transform_3(%arg0: i32, %arg1: i32, %arg2: i32) -> (i32, i32, i32, i32) {
    %c0_i32 = arith.constant 0 : i32
    %c0_i32_0 = arith.constant 0 : i32
    return %arg0, %arg2, %c0_i32, %arg1 : i32, i32, i32, i32
  }
}

module attributes {stable_mosaic.version = 11 : i64} {
  func.func @_conv_tile_kernel(%arg0: i32, %arg1: i32, %arg2: i32, %arg3: memref<1x1x8x48xbf16, #tpu.memory_space<vmem>>, %arg4: memref<1x1x48x1xbf16, #tpu.memory_space<vmem>>, %arg5: memref<1x1x1xf32, #tpu.memory_space<vmem>>, %arg6: memref<1x1x8x1xf32, #tpu.memory_space<vmem>>) attributes {dimension_semantics = [#tpu.dimension_semantics<parallel>, #tpu.dimension_semantics<parallel>, #tpu.dimension_semantics<arbitrary>], iteration_bounds = array<i64: 2, 1, 1>, scalar_prefetch = 0 : i64, scratch_operands = 0 : i64, tpu.core_type = #tpu.core_type<tc>, window_params = [{transform_indices = @transform_0, window_bounds = array<i64: 1, 1, 8, 48>}, {transform_indices = @transform_1, window_bounds = array<i64: 1, 1, 48, 1>}, {transform_indices = @transform_2, window_bounds = array<i64: 1, 1, 1>}, {transform_indices = @transform_3, window_bounds = array<i64: 1, 1, 8, 1>}]} {
    %cst = arith.constant 0.000000e+00 : f32
    %0 = vector.broadcast %cst : f32 to vector<8x1xf32>
    %c0 = arith.constant 0 : index
    %c0_0 = arith.constant 0 : index
    %c0_1 = arith.constant 0 : index
    %c0_2 = arith.constant 0 : index
    %1 = vector.load %arg3[%c0, %c0_0, %c0_1, %c0_2] : memref<1x1x8x48xbf16, #tpu.memory_space<vmem>>, vector<1x1x8x48xbf16>
    %2 = vector.shape_cast %1 : vector<1x1x8x48xbf16> to vector<8x48xbf16>
    %c0_3 = arith.constant 0 : index
    %c0_4 = arith.constant 0 : index
    %c0_5 = arith.constant 0 : index
    %c0_6 = arith.constant 0 : index
    %3 = vector.load %arg4[%c0_3, %c0_4, %c0_5, %c0_6] : memref<1x1x48x1xbf16, #tpu.memory_space<vmem>>, vector<1x1x48x1xbf16>
    %4 = vector.shape_cast %3 : vector<1x1x48x1xbf16> to vector<48x1xbf16>
    %cst_7 = arith.constant dense<0.000000e+00> : vector<8x1xf32>
    %5 = tpu.matmul %2, %4, %cst_7 {dimension_numbers = #tpu.dot_dimension_numbers<[1], [0], [0], [1], [0, 0, 1, 1], [], []>} : vector<8x48xbf16>, vector<48x1xbf16>, vector<8x1xf32> -> vector<8x1xf32>
    %6 = arith.addf %0, %5 : vector<8x1xf32>
    %c0_8 = arith.constant 0 : index
    %c0_9 = arith.constant 0 : index
    %c0_10 = arith.constant 0 : index
    %7 = vector.load %arg5[%c0_8, %c0_9, %c0_10] : memref<1x1x1xf32, #tpu.memory_space<vmem>>, vector<1x1x1xf32>
    %8 = vector.shape_cast %7 : vector<1x1x1xf32> to vector<1x1xf32>
    %9 = vector.broadcast %8 : vector<1x1xf32> to vector<8x1xf32>
    %10 = arith.addf %6, %9 : vector<8x1xf32>
    %c0_11 = arith.constant 0 : index
    %c0_12 = arith.constant 0 : index
    %c0_13 = arith.constant 0 : index
    %c0_14 = arith.constant 0 : index
    %11 = vector.load %arg6[%c0_11, %c0_12, %c0_13, %c0_14] : memref<1x1x8x1xf32, #tpu.memory_space<vmem>>, vector<1x1x8x1xf32>
    %12 = vector.shape_cast %11 : vector<1x1x8x1xf32> to vector<8x1xf32>
    %13 = vector.shape_cast %10 : vector<8x1xf32> to vector<1x1x8x1xf32>
    tpu.vector_store %arg6[%c0_11, %c0_12, %c0_13, %c0_14], %13 {strides = array<i32>} : memref<1x1x8x1xf32, #tpu.memory_space<vmem>>, vector<1x1x8x1xf32>,
    return
  }
  func.func @transform_0(%arg0: i32, %arg1: i32, %arg2: i32) -> (i32, i32, i32, i32) {
    %c0_i32 = arith.constant 0 : i32
    %c0_i32_0 = arith.constant 0 : i32
    return %arg0, %arg2, %c0_i32, %arg1 : i32, i32, i32, i32
  }
  func.func @transform_1(%arg0: i32, %arg1: i32, %arg2: i32) -> (i32, i32, i32, i32) {
    %c0_i32 = arith.constant 0 : i32
    %c0_i32_0 = arith.constant 0 : i32
    %c0_i32_1 = arith.constant 0 : i32
    %c0_i32_2 = arith.constant 0 : i32
    return %arg1, %c0_i32, %c0_i32_0, %c0_i32_1 : i32, i32, i32, i32
  }
  func.func @transform_2(%arg0: i32, %arg1: i32, %arg2: i32) -> (i32, i32, i32) {
    %c0_i32 = arith.constant 0 : i32
    %c0_i32_0 = arith.constant 0 : i32
    %c0_i32_1 = arith.constant 0 : i32
    return %arg1, %c0_i32, %c0_i32_0 : i32, i32, i32
  }
  func.func @transform_3(%arg0: i32, %arg1: i32, %arg2: i32) -> (i32, i32, i32, i32) {
    %c0_i32 = arith.constant 0 : i32
    %c0_i32_0 = arith.constant 0 : i32
    return %arg0, %arg2, %c0_i32, %arg1 : i32, i32, i32, i32
  }
}

</mosaic_0001>

<llo_original>
// kernel: nlayer_discriminator_forward.5
$region0: #{nlayer_discriminator_forward.5}
  #allocation0 [shape = 'u32[]', space=smem, size = 0x4, offset = 0x4, fixed_abs, tag = 'smem constant byte address 0x4 - core index']
  #allocation1 [shape = 'u32[72,128]{1,0:T(1,128)}', space=vmem, size = 0x9000, scoped, tag = 'internal scratch']
  %s0 = inlined_call_operand.vmem [shape: bf16[2,4,8,60], index: 0, kind: input, shape index: {}]
  %s1 = inlined_call_operand.vmem [shape: bf16[1,1,60,8], index: 1, kind: input, shape index: {}]
  %s2 = inlined_call_operand.vmem [shape: f32[1,1,8], index: 2, kind: input, shape index: {}]
  %s3 = inlined_call_operand.vmem [shape: f32[2,4,8,8], index: 3, kind: output, shape index: {}]
  %s4 = sld [smem:[#allocation0]]
  $region45: #{nlayer_discriminator_forward.5} parent=0
    _
  %s6 = ssub.s32 1, %s4
  %s7 = scalar_select 0, %s6, %s4
  loop: start=0, step=1, limit=10
  $region2: #{nlayer_discriminator_forward.5} parent=0 // loop_pre_header
    _
  $region3: #{nlayer_discriminator_forward.5} parent=0 // loop_header
    %s9 = sphi 0, %s13
    %p10 = scmp.ge.s32.totalorder %s9, 10
    %s16 = sphi 0, %s35
    %s17 = sphi 0, %s31
    %s18 = sphi 0, %s27
    %s19 = sphi 0, %s16
    %s20 = sphi 0, %s17
    %s21 = sphi 0, %s18
    %s22 = sphi 0, %s19
    %s23 = sphi 0, %s20
    %s24 = sphi 0, %s21
    %s42 = sphi 0, %s44
    %s45 = sphi 0, %s42
    %s46 = sphi 0, %s45
    %s62 = sphi 0, %s46
    %s68 = sphi 0, %s70
    %s71 = sphi 0, %s68
    %s72 = sphi 0, %s71
    %s88 = sphi 0, %s72
    %s94 = sphi 0, %s96
    %s97 = sphi 0, %s94
    %s98 = sphi 0, %s97
    %s114 = sphi 0, %s98
    %s124 = sphi 0, %s126
    %s127 = sphi 0, %s124
    %s128 = sphi 0, %s127
    %s144 = sphi 0, %s128
  $region4: #{nlayer_discriminator_forward.5} parent=0 // loop_header_branch
    %12 = sbr.rel (%p10) target = $region8
  $region5: #{nlayer_discriminator_forward.5} parent=0 // loop_body
    %s14 = ssub.s32 %s9, 1
    %s15 = ssub.s32 %s9, 2
    %s25 = sadd.s32 1, %s18
    %p26 = scmp.ge.s32.totalorder %s25, 4
    %s27 = scalar_select %p26, 0, %s25
    %s28 = sadd.s32 1, %s17
    %s29 = scalar_select %p26, %s28, %s17
    %p30 = scmp.ge.s32.totalorder %s29, 1
    %s31 = scalar_select %p30, 0, %s29
    %s32 = sadd.s32 1, %s16
    %s33 = scalar_select %p30, %s32, %s16
    %p34 = scmp.ge.s32.totalorder %s33, 2
    %s35 = scalar_select %p34, 0, %s33
    %s36 = ssub.s32 %s16, %s35
    %s37 = ssub.s32 %s18, %s27
    %s38 = sor.u32 %s36, %s37
    %s39 = ssub.s32 %s17, %s31
    %s40 = sor.u32 %s38, %s39
    %p41 = scmp.eq.s32.totalorder %s40, 0
    %s43 = sadd.s32 %s42, 1
    %s44 = scalar_select %p41, %s42, %s43
    %p47 = pneg %p41
    %p48 = scmp.eq.s32.totalorder %s9, 7
    %p49 = por %p47, %p48
    %p50 = scmp.ne.s32.totalorder %s42, %s45
    %p51 = scmp.eq.s32.totalorder %s9, 0
    %p52 = por %p50, %p51
    %p53 = scmp.ne.s32.totalorder %s42, %s45
    %p54 = scmp.eq.s32.totalorder %s14, 7
    %p55 = por %p53, %p54
    %p56 = scmp.ne.s32.totalorder %s45, %s46
    %p57 = scmp.eq.s32.totalorder %s14, 0
    %p58 = por %p56, %p57
    %p59 = scmp.ne.s32.totalorder %s45, %s46
    %p60 = scmp.eq.s32.totalorder %s15, 7
    %p61 = por %p59, %p60
    %p63 = scmp.ne.s32.totalorder %s46, %s62
    %p64 = scmp.eq.s32.totalorder %s15, 0
    %p65 = por %p63, %p64
    %s66 = ssub.s32 %s17, %s31
    %p67 = scmp.eq.s32.totalorder %s66, 0
    %s69 = sadd.s32 %s68, 1
    %s70 = scalar_select %p67, %s68, %s69
    %p73 = pneg %p67
    %p74 = scmp.eq.s32.totalorder %s9, 7
    %p75 = por %p73, %p74
    %p76 = scmp.ne.s32.totalorder %s68, %s71
    %p77 = scmp.eq.s32.totalorder %s9, 0
    %p78 = por %p76, %p77
    %p79 = scmp.ne.s32.totalorder %s68, %s71
    %p80 = scmp.eq.s32.totalorder %s14, 7
    %p81 = por %p79, %p80
    %p82 = scmp.ne.s32.totalorder %s71, %s72
    %p83 = scmp.eq.s32.totalorder %s14, 0
    %p84 = por %p82, %p83
    %p85 = scmp.ne.s32.totalorder %s71, %s72
    %p86 = scmp.eq.s32.totalorder %s15, 7
    %p87 = por %p85, %p86
    %p89 = scmp.ne.s32.totalorder %s72, %s88
    %p90 = scmp.eq.s32.totalorder %s15, 0
    %p91 = por %p89, %p90
    %s92 = ssub.s32 %s17, %s31
    %p93 = scmp.eq.s32.totalorder %s92, 0
    %s95 = sadd.s32 %s94, 1
    %s96 = scalar_select %p93, %s94, %s95
    %p99 = pneg %p93
    %p100 = scmp.eq.s32.totalorder %s9, 7
    %p101 = por %p99, %p100
    %p102 = scmp.ne.s32.totalorder %s94, %s97
    %p103 = scmp.eq.s32.totalorder %s9, 0
    %p104 = por %p102, %p103
    %p105 = scmp.ne.s32.totalorder %s94, %s97
    %p106 = scmp.eq.s32.totalorder %s14, 7
    %p107 = por %p105, %p106
    %p108 = scmp.ne.s32.totalorder %s97, %s98
    %p109 = scmp.eq.s32.totalorder %s14, 0
    %p110 = por %p108, %p109
    %p111 = scmp.ne.s32.totalorder %s97, %s98
    %p112 = scmp.eq.s32.totalorder %s15, 7
    %p113 = por %p111, %p112
    %p115 = scmp.ne.s32.totalorder %s98, %s114
    %p116 = scmp.eq.s32.totalorder %s15, 0
    %p117 = por %p115, %p116
    %s118 = ssub.s32 %s16, %s35
    %s119 = ssub.s32 %s18, %s27
    %s120 = sor.u32 %s118, %s119
    %s121 = ssub.s32 %s17, %s31
    %s122 = sor.u32 %s120, %s121
    %p123 = scmp.eq.s32.totalorder %s122, 0
    %s125 = sadd.s32 %s124, 1
    %s126 = scalar_select %p123, %s124, %s125
    %p129 = pneg %p123
    %p130 = scmp.eq.s32.totalorder %s9, 7
    %p131 = por %p129, %p130
    %p132 = scmp.ne.s32.totalorder %s124, %s127
    %p133 = scmp.eq.s32.totalorder %s9, 0
    %p134 = por %p132, %p133
    %p135 = scmp.ne.s32.totalorder %s124, %s127
    %p136 = scmp.eq.s32.totalorder %s14, 7
    %p137 = por %p135, %p136
    %p138 = scmp.ne.s32.totalorder %s127, %s128
    %p139 = scmp.eq.s32.totalorder %s14, 0
    %p140 = por %p138, %p139
    %p141 = scmp.ne.s32.totalorder %s127, %s128
    %p142 = scmp.eq.s32.totalorder %s15, 7
    %p143 = por %p141, %p142
    %p145 = scmp.ne.s32.totalorder %s128, %s144
    %p146 = scmp.eq.s32.totalorder %s15, 0
    %p147 = por %p145, %p146
    %p148 = scmp.le.s32.totalorder 1, %s9
    %p149 = scmp.lt.s32.totalorder %s9, 9
    %p150 = pnand %p148, %p149
    %p151 = pneg %p150
    // Predicated region
    $region9: #{nlayer_discriminator_forward.5} parent=5 // pred_check
      _
    $region10: #{nlayer_discriminator_forward.5} parent=5 // pred_check_branch
      %153 = sbr.rel (%p150) target = $region12
    $region11: #{nlayer_discriminator_forward.5} parent=5 // pred_region
      %s154 = ssub.s32 %s9, 1
      // Predicated region
      $region13: #{nlayer_discriminator_forward.5} parent=11 // pred_check
        %p155 = pneg %p84
      $region14: #{nlayer_discriminator_forward.5} parent=11 // pred_check_branch
        %157 = sbr.rel (%p155) target = $region16
      $region15: #{nlayer_discriminator_forward.5} parent=11 // pred_region
        %p158 = scmp.lt.s32.totalorder %s20, 0
        %s159 = scalar_select %p158, %s20, 0
        %s160 = smul.addr %s159, 8
        %s161 = smul.addr %s160, 4
        %s162 = scalar_lea.vmem %s1, %s161
      $region16: #{nlayer_discriminator_forward.5} parent=11 // pred_fallthru
        _
      // Predicated region
      $region17: #{nlayer_discriminator_forward.5} parent=11 // pred_check
        %p163 = pneg %p110
      $region18: #{nlayer_discriminator_forward.5} parent=11 // pred_check_branch
        %165 = sbr.rel (%p163) target = $region20
      $region19: #{nlayer_discriminator_forward.5} parent=11 // pred_region
        %p166 = scmp.lt.s32.totalorder %s20, 0
        %s167 = scalar_select %p166, %s20, 0
        %s168 = scalar_lea.vmem %s2, %s167
      $region20: #{nlayer_discriminator_forward.5} parent=11 // pred_fallthru
        _
    $region12: #{nlayer_discriminator_forward.5} parent=5 // pred_fallthru
      _
    %p169 = scmp.lt.s32.totalorder %s9, 8
    // Predicated region
    $region21: #{nlayer_discriminator_forward.5} parent=5 // pred_check
      %p170 = pneg %p169
    $region22: #{nlayer_discriminator_forward.5} parent=5 // pred_check_branch
      %172 = sbr.rel (%p170) target = $region24
    $region23: #{nlayer_discriminator_forward.5} parent=5 // pred_region
      // Predicated region
      $region25: #{nlayer_discriminator_forward.5} parent=23 // pred_check
        %p173 = pneg %p52
      $region26: #{nlayer_discriminator_forward.5} parent=23 // pred_check_branch
        %175 = sbr.rel (%p173) target = $region28
      $region27: #{nlayer_discriminator_forward.5} parent=23 // pred_region
        %p176 = scmp.lt.s32.totalorder %s16, 1
        %s177 = scalar_select %p176, %s16, 1
        %p178 = scmp.lt.s32.totalorder %s18, 3
        %s179 = scalar_select %p178, %s18, 3
        %p180 = scmp.lt.s32.totalorder %s17, 0
        %s181 = scalar_select %p180, %s17, 0
        %s182 = sadd.s32 %s181, %s179
        %s183 = smul.addr %s177, 4
        %s184 = sadd.s32 %s182, %s183
        %s185 = smul.addr %s184, 4
        %s186 = scalar_lea.vmem %s0, %s185
      $region28: #{nlayer_discriminator_forward.5} parent=23 // pred_fallthru
        _
    $region24: #{nlayer_discriminator_forward.5} parent=5 // pred_fallthru
      _
    %p187 = scmp.le.s32.totalorder 1, %s9
    %p188 = scmp.lt.s32.totalorder %s9, 9
    %p189 = pnand %p187, %p188
    %p190 = pneg %p189
    // Predicated region
    $region29: #{nlayer_discriminator_forward.5} parent=5 // pred_check
      _
    $region30: #{nlayer_discriminator_forward.5} parent=5 // pred_check_branch
      %192 = sbr.rel (%p189) target = $region32
    $region31: #{nlayer_discriminator_forward.5} parent=5 // pred_region
      %s193 = ssub.s32 %s9, 1
      %p194 = scmp.lt.s32.totalorder %s19, 1
      %s195 = scalar_select %p194, %s19, 1
      %p196 = scmp.lt.s32.totalorder %s21, 3
      %s197 = scalar_select %p196, %s21, 3
      %p198 = scmp.lt.s32.totalorder %s20, 0
      %s199 = scalar_select %p198, %s20, 0
      %s200 = sadd.s32 %s199, %s197
      %s201 = smul.addr %s195, 4
      %s202 = sadd.s32 %s200, %s201
      %s203 = smul.addr %s202, 4
      %s204 = scalar_lea.vmem %s0, %s203
      %p205 = pneg %p58
      %p206 = pneg %p55
      %p207 = scmp.lt.s32.totalorder %s20, 0
      %s208 = scalar_select %p207, %s20, 0
      %s209 = smul.addr %s208, 8
      %s210 = smul.addr %s209, 4
      %s211 = scalar_lea.vmem %s1, %s210
      %p212 = pneg %p84
      %p213 = pneg %p81
      %p214 = scmp.lt.s32.totalorder %s20, 0
      %s215 = scalar_select %p214, %s20, 0
      %s216 = scalar_lea.vmem %s2, %s215
      %p217 = pneg %p110
      %p218 = pneg %p107
      %p219 = pneg %p140
      %p220 = pneg %p137
      %p221 = scmp.lt.s32.totalorder %s19, 1
      %s222 = scalar_select %p221, %s19, 1
      %p223 = scmp.lt.s32.totalorder %s21, 3
      %s224 = scalar_select %p223, %s21, 3
      %p225 = scmp.lt.s32.totalorder %s20, 0
      %s226 = scalar_select %p225, %s20, 0
      %s227 = sadd.s32 %s226, %s224
      %s228 = smul.addr %s222, 4
      %s229 = sadd.s32 %s227, %s228
      %s230 = smul.addr %s229, 8
      %s231 = scalar_lea.vmem %s3, %s230
      %p232 = scmp.lt.s32.totalorder %s19, 1
      %s233 = scalar_select %p232, %s19, 1
      %p234 = scmp.lt.s32.totalorder %s21, 3
      %s235 = scalar_select %p234, %s21, 3
      %p236 = scmp.lt.s32.totalorder %s20, 0
      %s237 = scalar_select %p236, %s20, 0
      %s238 = sadd.s32 %s237, %s235
      %s239 = smul.addr %s233, 4
      %s240 = sadd.s32 %s238, %s239
      %s241 = smul.addr %s240, 4
      %s242 = scalar_lea.vmem %s0, %s241
      %p243 = scmp.lt.s32.totalorder %s20, 0
      %s244 = scalar_select %p243, %s20, 0
      %s245 = smul.addr %s244, 8
      %s246 = smul.addr %s245, 4
      %s247 = scalar_lea.vmem %s1, %s246
      %p248 = scmp.lt.s32.totalorder %s20, 0
      %s249 = scalar_select %p248, %s20, 0
      %s250 = scalar_lea.vmem %s2, %s249
      %p251 = scmp.lt.s32.totalorder %s19, 1
      %s252 = scalar_select %p251, %s19, 1
      %p253 = scmp.lt.s32.totalorder %s21, 3
      %s254 = scalar_select %p253, %s21, 3
      %p255 = scmp.lt.s32.totalorder %s20, 0
      %s256 = scalar_select %p255, %s20, 0
      %s257 = sadd.s32 %s256, %s254
      %s258 = smul.addr %s252, 4
      %s259 = sadd.s32 %s257, %s258
      %s260 = smul.addr %s259, 8
      %s261 = scalar_lea.vmem %s3, %s260
      %v263 = vld [vmem:[%s242] sm:$0xf]
      %v264 = vld [vmem:[%s247] sm:$0xf]
      %v265 = vld [vmem:[%s247 + $0x4] sm:$0xf]
      %v266 = vld [vmem:[%s247 + $0x8] sm:$0xf]
      %v267 = vld [vmem:[%s247 + $0xc] sm:$0xf]
      %v268 = vld [vmem:[%s247 + $0x10] sm:$0xf]
      %v269 = vld [vmem:[%s247 + $0x14] sm:$0xf]
      %v270 = vld [vmem:[%s247 + $0x18] sm:$0xf]
      %v271 = vld [vmem:[%s247 + $0x1c] sm:$0x3]
      %v272 = vld [vmem:[%s250] sm:$0x1]
      %v274 = vperm.slane %v272, 0
      %v284 = vunpack.c.l.b16 %v264
      %v285 = vunpack.c.l.b16 %v265
      %v286 = vunpack.c.l.b16 %v266
      %v287 = vunpack.c.l.b16 %v267
      %v288 = vunpack.c.l.b16 %v268
      %v289 = vunpack.c.l.b16 %v269
      %v290 = vunpack.c.l.b16 %v270
      %v291 = vunpack.c.l.b16 %v271
      %v292 = vpack.c.b16 %v285, %v284
      %v293 = vpack.c.b16 %v287, %v286
      %v294 = vpack.c.b16 %v289, %v288
      %v295 = vpack.c.b16 %v291, %v290
      %vm299 = vcmask 490496
      %v301 = vsel %vm299, %v263, 0
      %vm303 = vcmask 1045504
      %v305 = vsel %vm303, %v295, 0
      %307 = vmatpush.bf16.msra.mxu0 0
      %308 = vmatpush.bf16.msra.mxu0 0
      %309 = vmatpush.bf16.msra.mxu0 0
      %310 = vmatpush.bf16.msra.mxu0 0
      %311 = vmatpush.bf16.msra.mxu0 %v305
      %312 = vmatpush.bf16.msra.mxu0 %v294
      %313 = vmatpush.bf16.msra.mxu0 %v293
      %314 = vmatpush.bf16.msra.mxu0 %v292
      %315 = vmatmul.bf16.gmra.mxu0 %v301
      %v316 = vpop.f32.mrf.mxu0
      %v317 = vadd.f32 %v274, %v316
      %v318 = vpop.f32.mrf.mxu0
      %319 = vdwg.mxu0
      %vm320 = vcmp.gt.f32.partialorder %v317, 0.0
      %v321 = vmul.f32 %v317, 0.2
      %v322 = vsel %vm320, %v317, %v321
      %vm323 = vcmask 64512
      %324 = vst.msk [vmem:[%s261] sm:$0xff] %vm323, %v322
      %p325 = scmp.lt.s32.totalorder %s19, 1
      %s326 = scalar_select %p325, %s19, 1
      %p327 = scmp.lt.s32.totalorder %s21, 3
      %s328 = scalar_select %p327, %s21, 3
      %p329 = scmp.lt.s32.totalorder %s20, 0
      %s330 = scalar_select %p329, %s20, 0
      %s331 = sadd.s32 %s330, %s328
      %s332 = smul.addr %s326, 4
      %s333 = sadd.s32 %s331, %s332
      %s334 = smul.addr %s333, 8
      %s335 = scalar_lea.vmem %s3, %s334
      // Predicated region
      $region33: #{nlayer_discriminator_forward.5} parent=31 // pred_check
        %p336 = pneg %p137
      $region34: #{nlayer_discriminator_forward.5} parent=31 // pred_check_branch
        %338 = sbr.rel (%p336) target = $region36
      $region35: #{nlayer_discriminator_forward.5} parent=31 // pred_region
        _
      $region36: #{nlayer_discriminator_forward.5} parent=31 // pred_fallthru
        _
    $region32: #{nlayer_discriminator_forward.5} parent=5 // pred_fallthru
      _
    %p339 = scmp.le.s32.totalorder 2, %s9
    // Predicated region
    $region37: #{nlayer_discriminator_forward.5} parent=5 // pred_check
      %p340 = pneg %p339
    $region38: #{nlayer_discriminator_forward.5} parent=5 // pred_check_branch
      %342 = sbr.rel (%p340) target = $region40
    $region39: #{nlayer_discriminator_forward.5} parent=5 // pred_region
      %s343 = ssub.s32 %s9, 2
      // Predicated region
      $region41: #{nlayer_discriminator_forward.5} parent=39 // pred_check
        %p344 = pneg %p143
      $region42: #{nlayer_discriminator_forward.5} parent=39 // pred_check_branch
        %346 = sbr.rel (%p344) target = $region44
      $region43: #{nlayer_discriminator_forward.5} parent=39 // pred_region
        %p347 = scmp.lt.s32.totalorder %s22, 1
        %s348 = scalar_select %p347, %s22, 1
        %p349 = scmp.lt.s32.totalorder %s24, 3
        %s350 = scalar_select %p349, %s24, 3
        %p351 = scmp.lt.s32.totalorder %s23, 0
        %s352 = scalar_select %p351, %s23, 0
        %s353 = sadd.s32 %s352, %s350
        %s354 = smul.addr %s348, 4
        %s355 = sadd.s32 %s353, %s354
        %s356 = smul.addr %s355, 8
        %s357 = scalar_lea.vmem %s3, %s356
      $region44: #{nlayer_discriminator_forward.5} parent=39 // pred_fallthru
        _
    $region40: #{nlayer_discriminator_forward.5} parent=5 // pred_fallthru
      _
  $region6: #{nlayer_discriminator_forward.5} parent=0 // loop_footer
    %s13 = sadd.s32 1, %s9
  $region7: #{nlayer_discriminator_forward.5} parent=0 // loop_footer_branch
    %8 = sbr.rel target = $region3
  $region8: #{nlayer_discriminator_forward.5} parent=0 // loop_exit
    _

// kernel: nlayer_discriminator_forward.6
$region0: #{nlayer_discriminator_forward.6}
  #allocation0 [shape = 'u32[]', space=smem, size = 0x4, offset = 0x4, fixed_abs, tag = 'smem constant byte address 0x4 - core index']
  #allocation1 [shape = 'u32[72,128]{1,0:T(1,128)}', space=vmem, size = 0x9000, scoped, tag = 'internal scratch']
  %s0 = inlined_call_operand.vmem [shape: bf16[2,2,18,16], index: 0, kind: input, shape index: {}]
  %s1 = inlined_call_operand.vmem [shape: bf16[1,11,16,16], index: 1, kind: input, shape index: {}]
  %s2 = inlined_call_operand.vmem [shape: f32[1,1,16], index: 2, kind: input, shape index: {}]
  %s3 = inlined_call_operand.vmem [shape: f32[2,2,8,16], index: 3, kind: output, shape index: {}]
  %s4 = sld [smem:[#allocation0]]
  $region45: #{nlayer_discriminator_forward.6} parent=0
    _
  %s6 = ssub.s32 1, %s4
  %s7 = scalar_select 0, %s6, %s4
  loop: start=0, step=1, limit=6
  $region2: #{nlayer_discriminator_forward.6} parent=0 // loop_pre_header
    _
  $region3: #{nlayer_discriminator_forward.6} parent=0 // loop_header
    %s9 = sphi 0, %s13
    %p10 = scmp.ge.s32.totalorder %s9, 6
    %s16 = sphi 0, %s35
    %s17 = sphi 0, %s31
    %s18 = sphi 0, %s27
    %s19 = sphi 0, %s16
    %s20 = sphi 0, %s17
    %s21 = sphi 0, %s18
    %s22 = sphi 0, %s19
    %s23 = sphi 0, %s20
    %s24 = sphi 0, %s21
    %s42 = sphi 0, %s44
    %s45 = sphi 0, %s42
    %s46 = sphi 0, %s45
    %s62 = sphi 0, %s46
    %s68 = sphi 0, %s70
    %s71 = sphi 0, %s68
    %s72 = sphi 0, %s71
    %s88 = sphi 0, %s72
    %s94 = sphi 0, %s96
    %s97 = sphi 0, %s94
    %s98 = sphi 0, %s97
    %s114 = sphi 0, %s98
    %s124 = sphi 0, %s126
    %s127 = sphi 0, %s124
    %s128 = sphi 0, %s127
    %s144 = sphi 0, %s128
  $region4: #{nlayer_discriminator_forward.6} parent=0 // loop_header_branch
    %12 = sbr.rel (%p10) target = $region8
  $region5: #{nlayer_discriminator_forward.6} parent=0 // loop_body
    %s14 = ssub.s32 %s9, 1
    %s15 = ssub.s32 %s9, 2
    %s25 = sadd.s32 1, %s18
    %p26 = scmp.ge.s32.totalorder %s25, 2
    %s27 = scalar_select %p26, 0, %s25
    %s28 = sadd.s32 1, %s17
    %s29 = scalar_select %p26, %s28, %s17
    %p30 = scmp.ge.s32.totalorder %s29, 1
    %s31 = scalar_select %p30, 0, %s29
    %s32 = sadd.s32 1, %s16
    %s33 = scalar_select %p30, %s32, %s16
    %p34 = scmp.ge.s32.totalorder %s33, 2
    %s35 = scalar_select %p34, 0, %s33
    %s36 = ssub.s32 %s16, %s35
    %s37 = ssub.s32 %s18, %s27
    %s38 = sor.u32 %s36, %s37
    %s39 = ssub.s32 %s17, %s31
    %s40 = sor.u32 %s38, %s39
    %p41 = scmp.eq.s32.totalorder %s40, 0
    %s43 = sadd.s32 %s42, 1
    %s44 = scalar_select %p41, %s42, %s43
    %p47 = pneg %p41
    %p48 = scmp.eq.s32.totalorder %s9, 3
    %p49 = por %p47, %p48
    %p50 = scmp.ne.s32.totalorder %s42, %s45
    %p51 = scmp.eq.s32.totalorder %s9, 0
    %p52 = por %p50, %p51
    %p53 = scmp.ne.s32.totalorder %s42, %s45
    %p54 = scmp.eq.s32.totalorder %s14, 3
    %p55 = por %p53, %p54
    %p56 = scmp.ne.s32.totalorder %s45, %s46
    %p57 = scmp.eq.s32.totalorder %s14, 0
    %p58 = por %p56, %p57
    %p59 = scmp.ne.s32.totalorder %s45, %s46
    %p60 = scmp.eq.s32.totalorder %s15, 3
    %p61 = por %p59, %p60
    %p63 = scmp.ne.s32.totalorder %s46, %s62
    %p64 = scmp.eq.s32.totalorder %s15, 0
    %p65 = por %p63, %p64
    %s66 = ssub.s32 %s17, %s31
    %p67 = scmp.eq.s32.totalorder %s66, 0
    %s69 = sadd.s32 %s68, 1
    %s70 = scalar_select %p67, %s68, %s69
    %p73 = pneg %p67
    %p74 = scmp.eq.s32.totalorder %s9, 3
    %p75 = por %p73, %p74
    %p76 = scmp.ne.s32.totalorder %s68, %s71
    %p77 = scmp.eq.s32.totalorder %s9, 0
    %p78 = por %p76, %p77
    %p79 = scmp.ne.s32.totalorder %s68, %s71
    %p80 = scmp.eq.s32.totalorder %s14, 3
    %p81 = por %p79, %p80
    %p82 = scmp.ne.s32.totalorder %s71, %s72
    %p83 = scmp.eq.s32.totalorder %s14, 0
    %p84 = por %p82, %p83
    %p85 = scmp.ne.s32.totalorder %s71, %s72
    %p86 = scmp.eq.s32.totalorder %s15, 3
    %p87 = por %p85, %p86
    %p89 = scmp.ne.s32.totalorder %s72, %s88
    %p90 = scmp.eq.s32.totalorder %s15, 0
    %p91 = por %p89, %p90
    %s92 = ssub.s32 %s17, %s31
    %p93 = scmp.eq.s32.totalorder %s92, 0
    %s95 = sadd.s32 %s94, 1
    %s96 = scalar_select %p93, %s94, %s95
    %p99 = pneg %p93
    %p100 = scmp.eq.s32.totalorder %s9, 3
    %p101 = por %p99, %p100
    %p102 = scmp.ne.s32.totalorder %s94, %s97
    %p103 = scmp.eq.s32.totalorder %s9, 0
    %p104 = por %p102, %p103
    %p105 = scmp.ne.s32.totalorder %s94, %s97
    %p106 = scmp.eq.s32.totalorder %s14, 3
    %p107 = por %p105, %p106
    %p108 = scmp.ne.s32.totalorder %s97, %s98
    %p109 = scmp.eq.s32.totalorder %s14, 0
    %p110 = por %p108, %p109
    %p111 = scmp.ne.s32.totalorder %s97, %s98
    %p112 = scmp.eq.s32.totalorder %s15, 3
    %p113 = por %p111, %p112
    %p115 = scmp.ne.s32.totalorder %s98, %s114
    %p116 = scmp.eq.s32.totalorder %s15, 0
    %p117 = por %p115, %p116
    %s118 = ssub.s32 %s16, %s35
    %s119 = ssub.s32 %s18, %s27
    %s120 = sor.u32 %s118, %s119
    %s121 = ssub.s32 %s17, %s31
    %s122 = sor.u32 %s120, %s121
    %p123 = scmp.eq.s32.totalorder %s122, 0
    %s125 = sadd.s32 %s124, 1
    %s126 = scalar_select %p123, %s124, %s125
    %p129 = pneg %p123
    %p130 = scmp.eq.s32.totalorder %s9, 3
    %p131 = por %p129, %p130
    %p132 = scmp.ne.s32.totalorder %s124, %s127
    %p133 = scmp.eq.s32.totalorder %s9, 0
    %p134 = por %p132, %p133
    %p135 = scmp.ne.s32.totalorder %s124, %s127
    %p136 = scmp.eq.s32.totalorder %s14, 3
    %p137 = por %p135, %p136
    %p138 = scmp.ne.s32.totalorder %s127, %s128
    %p139 = scmp.eq.s32.totalorder %s14, 0
    %p140 = por %p138, %p139
    %p141 = scmp.ne.s32.totalorder %s127, %s128
    %p142 = scmp.eq.s32.totalorder %s15, 3
    %p143 = por %p141, %p142
    %p145 = scmp.ne.s32.totalorder %s128, %s144
    %p146 = scmp.eq.s32.totalorder %s15, 0
    %p147 = por %p145, %p146
    %p148 = scmp.le.s32.totalorder 1, %s9
    %p149 = scmp.lt.s32.totalorder %s9, 5
    %p150 = pnand %p148, %p149
    %p151 = pneg %p150
    // Predicated region
    $region9: #{nlayer_discriminator_forward.6} parent=5 // pred_check
      _
    $region10: #{nlayer_discriminator_forward.6} parent=5 // pred_check_branch
      %153 = sbr.rel (%p150) target = $region12
    $region11: #{nlayer_discriminator_forward.6} parent=5 // pred_region
      %s154 = ssub.s32 %s9, 1
      // Predicated region
      $region13: #{nlayer_discriminator_forward.6} parent=11 // pred_check
        %p155 = pneg %p84
      $region14: #{nlayer_discriminator_forward.6} parent=11 // pred_check_branch
        %157 = sbr.rel (%p155) target = $region16
      $region15: #{nlayer_discriminator_forward.6} parent=11 // pred_region
        %p158 = scmp.lt.s32.totalorder %s20, 0
        %s159 = scalar_select %p158, %s20, 0
        %s160 = smul.addr %s159, 22
        %s161 = smul.addr %s160, 4
        %s162 = scalar_lea.vmem %s1, %s161
      $region16: #{nlayer_discriminator_forward.6} parent=11 // pred_fallthru
        _
      // Predicated region
      $region17: #{nlayer_discriminator_forward.6} parent=11 // pred_check
        %p163 = pneg %p110
      $region18: #{nlayer_discriminator_forward.6} parent=11 // pred_check_branch
        %165 = sbr.rel (%p163) target = $region20
      $region19: #{nlayer_discriminator_forward.6} parent=11 // pred_region
        %p166 = scmp.lt.s32.totalorder %s20, 0
        %s167 = scalar_select %p166, %s20, 0
        %s168 = scalar_lea.vmem %s2, %s167
      $region20: #{nlayer_discriminator_forward.6} parent=11 // pred_fallthru
        _
    $region12: #{nlayer_discriminator_forward.6} parent=5 // pred_fallthru
      _
    %p169 = scmp.lt.s32.totalorder %s9, 4
    // Predicated region
    $region21: #{nlayer_discriminator_forward.6} parent=5 // pred_check
      %p170 = pneg %p169
    $region22: #{nlayer_discriminator_forward.6} parent=5 // pred_check_branch
      %172 = sbr.rel (%p170) target = $region24
    $region23: #{nlayer_discriminator_forward.6} parent=5 // pred_region
      // Predicated region
      $region25: #{nlayer_discriminator_forward.6} parent=23 // pred_check
        %p173 = pneg %p52
      $region26: #{nlayer_discriminator_forward.6} parent=23 // pred_check_branch
        %175 = sbr.rel (%p173) target = $region28
      $region27: #{nlayer_discriminator_forward.6} parent=23 // pred_region
        %p176 = scmp.lt.s32.totalorder %s16, 1
        %s177 = scalar_select %p176, %s16, 1
        %p178 = scmp.lt.s32.totalorder %s18, 1
        %s179 = scalar_select %p178, %s18, 1
        %p180 = scmp.lt.s32.totalorder %s17, 0
        %s181 = scalar_select %p180, %s17, 0
        %s182 = smul.addr %s179, 3
        %s183 = sadd.s32 %s181, %s182
        %s184 = smul.addr %s177, 6
        %s185 = sadd.s32 %s183, %s184
        %s186 = smul.addr %s185, 4
        %s187 = scalar_lea.vmem %s0, %s186
      $region28: #{nlayer_discriminator_forward.6} parent=23 // pred_fallthru
        _
    $region24: #{nlayer_discriminator_forward.6} parent=5 // pred_fallthru
      _
    %p188 = scmp.le.s32.totalorder 1, %s9
    %p189 = scmp.lt.s32.totalorder %s9, 5
    %p190 = pnand %p188, %p189
    %p191 = pneg %p190
    // Predicated region
    $region29: #{nlayer_discriminator_forward.6} parent=5 // pred_check
      _
    $region30: #{nlayer_discriminator_forward.6} parent=5 // pred_check_branch
      %193 = sbr.rel (%p190) target = $region32
    $region31: #{nlayer_discriminator_forward.6} parent=5 // pred_region
      %s194 = ssub.s32 %s9, 1
      %p195 = scmp.lt.s32.totalorder %s19, 1
      %s196 = scalar_select %p195, %s19, 1
      %p197 = scmp.lt.s32.totalorder %s21, 1
      %s198 = scalar_select %p197, %s21, 1
      %p199 = scmp.lt.s32.totalorder %s20, 0
      %s200 = scalar_select %p199, %s20, 0
      %s201 = smul.addr %s198, 3
      %s202 = sadd.s32 %s200, %s201
      %s203 = smul.addr %s196, 6
      %s204 = sadd.s32 %s202, %s203
      %s205 = smul.addr %s204, 4
      %s206 = scalar_lea.vmem %s0, %s205
      %p207 = pneg %p58
      %p208 = pneg %p55
      %p209 = scmp.lt.s32.totalorder %s20, 0
      %s210 = scalar_select %p209, %s20, 0
      %s211 = smul.addr %s210, 22
      %s212 = smul.addr %s211, 4
      %s213 = scalar_lea.vmem %s1, %s212
      %p214 = pneg %p84
      %p215 = pneg %p81
      %p216 = scmp.lt.s32.totalorder %s20, 0
      %s217 = scalar_select %p216, %s20, 0
      %s218 = scalar_lea.vmem %s2, %s217
      %p219 = pneg %p110
      %p220 = pneg %p107
      %p221 = pneg %p140
      %p222 = pneg %p137
      %p223 = scmp.lt.s32.totalorder %s19, 1
      %s224 = scalar_select %p223, %s19, 1
      %p225 = scmp.lt.s32.totalorder %s21, 1
      %s226 = scalar_select %p225, %s21, 1
      %p227 = scmp.lt.s32.totalorder %s20, 0
      %s228 = scalar_select %p227, %s20, 0
      %s229 = sadd.s32 %s228, %s226
      %s230 = smul.addr %s224, 2
      %s231 = sadd.s32 %s229, %s230
      %s232 = smul.addr %s231, 8
      %s233 = scalar_lea.vmem %s3, %s232
      %p234 = scmp.lt.s32.totalorder %s19, 1
      %s235 = scalar_select %p234, %s19, 1
      %p236 = scmp.lt.s32.totalorder %s21, 1
      %s237 = scalar_select %p236, %s21, 1
      %p238 = scmp.lt.s32.totalorder %s20, 0
      %s239 = scalar_select %p238, %s20, 0
      %s240 = smul.addr %s237, 3
      %s241 = sadd.s32 %s239, %s240
      %s242 = smul.addr %s235, 6
      %s243 = sadd.s32 %s241, %s242
      %s244 = smul.addr %s243, 4
      %s245 = scalar_lea.vmem %s0, %s244
      %p246 = scmp.lt.s32.totalorder %s20, 0
      %s247 = scalar_select %p246, %s20, 0
      %s248 = smul.addr %s247, 22
      %s249 = smul.addr %s248, 4
      %s250 = scalar_lea.vmem %s1, %s249
      %p251 = scmp.lt.s32.totalorder %s20, 0
      %s252 = scalar_select %p251, %s20, 0
      %s253 = scalar_lea.vmem %s2, %s252
      %p254 = scmp.lt.s32.totalorder %s19, 1
      %s255 = scalar_select %p254, %s19, 1
      %p256 = scmp.lt.s32.totalorder %s21, 1
      %s257 = scalar_select %p256, %s21, 1
      %p258 = scmp.lt.s32.totalorder %s20, 0
      %s259 = scalar_select %p258, %s20, 0
      %s260 = sadd.s32 %s259, %s257
      %s261 = smul.addr %s255, 2
      %s262 = sadd.s32 %s260, %s261
      %s263 = smul.addr %s262, 8
      %s264 = scalar_lea.vmem %s3, %s263
      %v266 = vld [vmem:[%s245] sm:$0xf]
      %v267 = vld [vmem:[%s250] sm:$0xf]
      %v268 = vld [vmem:[%s250 + $0x4] sm:$0xf]
      %v269 = vld [vmem:[%s245 + $0x4] sm:$0x1]
      %s270 = scalar_lea.vmem %s250, 8
      %v271 = vld [vmem:[%s270] sm:$0xf]
      %v272 = vld [vmem:[%s270 + $0x4] sm:$0xf]
      %v275 = vunpack.c.l.b16 %v266
      %v276 = vunpack.c.l.b16 %v269
      %v277 = vpack.c.b16 %v276, %v275
      %v279 = vshrl.u32 %v277, 16
      %v281 = vshll.u32 %v277, 16
      %v283 = vrot.slane %v281, 1
      %v284 = vor.u32 %v279, %v283
      %v287 = vunpack.c.l.b16 %v271
      %v288 = vunpack.c.l.b16 %v272
      %v289 = vpack.c.b16 %v288, %v287
      %vm291 = vcmask 130048
      %v293 = vsel %vm291, %v284, 0
      %295 = vmatpush.bf16.msra.mxu0 0
      %296 = vmatpush.bf16.msra.mxu0 0
      %297 = vmatpush.bf16.msra.mxu0 0
      %298 = vmatpush.bf16.msra.mxu0 0
      %299 = vmatpush.bf16.msra.mxu0 0
      %300 = vmatpush.bf16.msra.mxu0 0
      %301 = vmatpush.bf16.msra.mxu0 0
      %302 = vmatpush.bf16.msra.mxu0 %v289
      %303 = vmatmul.bf16.gmra.mxu0 %v293
      %v304 = vpop.f32.mrf.mxu0
      %v305 = vadd.f32 0.0, %v304
      %v306 = vpop.f32.mrf.mxu0
      %307 = vdwg.mxu0
      %v310 = vunpack.c.l.b16 %v267
      %v311 = vunpack.c.l.b16 %v268
      %v312 = vpack.c.b16 %v311, %v310
      %v315 = vsel %vm291, %v266, 0
      %317 = vmatpush.bf16.msra.mxu0 0
      %318 = vmatpush.bf16.msra.mxu0 0
      %319 = vmatpush.bf16.msra.mxu0 0
      %320 = vmatpush.bf16.msra.mxu0 0
      %321 = vmatpush.bf16.msra.mxu0 0
      %322 = vmatpush.bf16.msra.mxu0 0
      %323 = vmatpush.bf16.msra.mxu0 0
      %324 = vmatpush.bf16.msra.mxu0 %v312
      %325 = vmatmul.bf16.gmra.mxu0 %v315
      %v326 = vpop.f32.mrf.mxu0
      %v327 = vadd.f32 %v305, %v326
      %v328 = vpop.f32.mrf.mxu0
      %329 = vdwg.mxu0
      %v330 = vld [vmem:[%s245] sm:$0xe]
      %s331 = scalar_lea.vmem %s250, 16
      %v332 = vld [vmem:[%s331] sm:$0xf]
      %v333 = vld [vmem:[%s331 + $0x4] sm:$0xf]
      %v335 = vunpack.c.l.b16 %v330
      %v336 = vpack.c.b16 %v276, %v335
      %v337 = vrot.slane %v336, 1
      %v340 = vunpack.c.l.b16 %v332
      %v341 = vunpack.c.l.b16 %v333
      %v342 = vpack.c.b16 %v341, %v340
      %v345 = vsel %vm291, %v337, 0
      %347 = vmatpush.bf16.msra.mxu0 0
      %348 = vmatpush.bf16.msra.mxu0 0
      %349 = vmatpush.bf16.msra.mxu0 0
      %350 = vmatpush.bf16.msra.mxu0 0
      %351 = vmatpush.bf16.msra.mxu0 0
      %352 = vmatpush.bf16.msra.mxu0 0
      %353 = vmatpush.bf16.msra.mxu0 0
      %354 = vmatpush.bf16.msra.mxu0 %v342
      %355 = vmatmul.bf16.gmra.mxu0 %v345
      %v356 = vpop.f32.mrf.mxu0
      %v357 = vadd.f32 0.0, %v356
      %v358 = vpop.f32.mrf.mxu0
      %359 = vdwg.mxu0
      %v360 = vadd.f32 %v327, %v357
      %v361 = vld [vmem:[%s245 + $0x4] sm:$0x3]
      %s362 = scalar_lea.vmem %s250, 24
      %v363 = vld [vmem:[%s362] sm:$0xf]
      %v364 = vld [vmem:[%s362 + $0x4] sm:$0xf]
      %v366 = vunpack.c.l.b16 %v361
      %v367 = vpack.c.b16 %v366, %v335
      %v369 = vshrl.u32 %v367, 16
      %v371 = vrot.slane %v369, 1
      %v372 = vshll.u32 %v367, 16
      %v374 = vrot.slane %v372, 2
      %v375 = vor.u32 %v371, %v374
      %v378 = vunpack.c.l.b16 %v363
      %v379 = vunpack.c.l.b16 %v364
      %v380 = vpack.c.b16 %v379, %v378
      %v383 = vsel %vm291, %v375, 0
      %385 = vmatpush.bf16.msra.mxu0 0
      %386 = vmatpush.bf16.msra.mxu0 0
      %387 = vmatpush.bf16.msra.mxu0 0
      %388 = vmatpush.bf16.msra.mxu0 0
      %389 = vmatpush.bf16.msra.mxu0 0
      %390 = vmatpush.bf16.msra.mxu0 0
      %391 = vmatpush.bf16.msra.mxu0 0
      %392 = vmatpush.bf16.msra.mxu0 %v380
      %393 = vmatmul.bf16.gmra.mxu0 %v383
      %v394 = vpop.f32.mrf.mxu0
      %v395 = vadd.f32 0.0, %v394
      %v396 = vpop.f32.mrf.mxu0
      %397 = vdwg.mxu0
      %v398 = vadd.f32 %v360, %v395
      %v399 = vld [vmem:[%s245] sm:$0xc]
      %s400 = scalar_lea.vmem %s250, 32
      %v401 = vld [vmem:[%s400] sm:$0xf]
      %v402 = vld [vmem:[%s400 + $0x4] sm:$0xf]
      %v404 = vunpack.c.l.b16 %v399
      %v405 = vpack.c.b16 %v366, %v404
      %v406 = vrot.slane %v405, 2
      %v409 = vunpack.c.l.b16 %v401
      %v410 = vunpack.c.l.b16 %v402
      %v411 = vpack.c.b16 %v410, %v409
      %v414 = vsel %vm291, %v406, 0
      %416 = vmatpush.bf16.msra.mxu0 0
      %417 = vmatpush.bf16.msra.mxu0 0
      %418 = vmatpush.bf16.msra.mxu0 0
      %419 = vmatpush.bf16.msra.mxu0 0
      %420 = vmatpush.bf16.msra.mxu0 0
      %421 = vmatpush.bf16.msra.mxu0 0
      %422 = vmatpush.bf16.msra.mxu0 0
      %423 = vmatpush.bf16.msra.mxu0 %v411
      %424 = vmatmul.bf16.gmra.mxu0 %v414
      %v425 = vpop.f32.mrf.mxu0
      %v426 = vadd.f32 0.0, %v425
      %v427 = vpop.f32.mrf.mxu0
      %428 = vdwg.mxu0
      %v429 = vadd.f32 %v398, %v426
      %v430 = vld [vmem:[%s245 + $0x4] sm:$0x7]
      %s431 = scalar_lea.vmem %s250, 40
      %v432 = vld [vmem:[%s431] sm:$0xf]
      %v433 = vld [vmem:[%s431 + $0x4] sm:$0xf]
      %v435 = vunpack.c.l.b16 %v430
      %v436 = vpack.c.b16 %v435, %v404
      %v438 = vshrl.u32 %v436, 16
      %v440 = vrot.slane %v438, 2
      %v441 = vshll.u32 %v436, 16
      %v443 = vrot.slane %v441, 3
      %v444 = vor.u32 %v440, %v443
      %v447 = vunpack.c.l.b16 %v432
      %v448 = vunpack.c.l.b16 %v433
      %v449 = vpack.c.b16 %v448, %v447
      %v452 = vsel %vm291, %v444, 0
      %454 = vmatpush.bf16.msra.mxu0 0
      %455 = vmatpush.bf16.msra.mxu0 0
      %456 = vmatpush.bf16.msra.mxu0 0
      %457 = vmatpush.bf16.msra.mxu0 0
      %458 = vmatpush.bf16.msra.mxu0 0
      %459 = vmatpush.bf16.msra.mxu0 0
      %460 = vmatpush.bf16.msra.mxu0 0
      %461 = vmatpush.bf16.msra.mxu0 %v449
      %462 = vmatmul.bf16.gmra.mxu0 %v452
      %v463 = vpop.f32.mrf.mxu0
      %v464 = vadd.f32 0.0, %v463
      %v465 = vpop.f32.mrf.mxu0
      %466 = vdwg.mxu0
      %v467 = vadd.f32 %v429, %v464
      %v468 = vld [vmem:[%s245] sm:$0x8]
      %s469 = scalar_lea.vmem %s250, 48
      %v470 = vld [vmem:[%s469] sm:$0xf]
      %v471 = vld [vmem:[%s469 + $0x4] sm:$0xf]
      %v473 = vunpack.c.l.b16 %v468
      %v474 = vpack.c.b16 %v435, %v473
      %v475 = vrot.slane %v474, 3
      %v478 = vunpack.c.l.b16 %v470
      %v479 = vunpack.c.l.b16 %v471
      %v480 = vpack.c.b16 %v479, %v478
      %v483 = vsel %vm291, %v475, 0
      %485 = vmatpush.bf16.msra.mxu0 0
      %486 = vmatpush.bf16.msra.mxu0 0
      %487 = vmatpush.bf16.msra.mxu0 0
      %488 = vmatpush.bf16.msra.mxu0 0
      %489 = vmatpush.bf16.msra.mxu0 0
      %490 = vmatpush.bf16.msra.mxu0 0
      %491 = vmatpush.bf16.msra.mxu0 0
      %492 = vmatpush.bf16.msra.mxu0 %v480
      %493 = vmatmul.bf16.gmra.mxu0 %v483
      %v494 = vpop.f32.mrf.mxu0
      %v495 = vadd.f32 0.0, %v494
      %v496 = vpop.f32.mrf.mxu0
      %497 = vdwg.mxu0
      %v498 = vadd.f32 %v467, %v495
      %v499 = vld [vmem:[%s245 + $0x4] sm:$0xf]
      %s500 = scalar_lea.vmem %s250, 56
      %v501 = vld [vmem:[%s500] sm:$0xf]
      %v502 = vld [vmem:[%s500 + $0x4] sm:$0xf]
      %v504 = vunpack.c.l.b16 %v499
      %v505 = vpack.c.b16 %v504, %v473
      %v507 = vshrl.u32 %v505, 16
      %v509 = vrot.slane %v507, 3
      %v510 = vshll.u32 %v505, 16
      %v512 = vrot.slane %v510, 4
      %v513 = vor.u32 %v509, %v512
      %v516 = vunpack.c.l.b16 %v501
      %v517 = vunpack.c.l.b16 %v502
      %v518 = vpack.c.b16 %v517, %v516
      %v521 = vsel %vm291, %v513, 0
      %523 = vmatpush.bf16.msra.mxu0 0
      %524 = vmatpush.bf16.msra.mxu0 0
      %525 = vmatpush.bf16.msra.mxu0 0
      %526 = vmatpush.bf16.msra.mxu0 0
      %527 = vmatpush.bf16.msra.mxu0 0
      %528 = vmatpush.bf16.msra.mxu0 0
      %529 = vmatpush.bf16.msra.mxu0 0
      %530 = vmatpush.bf16.msra.mxu0 %v518
      %531 = vmatmul.bf16.gmra.mxu0 %v521
      %v532 = vpop.f32.mrf.mxu0
      %v533 = vadd.f32 0.0, %v532
      %v534 = vpop.f32.mrf.mxu0
      %535 = vdwg.mxu0
      %v536 = vadd.f32 %v498, %v533
      %s537 = scalar_lea.vmem %s250, 64
      %v538 = vld [vmem:[%s537] sm:$0xf]
      %v539 = vld [vmem:[%s537 + $0x4] sm:$0xf]
      %v542 = vunpack.c.l.b16 %v538
      %v543 = vunpack.c.l.b16 %v539
      %v544 = vpack.c.b16 %v543, %v542
      %v547 = vsel %vm291, %v499, 0
      %549 = vmatpush.bf16.msra.mxu0 0
      %550 = vmatpush.bf16.msra.mxu0 0
      %551 = vmatpush.bf16.msra.mxu0 0
      %552 = vmatpush.bf16.msra.mxu0 0
      %553 = vmatpush.bf16.msra.mxu0 0
      %554 = vmatpush.bf16.msra.mxu0 0
      %555 = vmatpush.bf16.msra.mxu0 0
      %556 = vmatpush.bf16.msra.mxu0 %v544
      %557 = vmatmul.bf16.gmra.mxu0 %v547
      %v558 = vpop.f32.mrf.mxu0
      %v559 = vadd.f32 0.0, %v558
      %v560 = vpop.f32.mrf.mxu0
      %561 = vdwg.mxu0
      %v562 = vadd.f32 %v536, %v559
      %v563 = vld [vmem:[%s245 + $0x4] sm:$0xf]
      %v564 = vld [vmem:[%s245 + $0x8] sm:$0x1]
      %s565 = scalar_lea.vmem %s250, 72
      %v566 = vld [vmem:[%s565] sm:$0xf]
      %v567 = vld [vmem:[%s565 + $0x4] sm:$0xf]
      %v570 = vunpack.c.l.b16 %v563
      %v571 = vunpack.c.l.b16 %v564
      %v572 = vpack.c.b16 %v571, %v570
      %v574 = vshrl.u32 %v572, 16
      %v576 = vshll.u32 %v572, 16
      %v578 = vrot.slane %v576, 1
      %v579 = vor.u32 %v574, %v578
      %v582 = vunpack.c.l.b16 %v566
      %v583 = vunpack.c.l.b16 %v567
      %v584 = vpack.c.b16 %v583, %v582
      %v587 = vsel %vm291, %v579, 0
      %589 = vmatpush.bf16.msra.mxu0 0
      %590 = vmatpush.bf16.msra.mxu0 0
      %591 = vmatpush.bf16.msra.mxu0 0
      %592 = vmatpush.bf16.msra.mxu0 0
      %593 = vmatpush.bf16.msra.mxu0 0
      %594 = vmatpush.bf16.msra.mxu0 0
      %595 = vmatpush.bf16.msra.mxu0 0
      %596 = vmatpush.bf16.msra.mxu0 %v584
      %597 = vmatmul.bf16.gmra.mxu0 %v587
      %v598 = vpop.f32.mrf.mxu0
      %v599 = vadd.f32 0.0, %v598
      %v600 = vpop.f32.mrf.mxu0
      %601 = vdwg.mxu0
      %v602 = vadd.f32 %v562, %v599
      %v603 = vld [vmem:[%s245 + $0x4] sm:$0xe]
      %s604 = scalar_lea.vmem %s250, 80
      %v605 = vld [vmem:[%s604] sm:$0xf]
      %v606 = vld [vmem:[%s604 + $0x4] sm:$0xf]
      %v608 = vunpack.c.l.b16 %v603
      %v609 = vpack.c.b16 %v571, %v608
      %v610 = vrot.slane %v609, 1
      %v613 = vunpack.c.l.b16 %v605
      %v614 = vunpack.c.l.b16 %v606
      %v615 = vpack.c.b16 %v614, %v613
      %v618 = vsel %vm291, %v610, 0
      %620 = vmatpush.bf16.msra.mxu0 0
      %621 = vmatpush.bf16.msra.mxu0 0
      %622 = vmatpush.bf16.msra.mxu0 0
      %623 = vmatpush.bf16.msra.mxu0 0
      %624 = vmatpush.bf16.msra.mxu0 0
      %625 = vmatpush.bf16.msra.mxu0 0
      %626 = vmatpush.bf16.msra.mxu0 0
      %627 = vmatpush.bf16.msra.mxu0 %v615
      %628 = vmatmul.bf16.gmra.mxu0 %v618
      %v629 = vpop.f32.mrf.mxu0
      %v630 = vadd.f32 0.0, %v629
      %v631 = vpop.f32.mrf.mxu0
      %632 = vdwg.mxu0
      %v633 = vadd.f32 %v602, %v630
      %v634 = vld [vmem:[%s253] sm:$0x1]
      %v636 = vperm.slane %v634, 0
      %v638 = vadd.f32 %v633, %v636
      %vm639 = vcmp.gt.f32.partialorder %v638, 0.0
      %v640 = vmul.f32 %v638, 0.2
      %v641 = vsel %vm639, %v638, %v640
      %642 = vst.msk [vmem:[%s264] sm:$0xff] %vm291, %v641
      %p643 = scmp.lt.s32.totalorder %s19, 1
      %s644 = scalar_select %p643, %s19, 1
      %p645 = scmp.lt.s32.totalorder %s21, 1
      %s646 = scalar_select %p645, %s21, 1
      %p647 = scmp.lt.s32.totalorder %s20, 0
      %s648 = scalar_select %p647, %s20, 0
      %s649 = sadd.s32 %s648, %s646
      %s650 = smul.addr %s644, 2
      %s651 = sadd.s32 %s649, %s650
      %s652 = smul.addr %s651, 8
      %s653 = scalar_lea.vmem %s3, %s652
      // Predicated region
      $region33: #{nlayer_discriminator_forward.6} parent=31 // pred_check
        %p654 = pneg %p137
      $region34: #{nlayer_discriminator_forward.6} parent=31 // pred_check_branch
        %656 = sbr.rel (%p654) target = $region36
      $region35: #{nlayer_discriminator_forward.6} parent=31 // pred_region
        _
      $region36: #{nlayer_discriminator_forward.6} parent=31 // pred_fallthru
        _
    $region32: #{nlayer_discriminator_forward.6} parent=5 // pred_fallthru
      _
    %p657 = scmp.le.s32.totalorder 2, %s9
    // Predicated region
    $region37: #{nlayer_discriminator_forward.6} parent=5 // pred_check
      %p658 = pneg %p657
    $region38: #{nlayer_discriminator_forward.6} parent=5 // pred_check_branch
      %660 = sbr.rel (%p658) target = $region40
    $region39: #{nlayer_discriminator_forward.6} parent=5 // pred_region
      %s661 = ssub.s32 %s9, 2
      // Predicated region
      $region41: #{nlayer_discriminator_forward.6} parent=39 // pred_check
        %p662 = pneg %p143
      $region42: #{nlayer_discriminator_forward.6} parent=39 // pred_check_branch
        %664 = sbr.rel (%p662) target = $region44
      $region43: #{nlayer_discriminator_forward.6} parent=39 // pred_region
        %p665 = scmp.lt.s32.totalorder %s22, 1
        %s666 = scalar_select %p665, %s22, 1
        %p667 = scmp.lt.s32.totalorder %s24, 1
        %s668 = scalar_select %p667, %s24, 1
        %p669 = scmp.lt.s32.totalorder %s23, 0
        %s670 = scalar_select %p669, %s23, 0
        %s671 = sadd.s32 %s670, %s668
        %s672 = smul.addr %s666, 2
        %s673 = sadd.s32 %s671, %s672
        %s674 = smul.addr %s673, 8
        %s675 = scalar_lea.vmem %s3, %s674
      $region44: #{nlayer_discriminator_forward.6} parent=39 // pred_fallthru
        _
    $region40: #{nlayer_discriminator_forward.6} parent=5 // pred_fallthru
      _
  $region6: #{nlayer_discriminator_forward.6} parent=0 // loop_footer
    %s13 = sadd.s32 1, %s9
  $region7: #{nlayer_discriminator_forward.6} parent=0 // loop_footer_branch
    %8 = sbr.rel target = $region3
  $region8: #{nlayer_discriminator_forward.6} parent=0 // loop_exit
    _

// kernel: nlayer_discriminator_forward.7
$region0: #{nlayer_discriminator_forward.7}
  #allocation0 [shape = 'u32[]', space=smem, size = 0x4, offset = 0x4, fixed_abs, tag = 'smem constant byte address 0x4 - core index']
  #allocation1 [shape = 'u32[72,128]{1,0:T(1,128)}', space=vmem, size = 0x9000, scoped, tag = 'internal scratch']
  %s0 = inlined_call_operand.vmem [shape: bf16[2,1,18,32], index: 0, kind: input, shape index: {}]
  %s1 = inlined_call_operand.vmem [shape: bf16[1,11,32,16], index: 1, kind: input, shape index: {}]
  %s2 = inlined_call_operand.vmem [shape: f32[1,1,16], index: 2, kind: input, shape index: {}]
  %s3 = inlined_call_operand.vmem [shape: f32[2,1,8,16], index: 3, kind: output, shape index: {}]
  %s4 = sld [smem:[#allocation0]]
  $region45: #{nlayer_discriminator_forward.7} parent=0
    _
  %s6 = ssub.s32 1, %s4
  %s7 = scalar_select 0, %s6, %s4
  loop: start=0, step=1, limit=4
  $region2: #{nlayer_discriminator_forward.7} parent=0 // loop_pre_header
    _
  $region3: #{nlayer_discriminator_forward.7} parent=0 // loop_header
    %s9 = sphi 0, %s13
    %p10 = scmp.ge.s32.totalorder %s9, 4
    %s16 = sphi 0, %s35
    %s17 = sphi 0, %s31
    %s18 = sphi 0, %s27
    %s19 = sphi 0, %s16
    %s20 = sphi 0, %s17
    %s21 = sphi 0, %s18
    %s22 = sphi 0, %s19
    %s23 = sphi 0, %s20
    %s24 = sphi 0, %s21
    %s42 = sphi 0, %s44
    %s45 = sphi 0, %s42
    %s46 = sphi 0, %s45
    %s62 = sphi 0, %s46
    %s68 = sphi 0, %s70
    %s71 = sphi 0, %s68
    %s72 = sphi 0, %s71
    %s88 = sphi 0, %s72
    %s94 = sphi 0, %s96
    %s97 = sphi 0, %s94
    %s98 = sphi 0, %s97
    %s114 = sphi 0, %s98
    %s124 = sphi 0, %s126
    %s127 = sphi 0, %s124
    %s128 = sphi 0, %s127
    %s144 = sphi 0, %s128
  $region4: #{nlayer_discriminator_forward.7} parent=0 // loop_header_branch
    %12 = sbr.rel (%p10) target = $region8
  $region5: #{nlayer_discriminator_forward.7} parent=0 // loop_body
    %s14 = ssub.s32 %s9, 1
    %s15 = ssub.s32 %s9, 2
    %s25 = sadd.s32 1, %s18
    %p26 = scmp.ge.s32.totalorder %s25, 1
    %s27 = scalar_select %p26, 0, %s25
    %s28 = sadd.s32 1, %s17
    %s29 = scalar_select %p26, %s28, %s17
    %p30 = scmp.ge.s32.totalorder %s29, 1
    %s31 = scalar_select %p30, 0, %s29
    %s32 = sadd.s32 1, %s16
    %s33 = scalar_select %p30, %s32, %s16
    %p34 = scmp.ge.s32.totalorder %s33, 2
    %s35 = scalar_select %p34, 0, %s33
    %s36 = ssub.s32 %s16, %s35
    %s37 = ssub.s32 %s18, %s27
    %s38 = sor.u32 %s36, %s37
    %s39 = ssub.s32 %s17, %s31
    %s40 = sor.u32 %s38, %s39
    %p41 = scmp.eq.s32.totalorder %s40, 0
    %s43 = sadd.s32 %s42, 1
    %s44 = scalar_select %p41, %s42, %s43
    %p47 = pneg %p41
    %p48 = scmp.eq.s32.totalorder %s9, 1
    %p49 = por %p47, %p48
    %p50 = scmp.ne.s32.totalorder %s42, %s45
    %p51 = scmp.eq.s32.totalorder %s9, 0
    %p52 = por %p50, %p51
    %p53 = scmp.ne.s32.totalorder %s42, %s45
    %p54 = scmp.eq.s32.totalorder %s14, 1
    %p55 = por %p53, %p54
    %p56 = scmp.ne.s32.totalorder %s45, %s46
    %p57 = scmp.eq.s32.totalorder %s14, 0
    %p58 = por %p56, %p57
    %p59 = scmp.ne.s32.totalorder %s45, %s46
    %p60 = scmp.eq.s32.totalorder %s15, 1
    %p61 = por %p59, %p60
    %p63 = scmp.ne.s32.totalorder %s46, %s62
    %p64 = scmp.eq.s32.totalorder %s15, 0
    %p65 = por %p63, %p64
    %s66 = ssub.s32 %s17, %s31
    %p67 = scmp.eq.s32.totalorder %s66, 0
    %s69 = sadd.s32 %s68, 1
    %s70 = scalar_select %p67, %s68, %s69
    %p73 = pneg %p67
    %p74 = scmp.eq.s32.totalorder %s9, 1
    %p75 = por %p73, %p74
    %p76 = scmp.ne.s32.totalorder %s68, %s71
    %p77 = scmp.eq.s32.totalorder %s9, 0
    %p78 = por %p76, %p77
    %p79 = scmp.ne.s32.totalorder %s68, %s71
    %p80 = scmp.eq.s32.totalorder %s14, 1
    %p81 = por %p79, %p80
    %p82 = scmp.ne.s32.totalorder %s71, %s72
    %p83 = scmp.eq.s32.totalorder %s14, 0
    %p84 = por %p82, %p83
    %p85 = scmp.ne.s32.totalorder %s71, %s72
    %p86 = scmp.eq.s32.totalorder %s15, 1
    %p87 = por %p85, %p86
    %p89 = scmp.ne.s32.totalorder %s72, %s88
    %p90 = scmp.eq.s32.totalorder %s15, 0
    %p91 = por %p89, %p90
    %s92 = ssub.s32 %s17, %s31
    %p93 = scmp.eq.s32.totalorder %s92, 0
    %s95 = sadd.s32 %s94, 1
    %s96 = scalar_select %p93, %s94, %s95
    %p99 = pneg %p93
    %p100 = scmp.eq.s32.totalorder %s9, 1
    %p101 = por %p99, %p100
    %p102 = scmp.ne.s32.totalorder %s94, %s97
    %p103 = scmp.eq.s32.totalorder %s9, 0
    %p104 = por %p102, %p103
    %p105 = scmp.ne.s32.totalorder %s94, %s97
    %p106 = scmp.eq.s32.totalorder %s14, 1
    %p107 = por %p105, %p106
    %p108 = scmp.ne.s32.totalorder %s97, %s98
    %p109 = scmp.eq.s32.totalorder %s14, 0
    %p110 = por %p108, %p109
    %p111 = scmp.ne.s32.totalorder %s97, %s98
    %p112 = scmp.eq.s32.totalorder %s15, 1
    %p113 = por %p111, %p112
    %p115 = scmp.ne.s32.totalorder %s98, %s114
    %p116 = scmp.eq.s32.totalorder %s15, 0
    %p117 = por %p115, %p116
    %s118 = ssub.s32 %s16, %s35
    %s119 = ssub.s32 %s18, %s27
    %s120 = sor.u32 %s118, %s119
    %s121 = ssub.s32 %s17, %s31
    %s122 = sor.u32 %s120, %s121
    %p123 = scmp.eq.s32.totalorder %s122, 0
    %s125 = sadd.s32 %s124, 1
    %s126 = scalar_select %p123, %s124, %s125
    %p129 = pneg %p123
    %p130 = scmp.eq.s32.totalorder %s9, 1
    %p131 = por %p129, %p130
    %p132 = scmp.ne.s32.totalorder %s124, %s127
    %p133 = scmp.eq.s32.totalorder %s9, 0
    %p134 = por %p132, %p133
    %p135 = scmp.ne.s32.totalorder %s124, %s127
    %p136 = scmp.eq.s32.totalorder %s14, 1
    %p137 = por %p135, %p136
    %p138 = scmp.ne.s32.totalorder %s127, %s128
    %p139 = scmp.eq.s32.totalorder %s14, 0
    %p140 = por %p138, %p139
    %p141 = scmp.ne.s32.totalorder %s127, %s128
    %p142 = scmp.eq.s32.totalorder %s15, 1
    %p143 = por %p141, %p142
    %p145 = scmp.ne.s32.totalorder %s128, %s144
    %p146 = scmp.eq.s32.totalorder %s15, 0
    %p147 = por %p145, %p146
    %p148 = scmp.le.s32.totalorder 1, %s9
    %p149 = scmp.lt.s32.totalorder %s9, 3
    %p150 = pnand %p148, %p149
    %p151 = pneg %p150
    // Predicated region
    $region9: #{nlayer_discriminator_forward.7} parent=5 // pred_check
      _
    $region10: #{nlayer_discriminator_forward.7} parent=5 // pred_check_branch
      %153 = sbr.rel (%p150) target = $region12
    $region11: #{nlayer_discriminator_forward.7} parent=5 // pred_region
      %s154 = ssub.s32 %s9, 1
      // Predicated region
      $region13: #{nlayer_discriminator_forward.7} parent=11 // pred_check
        %p155 = pneg %p84
      $region14: #{nlayer_discriminator_forward.7} parent=11 // pred_check_branch
        %157 = sbr.rel (%p155) target = $region16
      $region15: #{nlayer_discriminator_forward.7} parent=11 // pred_region
        %p158 = scmp.lt.s32.totalorder %s20, 0
        %s159 = scalar_select %p158, %s20, 0
        %s160 = smul.addr %s159, 44
        %s161 = smul.addr %s160, 4
        %s162 = scalar_lea.vmem %s1, %s161
      $region16: #{nlayer_discriminator_forward.7} parent=11 // pred_fallthru
        _
      // Predicated region
      $region17: #{nlayer_discriminator_forward.7} parent=11 // pred_check
        %p163 = pneg %p110
      $region18: #{nlayer_discriminator_forward.7} parent=11 // pred_check_branch
        %165 = sbr.rel (%p163) target = $region20
      $region19: #{nlayer_discriminator_forward.7} parent=11 // pred_region
        %p166 = scmp.lt.s32.totalorder %s20, 0
        %s167 = scalar_select %p166, %s20, 0
        %s168 = scalar_lea.vmem %s2, %s167
      $region20: #{nlayer_discriminator_forward.7} parent=11 // pred_fallthru
        _
    $region12: #{nlayer_discriminator_forward.7} parent=5 // pred_fallthru
      _
    %p169 = scmp.lt.s32.totalorder %s9, 2
    // Predicated region
    $region21: #{nlayer_discriminator_forward.7} parent=5 // pred_check
      %p170 = pneg %p169
    $region22: #{nlayer_discriminator_forward.7} parent=5 // pred_check_branch
      %172 = sbr.rel (%p170) target = $region24
    $region23: #{nlayer_discriminator_forward.7} parent=5 // pred_region
      // Predicated region
      $region25: #{nlayer_discriminator_forward.7} parent=23 // pred_check
        %p173 = pneg %p52
      $region26: #{nlayer_discriminator_forward.7} parent=23 // pred_check_branch
        %175 = sbr.rel (%p173) target = $region28
      $region27: #{nlayer_discriminator_forward.7} parent=23 // pred_region
        %p176 = scmp.lt.s32.totalorder %s16, 1
        %s177 = scalar_select %p176, %s16, 1
        %p178 = scmp.lt.s32.totalorder %s18, 0
        %s179 = scalar_select %p178, %s18, 0
        %p180 = scmp.lt.s32.totalorder %s17, 0
        %s181 = scalar_select %p180, %s17, 0
        %s182 = smul.addr %s179, 3
        %s183 = sadd.s32 %s181, %s182
        %s184 = smul.addr %s177, 3
        %s185 = sadd.s32 %s183, %s184
        %s186 = smul.addr %s185, 4
        %s187 = scalar_lea.vmem %s0, %s186
      $region28: #{nlayer_discriminator_forward.7} parent=23 // pred_fallthru
        _
    $region24: #{nlayer_discriminator_forward.7} parent=5 // pred_fallthru
      _
    %p188 = scmp.le.s32.totalorder 1, %s9
    %p189 = scmp.lt.s32.totalorder %s9, 3
    %p190 = pnand %p188, %p189
    %p191 = pneg %p190
    // Predicated region
    $region29: #{nlayer_discriminator_forward.7} parent=5 // pred_check
      _
    $region30: #{nlayer_discriminator_forward.7} parent=5 // pred_check_branch
      %193 = sbr.rel (%p190) target = $region32
    $region31: #{nlayer_discriminator_forward.7} parent=5 // pred_region
      %s194 = ssub.s32 %s9, 1
      %p195 = scmp.lt.s32.totalorder %s19, 1
      %s196 = scalar_select %p195, %s19, 1
      %p197 = scmp.lt.s32.totalorder %s21, 0
      %s198 = scalar_select %p197, %s21, 0
      %p199 = scmp.lt.s32.totalorder %s20, 0
      %s200 = scalar_select %p199, %s20, 0
      %s201 = smul.addr %s198, 3
      %s202 = sadd.s32 %s200, %s201
      %s203 = smul.addr %s196, 3
      %s204 = sadd.s32 %s202, %s203
      %s205 = smul.addr %s204, 4
      %s206 = scalar_lea.vmem %s0, %s205
      %p207 = pneg %p58
      %p208 = pneg %p55
      %p209 = scmp.lt.s32.totalorder %s20, 0
      %s210 = scalar_select %p209, %s20, 0
      %s211 = smul.addr %s210, 44
      %s212 = smul.addr %s211, 4
      %s213 = scalar_lea.vmem %s1, %s212
      %p214 = pneg %p84
      %p215 = pneg %p81
      %p216 = scmp.lt.s32.totalorder %s20, 0
      %s217 = scalar_select %p216, %s20, 0
      %s218 = scalar_lea.vmem %s2, %s217
      %p219 = pneg %p110
      %p220 = pneg %p107
      %p221 = pneg %p140
      %p222 = pneg %p137
      %p223 = scmp.lt.s32.totalorder %s19, 1
      %s224 = scalar_select %p223, %s19, 1
      %p225 = scmp.lt.s32.totalorder %s21, 0
      %s226 = scalar_select %p225, %s21, 0
      %p227 = scmp.lt.s32.totalorder %s20, 0
      %s228 = scalar_select %p227, %s20, 0
      %s229 = sadd.s32 %s228, %s226
      %s230 = sadd.s32 %s229, %s224
      %s231 = smul.addr %s230, 8
      %s232 = scalar_lea.vmem %s3, %s231
      %p233 = scmp.lt.s32.totalorder %s19, 1
      %s234 = scalar_select %p233, %s19, 1
      %p235 = scmp.lt.s32.totalorder %s21, 0
      %s236 = scalar_select %p235, %s21, 0
      %p237 = scmp.lt.s32.totalorder %s20, 0
      %s238 = scalar_select %p237, %s20, 0
      %s239 = smul.addr %s236, 3
      %s240 = sadd.s32 %s238, %s239
      %s241 = smul.addr %s234, 3
      %s242 = sadd.s32 %s240, %s241
      %s243 = smul.addr %s242, 4
      %s244 = scalar_lea.vmem %s0, %s243
      %p245 = scmp.lt.s32.totalorder %s20, 0
      %s246 = scalar_select %p245, %s20, 0
      %s247 = smul.addr %s246, 44
      %s248 = smul.addr %s247, 4
      %s249 = scalar_lea.vmem %s1, %s248
      %p250 = scmp.lt.s32.totalorder %s20, 0
      %s251 = scalar_select %p250, %s20, 0
      %s252 = scalar_lea.vmem %s2, %s251
      %p253 = scmp.lt.s32.totalorder %s19, 1
      %s254 = scalar_select %p253, %s19, 1
      %p255 = scmp.lt.s32.totalorder %s21, 0
      %s256 = scalar_select %p255, %s21, 0
      %p257 = scmp.lt.s32.totalorder %s20, 0
      %s258 = scalar_select %p257, %s20, 0
      %s259 = sadd.s32 %s258, %s256
      %s260 = sadd.s32 %s259, %s254
      %s261 = smul.addr %s260, 8
      %s262 = scalar_lea.vmem %s3, %s261
      %v264 = vld [vmem:[%s244] sm:$0xf]
      %v265 = vld [vmem:[%s249] sm:$0xf]
      %v266 = vld [vmem:[%s249 + $0x4] sm:$0xf]
      %v267 = vld [vmem:[%s249 + $0x8] sm:$0xf]
      %v268 = vld [vmem:[%s249 + $0xc] sm:$0xf]
      %v269 = vld [vmem:[%s244 + $0x4] sm:$0x1]
      %s270 = scalar_lea.vmem %s249, 16
      %v271 = vld [vmem:[%s270] sm:$0xf]
      %v272 = vld [vmem:[%s270 + $0x4] sm:$0xf]
      %v273 = vld [vmem:[%s270 + $0x8] sm:$0xf]
      %v274 = vld [vmem:[%s270 + $0xc] sm:$0xf]
      %v277 = vunpack.c.l.b16 %v264
      %v278 = vunpack.c.l.b16 %v269
      %v279 = vpack.c.b16 %v278, %v277
      %v281 = vshrl.u32 %v279, 16
      %v283 = vshll.u32 %v279, 16
      %v285 = vrot.slane %v283, 1
      %v286 = vor.u32 %v281, %v285
      %v291 = vunpack.c.l.b16 %v271
      %v292 = vunpack.c.l.b16 %v272
      %v293 = vunpack.c.l.b16 %v273
      %v294 = vunpack.c.l.b16 %v274
      %v295 = vpack.c.b16 %v292, %v291
      %v296 = vpack.c.b16 %v294, %v293
      %vm299 = vcmask 261120
      %v301 = vsel %vm299, %v286, 0
      %303 = vmatpush.bf16.msra.mxu0 0
      %304 = vmatpush.bf16.msra.mxu0 0
      %305 = vmatpush.bf16.msra.mxu0 0
      %306 = vmatpush.bf16.msra.mxu0 0
      %307 = vmatpush.bf16.msra.mxu0 0
      %308 = vmatpush.bf16.msra.mxu0 0
      %309 = vmatpush.bf16.msra.mxu0 %v296
      %310 = vmatpush.bf16.msra.mxu0 %v295
      %311 = vmatmul.bf16.gmra.mxu0 %v301
      %v312 = vpop.f32.mrf.mxu0
      %v313 = vadd.f32 0.0, %v312
      %v314 = vpop.f32.mrf.mxu0
      %315 = vdwg.mxu0
      %v320 = vunpack.c.l.b16 %v265
      %v321 = vunpack.c.l.b16 %v266
      %v322 = vunpack.c.l.b16 %v267
      %v323 = vunpack.c.l.b16 %v268
      %v324 = vpack.c.b16 %v321, %v320
      %v325 = vpack.c.b16 %v323, %v322
      %v329 = vsel %vm299, %v264, 0
      %331 = vmatpush.bf16.msra.mxu0 0
      %332 = vmatpush.bf16.msra.mxu0 0
      %333 = vmatpush.bf16.msra.mxu0 0
      %334 = vmatpush.bf16.msra.mxu0 0
      %335 = vmatpush.bf16.msra.mxu0 0
      %336 = vmatpush.bf16.msra.mxu0 0
      %337 = vmatpush.bf16.msra.mxu0 %v325
      %338 = vmatpush.bf16.msra.mxu0 %v324
      %339 = vmatmul.bf16.gmra.mxu0 %v329
      %v340 = vpop.f32.mrf.mxu0
      %v341 = vadd.f32 %v313, %v340
      %v342 = vpop.f32.mrf.mxu0
      %343 = vdwg.mxu0
      %v344 = vld [vmem:[%s244] sm:$0xe]
      %s345 = scalar_lea.vmem %s249, 32
      %v346 = vld [vmem:[%s345] sm:$0xf]
      %v347 = vld [vmem:[%s345 + $0x4] sm:$0xf]
      %v348 = vld [vmem:[%s345 + $0x8] sm:$0xf]
      %v349 = vld [vmem:[%s345 + $0xc] sm:$0xf]
      %v351 = vunpack.c.l.b16 %v344
      %v352 = vpack.c.b16 %v278, %v351
      %v353 = vrot.slane %v352, 1
      %v358 = vunpack.c.l.b16 %v346
      %v359 = vunpack.c.l.b16 %v347
      %v360 = vunpack.c.l.b16 %v348
      %v361 = vunpack.c.l.b16 %v349
      %v362 = vpack.c.b16 %v359, %v358
      %v363 = vpack.c.b16 %v361, %v360
      %v367 = vsel %vm299, %v353, 0
      %369 = vmatpush.bf16.msra.mxu0 0
      %370 = vmatpush.bf16.msra.mxu0 0
      %371 = vmatpush.bf16.msra.mxu0 0
      %372 = vmatpush.bf16.msra.mxu0 0
      %373 = vmatpush.bf16.msra.mxu0 0
      %374 = vmatpush.bf16.msra.mxu0 0
      %375 = vmatpush.bf16.msra.mxu0 %v363
      %376 = vmatpush.bf16.msra.mxu0 %v362
      %377 = vmatmul.bf16.gmra.mxu0 %v367
      %v378 = vpop.f32.mrf.mxu0
      %v379 = vadd.f32 0.0, %v378
      %v380 = vpop.f32.mrf.mxu0
      %381 = vdwg.mxu0
      %v382 = vadd.f32 %v341, %v379
      %v383 = vld [vmem:[%s244 + $0x4] sm:$0x3]
      %s384 = scalar_lea.vmem %s249, 48
      %v385 = vld [vmem:[%s384] sm:$0xf]
      %v386 = vld [vmem:[%s384 + $0x4] sm:$0xf]
      %v387 = vld [vmem:[%s384 + $0x8] sm:$0xf]
      %v388 = vld [vmem:[%s384 + $0xc] sm:$0xf]
      %v390 = vunpack.c.l.b16 %v383
      %v391 = vpack.c.b16 %v390, %v351
      %v393 = vshrl.u32 %v391, 16
      %v395 = vrot.slane %v393, 1
      %v396 = vshll.u32 %v391, 16
      %v398 = vrot.slane %v396, 2
      %v399 = vor.u32 %v395, %v398
      %v404 = vunpack.c.l.b16 %v385
      %v405 = vunpack.c.l.b16 %v386
      %v406 = vunpack.c.l.b16 %v387
      %v407 = vunpack.c.l.b16 %v388
      %v408 = vpack.c.b16 %v405, %v404
      %v409 = vpack.c.b16 %v407, %v406
      %v413 = vsel %vm299, %v399, 0
      %415 = vmatpush.bf16.msra.mxu0 0
      %416 = vmatpush.bf16.msra.mxu0 0
      %417 = vmatpush.bf16.msra.mxu0 0
      %418 = vmatpush.bf16.msra.mxu0 0
      %419 = vmatpush.bf16.msra.mxu0 0
      %420 = vmatpush.bf16.msra.mxu0 0
      %421 = vmatpush.bf16.msra.mxu0 %v409
      %422 = vmatpush.bf16.msra.mxu0 %v408
      %423 = vmatmul.bf16.gmra.mxu0 %v413
      %v424 = vpop.f32.mrf.mxu0
      %v425 = vadd.f32 0.0, %v424
      %v426 = vpop.f32.mrf.mxu0
      %427 = vdwg.mxu0
      %v428 = vadd.f32 %v382, %v425
      %v429 = vld [vmem:[%s244] sm:$0xc]
      %s430 = scalar_lea.vmem %s249, 64
      %v431 = vld [vmem:[%s430] sm:$0xf]
      %v432 = vld [vmem:[%s430 + $0x4] sm:$0xf]
      %v433 = vld [vmem:[%s430 + $0x8] sm:$0xf]
      %v434 = vld [vmem:[%s430 + $0xc] sm:$0xf]
      %v436 = vunpack.c.l.b16 %v429
      %v437 = vpack.c.b16 %v390, %v436
      %v438 = vrot.slane %v437, 2
      %v443 = vunpack.c.l.b16 %v431
      %v444 = vunpack.c.l.b16 %v432
      %v445 = vunpack.c.l.b16 %v433
      %v446 = vunpack.c.l.b16 %v434
      %v447 = vpack.c.b16 %v444, %v443
      %v448 = vpack.c.b16 %v446, %v445
      %v452 = vsel %vm299, %v438, 0
      %454 = vmatpush.bf16.msra.mxu0 0
      %455 = vmatpush.bf16.msra.mxu0 0
      %456 = vmatpush.bf16.msra.mxu0 0
      %457 = vmatpush.bf16.msra.mxu0 0
      %458 = vmatpush.bf16.msra.mxu0 0
      %459 = vmatpush.bf16.msra.mxu0 0
      %460 = vmatpush.bf16.msra.mxu0 %v448
      %461 = vmatpush.bf16.msra.mxu0 %v447
      %462 = vmatmul.bf16.gmra.mxu0 %v452
      %v463 = vpop.f32.mrf.mxu0
      %v464 = vadd.f32 0.0, %v463
      %v465 = vpop.f32.mrf.mxu0
      %466 = vdwg.mxu0
      %v467 = vadd.f32 %v428, %v464
      %v468 = vld [vmem:[%s244 + $0x4] sm:$0x7]
      %s469 = scalar_lea.vmem %s249, 80
      %v470 = vld [vmem:[%s469] sm:$0xf]
      %v471 = vld [vmem:[%s469 + $0x4] sm:$0xf]
      %v472 = vld [vmem:[%s469 + $0x8] sm:$0xf]
      %v473 = vld [vmem:[%s469 + $0xc] sm:$0xf]
      %v475 = vunpack.c.l.b16 %v468
      %v476 = vpack.c.b16 %v475, %v436
      %v478 = vshrl.u32 %v476, 16
      %v480 = vrot.slane %v478, 2
      %v481 = vshll.u32 %v476, 16
      %v483 = vrot.slane %v481, 3
      %v484 = vor.u32 %v480, %v483
      %v489 = vunpack.c.l.b16 %v470
      %v490 = vunpack.c.l.b16 %v471
      %v491 = vunpack.c.l.b16 %v472
      %v492 = vunpack.c.l.b16 %v473
      %v493 = vpack.c.b16 %v490, %v489
      %v494 = vpack.c.b16 %v492, %v491
      %v498 = vsel %vm299, %v484, 0
      %500 = vmatpush.bf16.msra.mxu0 0
      %501 = vmatpush.bf16.msra.mxu0 0
      %502 = vmatpush.bf16.msra.mxu0 0
      %503 = vmatpush.bf16.msra.mxu0 0
      %504 = vmatpush.bf16.msra.mxu0 0
      %505 = vmatpush.bf16.msra.mxu0 0
      %506 = vmatpush.bf16.msra.mxu0 %v494
      %507 = vmatpush.bf16.msra.mxu0 %v493
      %508 = vmatmul.bf16.gmra.mxu0 %v498
      %v509 = vpop.f32.mrf.mxu0
      %v510 = vadd.f32 0.0, %v509
      %v511 = vpop.f32.mrf.mxu0
      %512 = vdwg.mxu0
      %v513 = vadd.f32 %v467, %v510
      %v514 = vld [vmem:[%s244] sm:$0x8]
      %s515 = scalar_lea.vmem %s249, 96
      %v516 = vld [vmem:[%s515] sm:$0xf]
      %v517 = vld [vmem:[%s515 + $0x4] sm:$0xf]
      %v518 = vld [vmem:[%s515 + $0x8] sm:$0xf]
      %v519 = vld [vmem:[%s515 + $0xc] sm:$0xf]
      %v521 = vunpack.c.l.b16 %v514
      %v522 = vpack.c.b16 %v475, %v521
      %v523 = vrot.slane %v522, 3
      %v528 = vunpack.c.l.b16 %v516
      %v529 = vunpack.c.l.b16 %v517
      %v530 = vunpack.c.l.b16 %v518
      %v531 = vunpack.c.l.b16 %v519
      %v532 = vpack.c.b16 %v529, %v528
      %v533 = vpack.c.b16 %v531, %v530
      %v537 = vsel %vm299, %v523, 0
      %539 = vmatpush.bf16.msra.mxu0 0
      %540 = vmatpush.bf16.msra.mxu0 0
      %541 = vmatpush.bf16.msra.mxu0 0
      %542 = vmatpush.bf16.msra.mxu0 0
      %543 = vmatpush.bf16.msra.mxu0 0
      %544 = vmatpush.bf16.msra.mxu0 0
      %545 = vmatpush.bf16.msra.mxu0 %v533
      %546 = vmatpush.bf16.msra.mxu0 %v532
      %547 = vmatmul.bf16.gmra.mxu0 %v537
      %v548 = vpop.f32.mrf.mxu0
      %v549 = vadd.f32 0.0, %v548
      %v550 = vpop.f32.mrf.mxu0
      %551 = vdwg.mxu0
      %v552 = vadd.f32 %v513, %v549
      %v553 = vld [vmem:[%s244 + $0x4] sm:$0xf]
      %s554 = scalar_lea.vmem %s249, 112
      %v555 = vld [vmem:[%s554] sm:$0xf]
      %v556 = vld [vmem:[%s554 + $0x4] sm:$0xf]
      %v557 = vld [vmem:[%s554 + $0x8] sm:$0xf]
      %v558 = vld [vmem:[%s554 + $0xc] sm:$0xf]
      %v560 = vunpack.c.l.b16 %v553
      %v561 = vpack.c.b16 %v560, %v521
      %v563 = vshrl.u32 %v561, 16
      %v565 = vrot.slane %v563, 3
      %v566 = vshll.u32 %v561, 16
      %v568 = vrot.slane %v566, 4
      %v569 = vor.u32 %v565, %v568
      %v574 = vunpack.c.l.b16 %v555
      %v575 = vunpack.c.l.b16 %v556
      %v576 = vunpack.c.l.b16 %v557
      %v577 = vunpack.c.l.b16 %v558
      %v578 = vpack.c.b16 %v575, %v574
      %v579 = vpack.c.b16 %v577, %v576
      %v583 = vsel %vm299, %v569, 0
      %585 = vmatpush.bf16.msra.mxu0 0
      %586 = vmatpush.bf16.msra.mxu0 0
      %587 = vmatpush.bf16.msra.mxu0 0
      %588 = vmatpush.bf16.msra.mxu0 0
      %589 = vmatpush.bf16.msra.mxu0 0
      %590 = vmatpush.bf16.msra.mxu0 0
      %591 = vmatpush.bf16.msra.mxu0 %v579
      %592 = vmatpush.bf16.msra.mxu0 %v578
      %593 = vmatmul.bf16.gmra.mxu0 %v583
      %v594 = vpop.f32.mrf.mxu0
      %v595 = vadd.f32 0.0, %v594
      %v596 = vpop.f32.mrf.mxu0
      %597 = vdwg.mxu0
      %v598 = vadd.f32 %v552, %v595
      %s599 = scalar_lea.vmem %s249, 128
      %v600 = vld [vmem:[%s599] sm:$0xf]
      %v601 = vld [vmem:[%s599 + $0x4] sm:$0xf]
      %v602 = vld [vmem:[%s599 + $0x8] sm:$0xf]
      %v603 = vld [vmem:[%s599 + $0xc] sm:$0xf]
      %v608 = vunpack.c.l.b16 %v600
      %v609 = vunpack.c.l.b16 %v601
      %v610 = vunpack.c.l.b16 %v602
      %v611 = vunpack.c.l.b16 %v603
      %v612 = vpack.c.b16 %v609, %v608
      %v613 = vpack.c.b16 %v611, %v610
      %v617 = vsel %vm299, %v553, 0
      %619 = vmatpush.bf16.msra.mxu0 0
      %620 = vmatpush.bf16.msra.mxu0 0
      %621 = vmatpush.bf16.msra.mxu0 0
      %622 = vmatpush.bf16.msra.mxu0 0
      %623 = vmatpush.bf16.msra.mxu0 0
      %624 = vmatpush.bf16.msra.mxu0 0
      %625 = vmatpush.bf16.msra.mxu0 %v613
      %626 = vmatpush.bf16.msra.mxu0 %v612
      %627 = vmatmul.bf16.gmra.mxu0 %v617
      %v628 = vpop.f32.mrf.mxu0
      %v629 = vadd.f32 0.0, %v628
      %v630 = vpop.f32.mrf.mxu0
      %631 = vdwg.mxu0
      %v632 = vadd.f32 %v598, %v629
      %v633 = vld [vmem:[%s244 + $0x4] sm:$0xf]
      %v634 = vld [vmem:[%s244 + $0x8] sm:$0x1]
      %s635 = scalar_lea.vmem %s249, 144
      %v636 = vld [vmem:[%s635] sm:$0xf]
      %v637 = vld [vmem:[%s635 + $0x4] sm:$0xf]
      %v638 = vld [vmem:[%s635 + $0x8] sm:$0xf]
      %v639 = vld [vmem:[%s635 + $0xc] sm:$0xf]
      %v642 = vunpack.c.l.b16 %v633
      %v643 = vunpack.c.l.b16 %v634
      %v644 = vpack.c.b16 %v643, %v642
      %v646 = vshrl.u32 %v644, 16
      %v648 = vshll.u32 %v644, 16
      %v650 = vrot.slane %v648, 1
      %v651 = vor.u32 %v646, %v650
      %v656 = vunpack.c.l.b16 %v636
      %v657 = vunpack.c.l.b16 %v637
      %v658 = vunpack.c.l.b16 %v638
      %v659 = vunpack.c.l.b16 %v639
      %v660 = vpack.c.b16 %v657, %v656
      %v661 = vpack.c.b16 %v659, %v658
      %v665 = vsel %vm299, %v651, 0
      %667 = vmatpush.bf16.msra.mxu0 0
      %668 = vmatpush.bf16.msra.mxu0 0
      %669 = vmatpush.bf16.msra.mxu0 0
      %670 = vmatpush.bf16.msra.mxu0 0
      %671 = vmatpush.bf16.msra.mxu0 0
      %672 = vmatpush.bf16.msra.mxu0 0
      %673 = vmatpush.bf16.msra.mxu0 %v661
      %674 = vmatpush.bf16.msra.mxu0 %v660
      %675 = vmatmul.bf16.gmra.mxu0 %v665
      %v676 = vpop.f32.mrf.mxu0
      %v677 = vadd.f32 0.0, %v676
      %v678 = vpop.f32.mrf.mxu0
      %679 = vdwg.mxu0
      %v680 = vadd.f32 %v632, %v677
      %v681 = vld [vmem:[%s244 + $0x4] sm:$0xe]
      %s682 = scalar_lea.vmem %s249, 160
      %v683 = vld [vmem:[%s682] sm:$0xf]
      %v684 = vld [vmem:[%s682 + $0x4] sm:$0xf]
      %v685 = vld [vmem:[%s682 + $0x8] sm:$0xf]
      %v686 = vld [vmem:[%s682 + $0xc] sm:$0xf]
      %v688 = vunpack.c.l.b16 %v681
      %v689 = vpack.c.b16 %v643, %v688
      %v690 = vrot.slane %v689, 1
      %v695 = vunpack.c.l.b16 %v683
      %v696 = vunpack.c.l.b16 %v684
      %v697 = vunpack.c.l.b16 %v685
      %v698 = vunpack.c.l.b16 %v686
      %v699 = vpack.c.b16 %v696, %v695
      %v700 = vpack.c.b16 %v698, %v697
      %v704 = vsel %vm299, %v690, 0
      %706 = vmatpush.bf16.msra.mxu0 0
      %707 = vmatpush.bf16.msra.mxu0 0
      %708 = vmatpush.bf16.msra.mxu0 0
      %709 = vmatpush.bf16.msra.mxu0 0
      %710 = vmatpush.bf16.msra.mxu0 0
      %711 = vmatpush.bf16.msra.mxu0 0
      %712 = vmatpush.bf16.msra.mxu0 %v700
      %713 = vmatpush.bf16.msra.mxu0 %v699
      %714 = vmatmul.bf16.gmra.mxu0 %v704
      %v715 = vpop.f32.mrf.mxu0
      %v716 = vadd.f32 0.0, %v715
      %v717 = vpop.f32.mrf.mxu0
      %718 = vdwg.mxu0
      %v719 = vadd.f32 %v680, %v716
      %v720 = vld [vmem:[%s252] sm:$0x1]
      %v722 = vperm.slane %v720, 0
      %v724 = vadd.f32 %v719, %v722
      %vm725 = vcmp.gt.f32.partialorder %v724, 0.0
      %v726 = vmul.f32 %v724, 0.2
      %v727 = vsel %vm725, %v724, %v726
      %vm728 = vcmask 130048
      %729 = vst.msk [vmem:[%s262] sm:$0xff] %vm728, %v727
      %p730 = scmp.lt.s32.totalorder %s19, 1
      %s731 = scalar_select %p730, %s19, 1
      %p732 = scmp.lt.s32.totalorder %s21, 0
      %s733 = scalar_select %p732, %s21, 0
      %p734 = scmp.lt.s32.totalorder %s20, 0
      %s735 = scalar_select %p734, %s20, 0
      %s736 = sadd.s32 %s735, %s733
      %s737 = sadd.s32 %s736, %s731
      %s738 = smul.addr %s737, 8
      %s739 = scalar_lea.vmem %s3, %s738
      // Predicated region
      $region33: #{nlayer_discriminator_forward.7} parent=31 // pred_check
        %p740 = pneg %p137
      $region34: #{nlayer_discriminator_forward.7} parent=31 // pred_check_branch
        %742 = sbr.rel (%p740) target = $region36
      $region35: #{nlayer_discriminator_forward.7} parent=31 // pred_region
        _
      $region36: #{nlayer_discriminator_forward.7} parent=31 // pred_fallthru
        _
    $region32: #{nlayer_discriminator_forward.7} parent=5 // pred_fallthru
      _
    %p743 = scmp.le.s32.totalorder 2, %s9
    // Predicated region
    $region37: #{nlayer_discriminator_forward.7} parent=5 // pred_check
      %p744 = pneg %p743
    $region38: #{nlayer_discriminator_forward.7} parent=5 // pred_check_branch
      %746 = sbr.rel (%p744) target = $region40
    $region39: #{nlayer_discriminator_forward.7} parent=5 // pred_region
      %s747 = ssub.s32 %s9, 2
      // Predicated region
      $region41: #{nlayer_discriminator_forward.7} parent=39 // pred_check
        %p748 = pneg %p143
      $region42: #{nlayer_discriminator_forward.7} parent=39 // pred_check_branch
        %750 = sbr.rel (%p748) target = $region44
      $region43: #{nlayer_discriminator_forward.7} parent=39 // pred_region
        %p751 = scmp.lt.s32.totalorder %s22, 1
        %s752 = scalar_select %p751, %s22, 1
        %p753 = scmp.lt.s32.totalorder %s24, 0
        %s754 = scalar_select %p753, %s24, 0
        %p755 = scmp.lt.s32.totalorder %s23, 0
        %s756 = scalar_select %p755, %s23, 0
        %s757 = sadd.s32 %s756, %s754
        %s758 = sadd.s32 %s757, %s752
        %s759 = smul.addr %s758, 8
        %s760 = scalar_lea.vmem %s3, %s759
      $region44: #{nlayer_discriminator_forward.7} parent=39 // pred_fallthru
        _
    $region40: #{nlayer_discriminator_forward.7} parent=5 // pred_fallthru
      _
  $region6: #{nlayer_discriminator_forward.7} parent=0 // loop_footer
    %s13 = sadd.s32 1, %s9
  $region7: #{nlayer_discriminator_forward.7} parent=0 // loop_footer_branch
    %8 = sbr.rel target = $region3
  $region8: #{nlayer_discriminator_forward.7} parent=0 // loop_exit
    _

// kernel: nlayer_discriminator_forward.8
$region0: #{nlayer_discriminator_forward.8}
  #allocation0 [shape = 'u32[]', space=smem, size = 0x4, offset = 0x4, fixed_abs, tag = 'smem constant byte address 0x4 - core index']
  #allocation1 [shape = 'u32[72,128]{1,0:T(1,128)}', space=vmem, size = 0x9000, scoped, tag = 'internal scratch']
  %s0 = inlined_call_operand.vmem [shape: bf16[2,1,12,16], index: 0, kind: input, shape index: {}]
  %s1 = inlined_call_operand.vmem [shape: bf16[1,5,16,16], index: 1, kind: input, shape index: {}]
  %s2 = inlined_call_operand.vmem [shape: f32[1,1,16], index: 2, kind: input, shape index: {}]
  %s3 = inlined_call_operand.vmem [shape: f32[2,1,8,16], index: 3, kind: output, shape index: {}]
  %s4 = sld [smem:[#allocation0]]
  $region45: #{nlayer_discriminator_forward.8} parent=0
    _
  %s6 = ssub.s32 1, %s4
  %s7 = scalar_select 0, %s6, %s4
  loop: start=0, step=1, limit=4
  $region2: #{nlayer_discriminator_forward.8} parent=0 // loop_pre_header
    _
  $region3: #{nlayer_discriminator_forward.8} parent=0 // loop_header
    %s9 = sphi 0, %s13
    %p10 = scmp.ge.s32.totalorder %s9, 4
    %s16 = sphi 0, %s35
    %s17 = sphi 0, %s31
    %s18 = sphi 0, %s27
    %s19 = sphi 0, %s16
    %s20 = sphi 0, %s17
    %s21 = sphi 0, %s18
    %s22 = sphi 0, %s19
    %s23 = sphi 0, %s20
    %s24 = sphi 0, %s21
    %s42 = sphi 0, %s44
    %s45 = sphi 0, %s42
    %s46 = sphi 0, %s45
    %s62 = sphi 0, %s46
    %s68 = sphi 0, %s70
    %s71 = sphi 0, %s68
    %s72 = sphi 0, %s71
    %s88 = sphi 0, %s72
    %s94 = sphi 0, %s96
    %s97 = sphi 0, %s94
    %s98 = sphi 0, %s97
    %s114 = sphi 0, %s98
    %s124 = sphi 0, %s126
    %s127 = sphi 0, %s124
    %s128 = sphi 0, %s127
    %s144 = sphi 0, %s128
  $region4: #{nlayer_discriminator_forward.8} parent=0 // loop_header_branch
    %12 = sbr.rel (%p10) target = $region8
  $region5: #{nlayer_discriminator_forward.8} parent=0 // loop_body
    %s14 = ssub.s32 %s9, 1
    %s15 = ssub.s32 %s9, 2
    %s25 = sadd.s32 1, %s18
    %p26 = scmp.ge.s32.totalorder %s25, 1
    %s27 = scalar_select %p26, 0, %s25
    %s28 = sadd.s32 1, %s17
    %s29 = scalar_select %p26, %s28, %s17
    %p30 = scmp.ge.s32.totalorder %s29, 1
    %s31 = scalar_select %p30, 0, %s29
    %s32 = sadd.s32 1, %s16
    %s33 = scalar_select %p30, %s32, %s16
    %p34 = scmp.ge.s32.totalorder %s33, 2
    %s35 = scalar_select %p34, 0, %s33
    %s36 = ssub.s32 %s16, %s35
    %s37 = ssub.s32 %s18, %s27
    %s38 = sor.u32 %s36, %s37
    %s39 = ssub.s32 %s17, %s31
    %s40 = sor.u32 %s38, %s39
    %p41 = scmp.eq.s32.totalorder %s40, 0
    %s43 = sadd.s32 %s42, 1
    %s44 = scalar_select %p41, %s42, %s43
    %p47 = pneg %p41
    %p48 = scmp.eq.s32.totalorder %s9, 1
    %p49 = por %p47, %p48
    %p50 = scmp.ne.s32.totalorder %s42, %s45
    %p51 = scmp.eq.s32.totalorder %s9, 0
    %p52 = por %p50, %p51
    %p53 = scmp.ne.s32.totalorder %s42, %s45
    %p54 = scmp.eq.s32.totalorder %s14, 1
    %p55 = por %p53, %p54
    %p56 = scmp.ne.s32.totalorder %s45, %s46
    %p57 = scmp.eq.s32.totalorder %s14, 0
    %p58 = por %p56, %p57
    %p59 = scmp.ne.s32.totalorder %s45, %s46
    %p60 = scmp.eq.s32.totalorder %s15, 1
    %p61 = por %p59, %p60
    %p63 = scmp.ne.s32.totalorder %s46, %s62
    %p64 = scmp.eq.s32.totalorder %s15, 0
    %p65 = por %p63, %p64
    %s66 = ssub.s32 %s17, %s31
    %p67 = scmp.eq.s32.totalorder %s66, 0
    %s69 = sadd.s32 %s68, 1
    %s70 = scalar_select %p67, %s68, %s69
    %p73 = pneg %p67
    %p74 = scmp.eq.s32.totalorder %s9, 1
    %p75 = por %p73, %p74
    %p76 = scmp.ne.s32.totalorder %s68, %s71
    %p77 = scmp.eq.s32.totalorder %s9, 0
    %p78 = por %p76, %p77
    %p79 = scmp.ne.s32.totalorder %s68, %s71
    %p80 = scmp.eq.s32.totalorder %s14, 1
    %p81 = por %p79, %p80
    %p82 = scmp.ne.s32.totalorder %s71, %s72
    %p83 = scmp.eq.s32.totalorder %s14, 0
    %p84 = por %p82, %p83
    %p85 = scmp.ne.s32.totalorder %s71, %s72
    %p86 = scmp.eq.s32.totalorder %s15, 1
    %p87 = por %p85, %p86
    %p89 = scmp.ne.s32.totalorder %s72, %s88
    %p90 = scmp.eq.s32.totalorder %s15, 0
    %p91 = por %p89, %p90
    %s92 = ssub.s32 %s17, %s31
    %p93 = scmp.eq.s32.totalorder %s92, 0
    %s95 = sadd.s32 %s94, 1
    %s96 = scalar_select %p93, %s94, %s95
    %p99 = pneg %p93
    %p100 = scmp.eq.s32.totalorder %s9, 1
    %p101 = por %p99, %p100
    %p102 = scmp.ne.s32.totalorder %s94, %s97
    %p103 = scmp.eq.s32.totalorder %s9, 0
    %p104 = por %p102, %p103
    %p105 = scmp.ne.s32.totalorder %s94, %s97
    %p106 = scmp.eq.s32.totalorder %s14, 1
    %p107 = por %p105, %p106
    %p108 = scmp.ne.s32.totalorder %s97, %s98
    %p109 = scmp.eq.s32.totalorder %s14, 0
    %p110 = por %p108, %p109
    %p111 = scmp.ne.s32.totalorder %s97, %s98
    %p112 = scmp.eq.s32.totalorder %s15, 1
    %p113 = por %p111, %p112
    %p115 = scmp.ne.s32.totalorder %s98, %s114
    %p116 = scmp.eq.s32.totalorder %s15, 0
    %p117 = por %p115, %p116
    %s118 = ssub.s32 %s16, %s35
    %s119 = ssub.s32 %s18, %s27
    %s120 = sor.u32 %s118, %s119
    %s121 = ssub.s32 %s17, %s31
    %s122 = sor.u32 %s120, %s121
    %p123 = scmp.eq.s32.totalorder %s122, 0
    %s125 = sadd.s32 %s124, 1
    %s126 = scalar_select %p123, %s124, %s125
    %p129 = pneg %p123
    %p130 = scmp.eq.s32.totalorder %s9, 1
    %p131 = por %p129, %p130
    %p132 = scmp.ne.s32.totalorder %s124, %s127
    %p133 = scmp.eq.s32.totalorder %s9, 0
    %p134 = por %p132, %p133
    %p135 = scmp.ne.s32.totalorder %s124, %s127
    %p136 = scmp.eq.s32.totalorder %s14, 1
    %p137 = por %p135, %p136
    %p138 = scmp.ne.s32.totalorder %s127, %s128
    %p139 = scmp.eq.s32.totalorder %s14, 0
    %p140 = por %p138, %p139
    %p141 = scmp.ne.s32.totalorder %s127, %s128
    %p142 = scmp.eq.s32.totalorder %s15, 1
    %p143 = por %p141, %p142
    %p145 = scmp.ne.s32.totalorder %s128, %s144
    %p146 = scmp.eq.s32.totalorder %s15, 0
    %p147 = por %p145, %p146
    %p148 = scmp.le.s32.totalorder 1, %s9
    %p149 = scmp.lt.s32.totalorder %s9, 3
    %p150 = pnand %p148, %p149
    %p151 = pneg %p150
    // Predicated region
    $region9: #{nlayer_discriminator_forward.8} parent=5 // pred_check
      _
    $region10: #{nlayer_discriminator_forward.8} parent=5 // pred_check_branch
      %153 = sbr.rel (%p150) target = $region12
    $region11: #{nlayer_discriminator_forward.8} parent=5 // pred_region
      %s154 = ssub.s32 %s9, 1
      // Predicated region
      $region13: #{nlayer_discriminator_forward.8} parent=11 // pred_check
        %p155 = pneg %p84
      $region14: #{nlayer_discriminator_forward.8} parent=11 // pred_check_branch
        %157 = sbr.rel (%p155) target = $region16
      $region15: #{nlayer_discriminator_forward.8} parent=11 // pred_region
        %p158 = scmp.lt.s32.totalorder %s20, 0
        %s159 = scalar_select %p158, %s20, 0
        %s160 = smul.addr %s159, 10
        %s161 = smul.addr %s160, 4
        %s162 = scalar_lea.vmem %s1, %s161
      $region16: #{nlayer_discriminator_forward.8} parent=11 // pred_fallthru
        _
      // Predicated region
      $region17: #{nlayer_discriminator_forward.8} parent=11 // pred_check
        %p163 = pneg %p110
      $region18: #{nlayer_discriminator_forward.8} parent=11 // pred_check_branch
        %165 = sbr.rel (%p163) target = $region20
      $region19: #{nlayer_discriminator_forward.8} parent=11 // pred_region
        %p166 = scmp.lt.s32.totalorder %s20, 0
        %s167 = scalar_select %p166, %s20, 0
        %s168 = scalar_lea.vmem %s2, %s167
      $region20: #{nlayer_discriminator_forward.8} parent=11 // pred_fallthru
        _
    $region12: #{nlayer_discriminator_forward.8} parent=5 // pred_fallthru
      _
    %p169 = scmp.lt.s32.totalorder %s9, 2
    // Predicated region
    $region21: #{nlayer_discriminator_forward.8} parent=5 // pred_check
      %p170 = pneg %p169
    $region22: #{nlayer_discriminator_forward.8} parent=5 // pred_check_branch
      %172 = sbr.rel (%p170) target = $region24
    $region23: #{nlayer_discriminator_forward.8} parent=5 // pred_region
      // Predicated region
      $region25: #{nlayer_discriminator_forward.8} parent=23 // pred_check
        %p173 = pneg %p52
      $region26: #{nlayer_discriminator_forward.8} parent=23 // pred_check_branch
        %175 = sbr.rel (%p173) target = $region28
      $region27: #{nlayer_discriminator_forward.8} parent=23 // pred_region
        %p176 = scmp.lt.s32.totalorder %s16, 1
        %s177 = scalar_select %p176, %s16, 1
        %p178 = scmp.lt.s32.totalorder %s18, 0
        %s179 = scalar_select %p178, %s18, 0
        %p180 = scmp.lt.s32.totalorder %s17, 0
        %s181 = scalar_select %p180, %s17, 0
        %s182 = smul.addr %s179, 2
        %s183 = sadd.s32 %s181, %s182
        %s184 = smul.addr %s177, 2
        %s185 = sadd.s32 %s183, %s184
        %s186 = smul.addr %s185, 4
        %s187 = scalar_lea.vmem %s0, %s186
      $region28: #{nlayer_discriminator_forward.8} parent=23 // pred_fallthru
        _
    $region24: #{nlayer_discriminator_forward.8} parent=5 // pred_fallthru
      _
    %p188 = scmp.le.s32.totalorder 1, %s9
    %p189 = scmp.lt.s32.totalorder %s9, 3
    %p190 = pnand %p188, %p189
    %p191 = pneg %p190
    // Predicated region
    $region29: #{nlayer_discriminator_forward.8} parent=5 // pred_check
      _
    $region30: #{nlayer_discriminator_forward.8} parent=5 // pred_check_branch
      %193 = sbr.rel (%p190) target = $region32
    $region31: #{nlayer_discriminator_forward.8} parent=5 // pred_region
      %s194 = ssub.s32 %s9, 1
      %p195 = scmp.lt.s32.totalorder %s19, 1
      %s196 = scalar_select %p195, %s19, 1
      %p197 = scmp.lt.s32.totalorder %s21, 0
      %s198 = scalar_select %p197, %s21, 0
      %p199 = scmp.lt.s32.totalorder %s20, 0
      %s200 = scalar_select %p199, %s20, 0
      %s201 = smul.addr %s198, 2
      %s202 = sadd.s32 %s200, %s201
      %s203 = smul.addr %s196, 2
      %s204 = sadd.s32 %s202, %s203
      %s205 = smul.addr %s204, 4
      %s206 = scalar_lea.vmem %s0, %s205
      %p207 = pneg %p58
      %p208 = pneg %p55
      %p209 = scmp.lt.s32.totalorder %s20, 0
      %s210 = scalar_select %p209, %s20, 0
      %s211 = smul.addr %s210, 10
      %s212 = smul.addr %s211, 4
      %s213 = scalar_lea.vmem %s1, %s212
      %p214 = pneg %p84
      %p215 = pneg %p81
      %p216 = scmp.lt.s32.totalorder %s20, 0
      %s217 = scalar_select %p216, %s20, 0
      %s218 = scalar_lea.vmem %s2, %s217
      %p219 = pneg %p110
      %p220 = pneg %p107
      %p221 = pneg %p140
      %p222 = pneg %p137
      %p223 = scmp.lt.s32.totalorder %s19, 1
      %s224 = scalar_select %p223, %s19, 1
      %p225 = scmp.lt.s32.totalorder %s21, 0
      %s226 = scalar_select %p225, %s21, 0
      %p227 = scmp.lt.s32.totalorder %s20, 0
      %s228 = scalar_select %p227, %s20, 0
      %s229 = sadd.s32 %s228, %s226
      %s230 = sadd.s32 %s229, %s224
      %s231 = smul.addr %s230, 8
      %s232 = scalar_lea.vmem %s3, %s231
      %p233 = scmp.lt.s32.totalorder %s19, 1
      %s234 = scalar_select %p233, %s19, 1
      %p235 = scmp.lt.s32.totalorder %s21, 0
      %s236 = scalar_select %p235, %s21, 0
      %p237 = scmp.lt.s32.totalorder %s20, 0
      %s238 = scalar_select %p237, %s20, 0
      %s239 = smul.addr %s236, 2
      %s240 = sadd.s32 %s238, %s239
      %s241 = smul.addr %s234, 2
      %s242 = sadd.s32 %s240, %s241
      %s243 = smul.addr %s242, 4
      %s244 = scalar_lea.vmem %s0, %s243
      %p245 = scmp.lt.s32.totalorder %s20, 0
      %s246 = scalar_select %p245, %s20, 0
      %s247 = smul.addr %s246, 10
      %s248 = smul.addr %s247, 4
      %s249 = scalar_lea.vmem %s1, %s248
      %p250 = scmp.lt.s32.totalorder %s20, 0
      %s251 = scalar_select %p250, %s20, 0
      %s252 = scalar_lea.vmem %s2, %s251
      %p253 = scmp.lt.s32.totalorder %s19, 1
      %s254 = scalar_select %p253, %s19, 1
      %p255 = scmp.lt.s32.totalorder %s21, 0
      %s256 = scalar_select %p255, %s21, 0
      %p257 = scmp.lt.s32.totalorder %s20, 0
      %s258 = scalar_select %p257, %s20, 0
      %s259 = sadd.s32 %s258, %s256
      %s260 = sadd.s32 %s259, %s254
      %s261 = smul.addr %s260, 8
      %s262 = scalar_lea.vmem %s3, %s261
      %v264 = vld [vmem:[%s244] sm:$0xf]
      %v265 = vld [vmem:[%s249] sm:$0xf]
      %v266 = vld [vmem:[%s249 + $0x4] sm:$0xf]
      %v267 = vld [vmem:[%s244 + $0x4] sm:$0x1]
      %s268 = scalar_lea.vmem %s249, 8
      %v269 = vld [vmem:[%s268] sm:$0xf]
      %v270 = vld [vmem:[%s268 + $0x4] sm:$0xf]
      %v273 = vunpack.c.l.b16 %v264
      %v274 = vunpack.c.l.b16 %v267
      %v275 = vpack.c.b16 %v274, %v273
      %v277 = vshrl.u32 %v275, 16
      %v279 = vshll.u32 %v275, 16
      %v281 = vrot.slane %v279, 1
      %v282 = vor.u32 %v277, %v281
      %v285 = vunpack.c.l.b16 %v269
      %v286 = vunpack.c.l.b16 %v270
      %v287 = vpack.c.b16 %v286, %v285
      %vm289 = vcmask 130048
      %v291 = vsel %vm289, %v282, 0
      %293 = vmatpush.bf16.msra.mxu0 0
      %294 = vmatpush.bf16.msra.mxu0 0
      %295 = vmatpush.bf16.msra.mxu0 0
      %296 = vmatpush.bf16.msra.mxu0 0
      %297 = vmatpush.bf16.msra.mxu0 0
      %298 = vmatpush.bf16.msra.mxu0 0
      %299 = vmatpush.bf16.msra.mxu0 0
      %300 = vmatpush.bf16.msra.mxu0 %v287
      %301 = vmatmul.bf16.gmra.mxu0 %v291
      %v302 = vpop.f32.mrf.mxu0
      %v303 = vadd.f32 0.0, %v302
      %v304 = vpop.f32.mrf.mxu0
      %305 = vdwg.mxu0
      %v308 = vunpack.c.l.b16 %v265
      %v309 = vunpack.c.l.b16 %v266
      %v310 = vpack.c.b16 %v309, %v308
      %v313 = vsel %vm289, %v264, 0
      %315 = vmatpush.bf16.msra.mxu0 0
      %316 = vmatpush.bf16.msra.mxu0 0
      %317 = vmatpush.bf16.msra.mxu0 0
      %318 = vmatpush.bf16.msra.mxu0 0
      %319 = vmatpush.bf16.msra.mxu0 0
      %320 = vmatpush.bf16.msra.mxu0 0
      %321 = vmatpush.bf16.msra.mxu0 0
      %322 = vmatpush.bf16.msra.mxu0 %v310
      %323 = vmatmul.bf16.gmra.mxu0 %v313
      %v324 = vpop.f32.mrf.mxu0
      %v325 = vadd.f32 %v303, %v324
      %v326 = vpop.f32.mrf.mxu0
      %327 = vdwg.mxu0
      %v328 = vld [vmem:[%s244] sm:$0xe]
      %s329 = scalar_lea.vmem %s249, 16
      %v330 = vld [vmem:[%s329] sm:$0xf]
      %v331 = vld [vmem:[%s329 + $0x4] sm:$0xf]
      %v333 = vunpack.c.l.b16 %v328
      %v334 = vpack.c.b16 %v274, %v333
      %v335 = vrot.slane %v334, 1
      %v338 = vunpack.c.l.b16 %v330
      %v339 = vunpack.c.l.b16 %v331
      %v340 = vpack.c.b16 %v339, %v338
      %v343 = vsel %vm289, %v335, 0
      %345 = vmatpush.bf16.msra.mxu0 0
      %346 = vmatpush.bf16.msra.mxu0 0
      %347 = vmatpush.bf16.msra.mxu0 0
      %348 = vmatpush.bf16.msra.mxu0 0
      %349 = vmatpush.bf16.msra.mxu0 0
      %350 = vmatpush.bf16.msra.mxu0 0
      %351 = vmatpush.bf16.msra.mxu0 0
      %352 = vmatpush.bf16.msra.mxu0 %v340
      %353 = vmatmul.bf16.gmra.mxu0 %v343
      %v354 = vpop.f32.mrf.mxu0
      %v355 = vadd.f32 0.0, %v354
      %v356 = vpop.f32.mrf.mxu0
      %357 = vdwg.mxu0
      %v358 = vadd.f32 %v325, %v355
      %v359 = vld [vmem:[%s244 + $0x4] sm:$0x3]
      %s360 = scalar_lea.vmem %s249, 24
      %v361 = vld [vmem:[%s360] sm:$0xf]
      %v362 = vld [vmem:[%s360 + $0x4] sm:$0xf]
      %v364 = vunpack.c.l.b16 %v359
      %v365 = vpack.c.b16 %v364, %v333
      %v367 = vshrl.u32 %v365, 16
      %v369 = vrot.slane %v367, 1
      %v370 = vshll.u32 %v365, 16
      %v372 = vrot.slane %v370, 2
      %v373 = vor.u32 %v369, %v372
      %v376 = vunpack.c.l.b16 %v361
      %v377 = vunpack.c.l.b16 %v362
      %v378 = vpack.c.b16 %v377, %v376
      %v381 = vsel %vm289, %v373, 0
      %383 = vmatpush.bf16.msra.mxu0 0
      %384 = vmatpush.bf16.msra.mxu0 0
      %385 = vmatpush.bf16.msra.mxu0 0
      %386 = vmatpush.bf16.msra.mxu0 0
      %387 = vmatpush.bf16.msra.mxu0 0
      %388 = vmatpush.bf16.msra.mxu0 0
      %389 = vmatpush.bf16.msra.mxu0 0
      %390 = vmatpush.bf16.msra.mxu0 %v378
      %391 = vmatmul.bf16.gmra.mxu0 %v381
      %v392 = vpop.f32.mrf.mxu0
      %v393 = vadd.f32 0.0, %v392
      %v394 = vpop.f32.mrf.mxu0
      %395 = vdwg.mxu0
      %v396 = vadd.f32 %v358, %v393
      %v397 = vld [vmem:[%s244] sm:$0xc]
      %s398 = scalar_lea.vmem %s249, 32
      %v399 = vld [vmem:[%s398] sm:$0xf]
      %v400 = vld [vmem:[%s398 + $0x4] sm:$0xf]
      %v402 = vunpack.c.l.b16 %v397
      %v403 = vpack.c.b16 %v364, %v402
      %v404 = vrot.slane %v403, 2
      %v407 = vunpack.c.l.b16 %v399
      %v408 = vunpack.c.l.b16 %v400
      %v409 = vpack.c.b16 %v408, %v407
      %v412 = vsel %vm289, %v404, 0
      %414 = vmatpush.bf16.msra.mxu0 0
      %415 = vmatpush.bf16.msra.mxu0 0
      %416 = vmatpush.bf16.msra.mxu0 0
      %417 = vmatpush.bf16.msra.mxu0 0
      %418 = vmatpush.bf16.msra.mxu0 0
      %419 = vmatpush.bf16.msra.mxu0 0
      %420 = vmatpush.bf16.msra.mxu0 0
      %421 = vmatpush.bf16.msra.mxu0 %v409
      %422 = vmatmul.bf16.gmra.mxu0 %v412
      %v423 = vpop.f32.mrf.mxu0
      %v424 = vadd.f32 0.0, %v423
      %v425 = vpop.f32.mrf.mxu0
      %426 = vdwg.mxu0
      %v427 = vadd.f32 %v396, %v424
      %v428 = vld [vmem:[%s252] sm:$0x1]
      %v430 = vperm.slane %v428, 0
      %v432 = vadd.f32 %v427, %v430
      %vm433 = vcmp.gt.f32.partialorder %v432, 0.0
      %v434 = vmul.f32 %v432, 0.2
      %v435 = vsel %vm433, %v432, %v434
      %436 = vst.msk [vmem:[%s262] sm:$0xff] %vm289, %v435
      %p437 = scmp.lt.s32.totalorder %s19, 1
      %s438 = scalar_select %p437, %s19, 1
      %p439 = scmp.lt.s32.totalorder %s21, 0
      %s440 = scalar_select %p439, %s21, 0
      %p441 = scmp.lt.s32.totalorder %s20, 0
      %s442 = scalar_select %p441, %s20, 0
      %s443 = sadd.s32 %s442, %s440
      %s444 = sadd.s32 %s443, %s438
      %s445 = smul.addr %s444, 8
      %s446 = scalar_lea.vmem %s3, %s445
      // Predicated region
      $region33: #{nlayer_discriminator_forward.8} parent=31 // pred_check
        %p447 = pneg %p137
      $region34: #{nlayer_discriminator_forward.8} parent=31 // pred_check_branch
        %449 = sbr.rel (%p447) target = $region36
      $region35: #{nlayer_discriminator_forward.8} parent=31 // pred_region
        _
      $region36: #{nlayer_discriminator_forward.8} parent=31 // pred_fallthru
        _
    $region32: #{nlayer_discriminator_forward.8} parent=5 // pred_fallthru
      _
    %p450 = scmp.le.s32.totalorder 2, %s9
    // Predicated region
    $region37: #{nlayer_discriminator_forward.8} parent=5 // pred_check
      %p451 = pneg %p450
    $region38: #{nlayer_discriminator_forward.8} parent=5 // pred_check_branch
      %453 = sbr.rel (%p451) target = $region40
    $region39: #{nlayer_discriminator_forward.8} parent=5 // pred_region
      %s454 = ssub.s32 %s9, 2
      // Predicated region
      $region41: #{nlayer_discriminator_forward.8} parent=39 // pred_check
        %p455 = pneg %p143
      $region42: #{nlayer_discriminator_forward.8} parent=39 // pred_check_branch
        %457 = sbr.rel (%p455) target = $region44
      $region43: #{nlayer_discriminator_forward.8} parent=39 // pred_region
        %p458 = scmp.lt.s32.totalorder %s22, 1
        %s459 = scalar_select %p458, %s22, 1
        %p460 = scmp.lt.s32.totalorder %s24, 0
        %s461 = scalar_select %p460, %s24, 0
        %p462 = scmp.lt.s32.totalorder %s23, 0
        %s463 = scalar_select %p462, %s23, 0
        %s464 = sadd.s32 %s463, %s461
        %s465 = sadd.s32 %s464, %s459
        %s466 = smul.addr %s465, 8
        %s467 = scalar_lea.vmem %s3, %s466
      $region44: #{nlayer_discriminator_forward.8} parent=39 // pred_fallthru
        _
    $region40: #{nlayer_discriminator_forward.8} parent=5 // pred_fallthru
      _
  $region6: #{nlayer_discriminator_forward.8} parent=0 // loop_footer
    %s13 = sadd.s32 1, %s9
  $region7: #{nlayer_discriminator_forward.8} parent=0 // loop_footer_branch
    %8 = sbr.rel target = $region3
  $region8: #{nlayer_discriminator_forward.8} parent=0 // loop_exit
    _

// kernel: nlayer_discriminator_forward.9
$region0: #{nlayer_discriminator_forward.9}
  #allocation0 [shape = 'u32[]', space=smem, size = 0x4, offset = 0x4, fixed_abs, tag = 'smem constant byte address 0x4 - core index']
  #allocation1 [shape = 'u32[72,128]{1,0:T(1,128)}', space=vmem, size = 0x9000, scoped, tag = 'internal scratch']
  #allocation2 [shape = 'f32[1,1,1]{2,1,0:T(1,128)S(1)}', space=vmem, size = 0x200, scoped, tag = 'scoped memory for nlayer_discriminator_forward.9']
  %s0 = inlined_call_operand.vmem [shape: bf16[2,1,8,48], index: 0, kind: input, shape index: {}]
  %s1 = inlined_call_operand.vmem [shape: bf16[1,1,48,1], index: 1, kind: input, shape index: {}]
  %s2 = inlined_call_operand.<no memory space> [shape: f32[1,1,1], index: 2, kind: input, shape index: {}]
  %s3 = inlined_call_operand.vmem [shape: f32[2,1,8,1], index: 3, kind: output, shape index: {}]
  %s4 = sld [smem:[#allocation0]]
  $region45: #{nlayer_discriminator_forward.9} parent=0
    _
  %s6 = ssub.s32 1, %s4
  %s7 = scalar_select 0, %s6, %s4
  %v8 = vstv %s2
  %9 = vst [vmem:[#allocation2] sm:$0x1] %v8
  loop: start=0, step=1, limit=4
  $region2: #{nlayer_discriminator_forward.9} parent=0 // loop_pre_header
    _
  $region3: #{nlayer_discriminator_forward.9} parent=0 // loop_header
    %s11 = sphi 0, %s15
    %p12 = scmp.ge.s32.totalorder %s11, 4
    %s18 = sphi 0, %s37
    %s19 = sphi 0, %s33
    %s20 = sphi 0, %s29
    %s21 = sphi 0, %s18
    %s22 = sphi 0, %s19
    %s23 = sphi 0, %s20
    %s24 = sphi 0, %s21
    %s25 = sphi 0, %s22
    %s26 = sphi 0, %s23
    %s44 = sphi 0, %s46
    %s47 = sphi 0, %s44
    %s48 = sphi 0, %s47
    %s64 = sphi 0, %s48
    %s70 = sphi 0, %s72
    %s73 = sphi 0, %s70
    %s74 = sphi 0, %s73
    %s90 = sphi 0, %s74
    %s96 = sphi 0, %s98
    %s99 = sphi 0, %s96
    %s100 = sphi 0, %s99
    %s116 = sphi 0, %s100
    %s126 = sphi 0, %s128
    %s129 = sphi 0, %s126
    %s130 = sphi 0, %s129
    %s146 = sphi 0, %s130
  $region4: #{nlayer_discriminator_forward.9} parent=0 // loop_header_branch
    %14 = sbr.rel (%p12) target = $region8
  $region5: #{nlayer_discriminator_forward.9} parent=0 // loop_body
    %s16 = ssub.s32 %s11, 1
    %s17 = ssub.s32 %s11, 2
    %s27 = sadd.s32 1, %s20
    %p28 = scmp.ge.s32.totalorder %s27, 1
    %s29 = scalar_select %p28, 0, %s27
    %s30 = sadd.s32 1, %s19
    %s31 = scalar_select %p28, %s30, %s19
    %p32 = scmp.ge.s32.totalorder %s31, 1
    %s33 = scalar_select %p32, 0, %s31
    %s34 = sadd.s32 1, %s18
    %s35 = scalar_select %p32, %s34, %s18
    %p36 = scmp.ge.s32.totalorder %s35, 2
    %s37 = scalar_select %p36, 0, %s35
    %s38 = ssub.s32 %s18, %s37
    %s39 = ssub.s32 %s20, %s29
    %s40 = sor.u32 %s38, %s39
    %s41 = ssub.s32 %s19, %s33
    %s42 = sor.u32 %s40, %s41
    %p43 = scmp.eq.s32.totalorder %s42, 0
    %s45 = sadd.s32 %s44, 1
    %s46 = scalar_select %p43, %s44, %s45
    %p49 = pneg %p43
    %p50 = scmp.eq.s32.totalorder %s11, 1
    %p51 = por %p49, %p50
    %p52 = scmp.ne.s32.totalorder %s44, %s47
    %p53 = scmp.eq.s32.totalorder %s11, 0
    %p54 = por %p52, %p53
    %p55 = scmp.ne.s32.totalorder %s44, %s47
    %p56 = scmp.eq.s32.totalorder %s16, 1
    %p57 = por %p55, %p56
    %p58 = scmp.ne.s32.totalorder %s47, %s48
    %p59 = scmp.eq.s32.totalorder %s16, 0
    %p60 = por %p58, %p59
    %p61 = scmp.ne.s32.totalorder %s47, %s48
    %p62 = scmp.eq.s32.totalorder %s17, 1
    %p63 = por %p61, %p62
    %p65 = scmp.ne.s32.totalorder %s48, %s64
    %p66 = scmp.eq.s32.totalorder %s17, 0
    %p67 = por %p65, %p66
    %s68 = ssub.s32 %s19, %s33
    %p69 = scmp.eq.s32.totalorder %s68, 0
    %s71 = sadd.s32 %s70, 1
    %s72 = scalar_select %p69, %s70, %s71
    %p75 = pneg %p69
    %p76 = scmp.eq.s32.totalorder %s11, 1
    %p77 = por %p75, %p76
    %p78 = scmp.ne.s32.totalorder %s70, %s73
    %p79 = scmp.eq.s32.totalorder %s11, 0
    %p80 = por %p78, %p79
    %p81 = scmp.ne.s32.totalorder %s70, %s73
    %p82 = scmp.eq.s32.totalorder %s16, 1
    %p83 = por %p81, %p82
    %p84 = scmp.ne.s32.totalorder %s73, %s74
    %p85 = scmp.eq.s32.totalorder %s16, 0
    %p86 = por %p84, %p85
    %p87 = scmp.ne.s32.totalorder %s73, %s74
    %p88 = scmp.eq.s32.totalorder %s17, 1
    %p89 = por %p87, %p88
    %p91 = scmp.ne.s32.totalorder %s74, %s90
    %p92 = scmp.eq.s32.totalorder %s17, 0
    %p93 = por %p91, %p92
    %s94 = ssub.s32 %s19, %s33
    %p95 = scmp.eq.s32.totalorder %s94, 0
    %s97 = sadd.s32 %s96, 1
    %s98 = scalar_select %p95, %s96, %s97
    %p101 = pneg %p95
    %p102 = scmp.eq.s32.totalorder %s11, 1
    %p103 = por %p101, %p102
    %p104 = scmp.ne.s32.totalorder %s96, %s99
    %p105 = scmp.eq.s32.totalorder %s11, 0
    %p106 = por %p104, %p105
    %p107 = scmp.ne.s32.totalorder %s96, %s99
    %p108 = scmp.eq.s32.totalorder %s16, 1
    %p109 = por %p107, %p108
    %p110 = scmp.ne.s32.totalorder %s99, %s100
    %p111 = scmp.eq.s32.totalorder %s16, 0
    %p112 = por %p110, %p111
    %p113 = scmp.ne.s32.totalorder %s99, %s100
    %p114 = scmp.eq.s32.totalorder %s17, 1
    %p115 = por %p113, %p114
    %p117 = scmp.ne.s32.totalorder %s100, %s116
    %p118 = scmp.eq.s32.totalorder %s17, 0
    %p119 = por %p117, %p118
    %s120 = ssub.s32 %s18, %s37
    %s121 = ssub.s32 %s20, %s29
    %s122 = sor.u32 %s120, %s121
    %s123 = ssub.s32 %s19, %s33
    %s124 = sor.u32 %s122, %s123
    %p125 = scmp.eq.s32.totalorder %s124, 0
    %s127 = sadd.s32 %s126, 1
    %s128 = scalar_select %p125, %s126, %s127
    %p131 = pneg %p125
    %p132 = scmp.eq.s32.totalorder %s11, 1
    %p133 = por %p131, %p132
    %p134 = scmp.ne.s32.totalorder %s126, %s129
    %p135 = scmp.eq.s32.totalorder %s11, 0
    %p136 = por %p134, %p135
    %p137 = scmp.ne.s32.totalorder %s126, %s129
    %p138 = scmp.eq.s32.totalorder %s16, 1
    %p139 = por %p137, %p138
    %p140 = scmp.ne.s32.totalorder %s129, %s130
    %p141 = scmp.eq.s32.totalorder %s16, 0
    %p142 = por %p140, %p141
    %p143 = scmp.ne.s32.totalorder %s129, %s130
    %p144 = scmp.eq.s32.totalorder %s17, 1
    %p145 = por %p143, %p144
    %p147 = scmp.ne.s32.totalorder %s130, %s146
    %p148 = scmp.eq.s32.totalorder %s17, 0
    %p149 = por %p147, %p148
    %p150 = scmp.le.s32.totalorder 1, %s11
    %p151 = scmp.lt.s32.totalorder %s11, 3
    %p152 = pnand %p150, %p151
    %p153 = pneg %p152
    // Predicated region
    $region9: #{nlayer_discriminator_forward.9} parent=5 // pred_check
      _
    $region10: #{nlayer_discriminator_forward.9} parent=5 // pred_check_branch
      %155 = sbr.rel (%p152) target = $region12
    $region11: #{nlayer_discriminator_forward.9} parent=5 // pred_region
      %s156 = ssub.s32 %s11, 1
      // Predicated region
      $region13: #{nlayer_discriminator_forward.9} parent=11 // pred_check
        %p157 = pneg %p86
      $region14: #{nlayer_discriminator_forward.9} parent=11 // pred_check_branch
        %159 = sbr.rel (%p157) target = $region16
      $region15: #{nlayer_discriminator_forward.9} parent=11 // pred_region
        %p160 = scmp.lt.s32.totalorder %s22, 0
        %s161 = scalar_select %p160, %s22, 0
        %s162 = smul.addr %s161, 6
        %s163 = smul.addr %s162, 4
        %s164 = scalar_lea.vmem %s1, %s163
      $region16: #{nlayer_discriminator_forward.9} parent=11 // pred_fallthru
        _
      // Predicated region
      $region17: #{nlayer_discriminator_forward.9} parent=11 // pred_check
        %p165 = pneg %p112
      $region18: #{nlayer_discriminator_forward.9} parent=11 // pred_check_branch
        %167 = sbr.rel (%p165) target = $region20
      $region19: #{nlayer_discriminator_forward.9} parent=11 // pred_region
        %p168 = scmp.lt.s32.totalorder %s22, 0
        %s169 = scalar_select %p168, %s22, 0
        %s170 = scalar_lea.vmem [#allocation2], %s169
      $region20: #{nlayer_discriminator_forward.9} parent=11 // pred_fallthru
        _
    $region12: #{nlayer_discriminator_forward.9} parent=5 // pred_fallthru
      _
    %p171 = scmp.lt.s32.totalorder %s11, 2
    // Predicated region
    $region21: #{nlayer_discriminator_forward.9} parent=5 // pred_check
      %p172 = pneg %p171
    $region22: #{nlayer_discriminator_forward.9} parent=5 // pred_check_branch
      %174 = sbr.rel (%p172) target = $region24
    $region23: #{nlayer_discriminator_forward.9} parent=5 // pred_region
      // Predicated region
      $region25: #{nlayer_discriminator_forward.9} parent=23 // pred_check
        %p175 = pneg %p54
      $region26: #{nlayer_discriminator_forward.9} parent=23 // pred_check_branch
        %177 = sbr.rel (%p175) target = $region28
      $region27: #{nlayer_discriminator_forward.9} parent=23 // pred_region
        %p178 = scmp.lt.s32.totalorder %s18, 1
        %s179 = scalar_select %p178, %s18, 1
        %p180 = scmp.lt.s32.totalorder %s20, 0
        %s181 = scalar_select %p180, %s20, 0
        %p182 = scmp.lt.s32.totalorder %s19, 0
        %s183 = scalar_select %p182, %s19, 0
        %s184 = sadd.s32 %s183, %s181
        %s185 = sadd.s32 %s184, %s179
        %s186 = smul.addr %s185, 4
        %s187 = scalar_lea.vmem %s0, %s186
      $region28: #{nlayer_discriminator_forward.9} parent=23 // pred_fallthru
        _
    $region24: #{nlayer_discriminator_forward.9} parent=5 // pred_fallthru
      _
    %p188 = scmp.le.s32.totalorder 1, %s11
    %p189 = scmp.lt.s32.totalorder %s11, 3
    %p190 = pnand %p188, %p189
    %p191 = pneg %p190
    // Predicated region
    $region29: #{nlayer_discriminator_forward.9} parent=5 // pred_check
      _
    $region30: #{nlayer_discriminator_forward.9} parent=5 // pred_check_branch
      %193 = sbr.rel (%p190) target = $region32
    $region31: #{nlayer_discriminator_forward.9} parent=5 // pred_region
      %s194 = ssub.s32 %s11, 1
      %p195 = scmp.lt.s32.totalorder %s21, 1
      %s196 = scalar_select %p195, %s21, 1
      %p197 = scmp.lt.s32.totalorder %s23, 0
      %s198 = scalar_select %p197, %s23, 0
      %p199 = scmp.lt.s32.totalorder %s22, 0
      %s200 = scalar_select %p199, %s22, 0
      %s201 = sadd.s32 %s200, %s198
      %s202 = sadd.s32 %s201, %s196
      %s203 = smul.addr %s202, 4
      %s204 = scalar_lea.vmem %s0, %s203
      %p205 = pneg %p60
      %p206 = pneg %p57
      %p207 = scmp.lt.s32.totalorder %s22, 0
      %s208 = scalar_select %p207, %s22, 0
      %s209 = smul.addr %s208, 6
      %s210 = smul.addr %s209, 4
      %s211 = scalar_lea.vmem %s1, %s210
      %p212 = pneg %p86
      %p213 = pneg %p83
      %p214 = scmp.lt.s32.totalorder %s22, 0
      %s215 = scalar_select %p214, %s22, 0
      %s216 = scalar_lea.vmem [#allocation2], %s215
      %p217 = pneg %p112
      %p218 = pneg %p109
      %p219 = pneg %p142
      %p220 = pneg %p139
      %p221 = scmp.lt.s32.totalorder %s21, 1
      %s222 = scalar_select %p221, %s21, 1
      %p223 = scmp.lt.s32.totalorder %s23, 0
      %s224 = scalar_select %p223, %s23, 0
      %p225 = scmp.lt.s32.totalorder %s22, 0
      %s226 = scalar_select %p225, %s22, 0
      %s227 = sadd.s32 %s226, %s224
      %s228 = sadd.s32 %s227, %s222
      %s229 = smul.addr %s228, 8
      %s230 = scalar_lea.vmem %s3, %s229
      %p231 = scmp.lt.s32.totalorder %s21, 1
      %s232 = scalar_select %p231, %s21, 1
      %p233 = scmp.lt.s32.totalorder %s23, 0
      %s234 = scalar_select %p233, %s23, 0
      %p235 = scmp.lt.s32.totalorder %s22, 0
      %s236 = scalar_select %p235, %s22, 0
      %s237 = sadd.s32 %s236, %s234
      %s238 = sadd.s32 %s237, %s232
      %s239 = smul.addr %s238, 4
      %s240 = scalar_lea.vmem %s0, %s239
      %p241 = scmp.lt.s32.totalorder %s22, 0
      %s242 = scalar_select %p241, %s22, 0
      %s243 = smul.addr %s242, 6
      %s244 = smul.addr %s243, 4
      %s245 = scalar_lea.vmem %s1, %s244
      %p246 = scmp.lt.s32.totalorder %s22, 0
      %s247 = scalar_select %p246, %s22, 0
      %s248 = scalar_lea.vmem [#allocation2], %s247
      %p249 = scmp.lt.s32.totalorder %s21, 1
      %s250 = scalar_select %p249, %s21, 1
      %p251 = scmp.lt.s32.totalorder %s23, 0
      %s252 = scalar_select %p251, %s23, 0
      %p253 = scmp.lt.s32.totalorder %s22, 0
      %s254 = scalar_select %p253, %s22, 0
      %s255 = sadd.s32 %s254, %s252
      %s256 = sadd.s32 %s255, %s250
      %s257 = smul.addr %s256, 8
      %s258 = scalar_lea.vmem %s3, %s257
      %v260 = vld [vmem:[%s240] sm:$0xf]
      %v261 = vld [vmem:[%s245] sm:$0xf]
      %v262 = vld [vmem:[%s245 + $0x4] sm:$0xf]
      %v263 = vld [vmem:[%s245 + $0x8] sm:$0xf]
      %v264 = vld [vmem:[%s245 + $0xc] sm:$0xf]
      %v265 = vld [vmem:[%s245 + $0x10] sm:$0xf]
      %v266 = vld [vmem:[%s245 + $0x14] sm:$0xf]
      %v267 = vld [vmem:[%s248] sm:$0x1]
      %v269 = vperm.slane %v267, 0
      %v277 = vunpack.c.l.b16 %v261
      %v278 = vunpack.c.l.b16 %v262
      %v279 = vunpack.c.l.b16 %v263
      %v280 = vunpack.c.l.b16 %v264
      %v281 = vunpack.c.l.b16 %v265
      %v282 = vunpack.c.l.b16 %v266
      %v283 = vpack.c.b16 %v278, %v277
      %v284 = vpack.c.b16 %v280, %v279
      %v285 = vpack.c.b16 %v282, %v281
      %vm289 = vcmask 392192
      %v291 = vsel %vm289, %v260, 0
      %293 = vmatpush.bf16.msra.mxu0 0
      %294 = vmatpush.bf16.msra.mxu0 0
      %295 = vmatpush.bf16.msra.mxu0 0
      %296 = vmatpush.bf16.msra.mxu0 0
      %297 = vmatpush.bf16.msra.mxu0 0
      %298 = vmatpush.bf16.msra.mxu0 %v285
      %299 = vmatpush.bf16.msra.mxu0 %v284
      %300 = vmatpush.bf16.msra.mxu0 %v283
      %301 = vmatmul.bf16.gmra.mxu0 %v291
      %v302 = vpop.f32.mrf.mxu0
      %v303 = vadd.f32 %v269, %v302
      %v304 = vpop.f32.mrf.mxu0
      %305 = vdwg.mxu0
      %vm306 = vcmask 7168
      %307 = vst.msk [vmem:[%s258] sm:$0xff] %vm306, %v303
      %p308 = scmp.lt.s32.totalorder %s21, 1
      %s309 = scalar_select %p308, %s21, 1
      %p310 = scmp.lt.s32.totalorder %s23, 0
      %s311 = scalar_select %p310, %s23, 0
      %p312 = scmp.lt.s32.totalorder %s22, 0
      %s313 = scalar_select %p312, %s22, 0
      %s314 = sadd.s32 %s313, %s311
      %s315 = sadd.s32 %s314, %s309
      %s316 = smul.addr %s315, 8
      %s317 = scalar_lea.vmem %s3, %s316
      // Predicated region
      $region33: #{nlayer_discriminator_forward.9} parent=31 // pred_check
        %p318 = pneg %p139
      $region34: #{nlayer_discriminator_forward.9} parent=31 // pred_check_branch
        %320 = sbr.rel (%p318) target = $region36
      $region35: #{nlayer_discriminator_forward.9} parent=31 // pred_region
        _
      $region36: #{nlayer_discriminator_forward.9} parent=31 // pred_fallthru
        _
    $region32: #{nlayer_discriminator_forward.9} parent=5 // pred_fallthru
      _
    %p321 = scmp.le.s32.totalorder 2, %s11
    // Predicated region
    $region37: #{nlayer_discriminator_forward.9} parent=5 // pred_check
      %p322 = pneg %p321
    $region38: #{nlayer_discriminator_forward.9} parent=5 // pred_check_branch
      %324 = sbr.rel (%p322) target = $region40
    $region39: #{nlayer_discriminator_forward.9} parent=5 // pred_region
      %s325 = ssub.s32 %s11, 2
      // Predicated region
      $region41: #{nlayer_discriminator_forward.9} parent=39 // pred_check
        %p326 = pneg %p145
      $region42: #{nlayer_discriminator_forward.9} parent=39 // pred_check_branch
        %328 = sbr.rel (%p326) target = $region44
      $region43: #{nlayer_discriminator_forward.9} parent=39 // pred_region
        %p329 = scmp.lt.s32.totalorder %s24, 1
        %s330 = scalar_select %p329, %s24, 1
        %p331 = scmp.lt.s32.totalorder %s26, 0
        %s332 = scalar_select %p331, %s26, 0
        %p333 = scmp.lt.s32.totalorder %s25, 0
        %s334 = scalar_select %p333, %s25, 0
        %s335 = sadd.s32 %s334, %s332
        %s336 = sadd.s32 %s335, %s330
        %s337 = smul.addr %s336, 8
        %s338 = scalar_lea.vmem %s3, %s337
      $region44: #{nlayer_discriminator_forward.9} parent=39 // pred_fallthru
        _
    $region40: #{nlayer_discriminator_forward.9} parent=5 // pred_fallthru
      _
  $region6: #{nlayer_discriminator_forward.9} parent=0 // loop_footer
    %s15 = sadd.s32 1, %s11
  $region7: #{nlayer_discriminator_forward.9} parent=0 // loop_footer_branch
    %10 = sbr.rel target = $region3
  $region8: #{nlayer_discriminator_forward.9} parent=0 // loop_exit
    _

</llo_original>
